<compile_context>
chip_gen: v5e
topology: v5e:2x2
jax: 0.10.0
libtpu: 0.0.40
codegen_flags: <defaults>
</compile_context>

<pallas_src>
import functools

import jax
import jax.numpy as jnp
from jax.experimental import pallas as pl
from jax.experimental.pallas import tpu as pltpu


# Scoped-VMEM budget: larger than the 16/32 MiB defaults (so bigger tiles are
# allowed), comfortably under v7x's 64 MiB physical VMEM.
_VMEM_LIMIT_BYTES = 40 * 1024 * 1024
_NEG_LARGE = -1e30  # masks padded class columns out of the log_softmax


def _project_kernel(x_ref, w_ref, xw_ref):
    """XW = X @ W for one row tile. bf16 operands, f32 MXU accumulation."""
    xw_ref[...] = jnp.dot(
        x_ref[...], w_ref[...], preferred_element_type=jnp.float32
    ).astype(xw_ref.dtype)


def _aggregate_kernel(adj_ref, xw_ref, b_ref, out_ref, acc_ref, *,
                      activation, num_valid_cols):
    """out = act(A_hat @ XW + b) for one row tile, accumulated over adj column tiles."""
    k = pl.program_id(1)

    @pl.when(k == 0)
    def _init():
        acc_ref[...] = jnp.zeros_like(acc_ref)

    acc_ref[...] += jnp.dot(
        adj_ref[...], xw_ref[...], preferred_element_type=jnp.float32
    )

    @pl.when(k == pl.num_programs(1) - 1)
    def _finalize():
        z = acc_ref[...] + b_ref[...]                       # f32 bias add
        if activation == "relu":
            out_ref[...] = jnp.maximum(z, 0.0).astype(out_ref.dtype)
        else:  # masked log_softmax over the first `num_valid_cols` lanes
            col = jax.lax.broadcasted_iota(jnp.int32, z.shape, 1)
            z = jnp.where(col < num_valid_cols, z, _NEG_LARGE)
            z_max = jnp.max(z, axis=1, keepdims=True)
            shifted = z - z_max
            lse = jnp.log(jnp.sum(jnp.exp(shifted), axis=1, keepdims=True))
            out_ref[...] = (shifted - lse).astype(out_ref.dtype)


def _graph_conv(adj_b, x_b, w_b, b_f32, *, activation, num_valid_cols,
                out_dtype, row_tile, col_tile):
    """One GraphConv layer: act(A_hat @ (X @ W) + b), fully tiled."""
    n = adj_b.shape[0]
    f_in = x_b.shape[1]
    f_out = w_b.shape[1]
    tm = min(row_tile, n)
    tk = min(col_tile, n)
    assert n % tm == 0 and n % tk == 0, "node count must divide the tile sizes"
    assert tm % 8 == 0 and (tk % 128 == 0 or tk == n), "tile alignment"

    # ---- projection: XW = X @ W (bf16 storage, f32 accumulation) ----
    xw = pl.pallas_call(
        _project_kernel,
        out_shape=jax.ShapeDtypeStruct((n, f_out), jnp.bfloat16),
        grid_spec=pltpu.PrefetchScalarGridSpec(
            num_scalar_prefetch=0,
            grid=(n // tm,),
            in_specs=[
                pl.BlockSpec((tm, f_in), lambda i: (i, 0)),
                pl.BlockSpec((f_in, f_out), lambda i: (0, 0)),
            ],
            out_specs=pl.BlockSpec((tm, f_out), lambda i: (i, 0)),
        ),
        compiler_params=pltpu.CompilerParams(
            dimension_semantics=("parallel",),
            vmem_limit_bytes=_VMEM_LIMIT_BYTES,
        ),
    )(x_b, w_b)

    # ---- aggregation: act(A_hat @ XW + b), accumulate over adj column tiles ----
    out = pl.pallas_call(
        functools.partial(_aggregate_kernel,
                          activation=activation,
                          num_valid_cols=num_valid_cols),
        out_shape=jax.ShapeDtypeStruct((n, f_out), out_dtype),
        grid_spec=pltpu.PrefetchScalarGridSpec(
            num_scalar_prefetch=0,
            grid=(n // tm, n // tk),
            in_specs=[
                pl.BlockSpec((tm, tk), lambda i, k: (i, k)),      # A_hat tile
                pl.BlockSpec((tk, f_out), lambda i, k: (k, 0)),   # XW tile
                pl.BlockSpec((1, f_out), lambda i, k: (0, 0)),    # bias
            ],
            out_specs=pl.BlockSpec((tm, f_out), lambda i, k: (i, 0)),
            scratch_shapes=[pltpu.VMEM((tm, f_out), jnp.float32)],
        ),
        compiler_params=pltpu.CompilerParams(
            dimension_semantics=("parallel", "arbitrary"),
            vmem_limit_bytes=_VMEM_LIMIT_BYTES,
        ),
    )(adj_b, xw, b_f32)
    return out


def gcn_forward(adj, x, w1, b1, w2, b2, *,
                hidden_pad=128, class_pad=128, row_tile=256, col_tile=256):
    """relu(A(XW1)+b1) -> [dropout=identity] -> A(HW2)+b2 -> log_softmax(dim=1)."""
    c = w2.shape[1]
    hp = max(hidden_pad, w1.shape[1])
    cp = max(class_pad, c)

    # Lane-dense zero padding of hidden / class dims (numerically a no-op:
    # ReLU(0 + 0) = 0, zero W2 rows contribute 0, padded logits masked in-kernel).
    w1p = jnp.pad(w1, ((0, 0), (0, hp - w1.shape[1]))).astype(jnp.bfloat16)
    b1p = jnp.pad(b1, ((0, 0), (0, hp - b1.shape[1]))).astype(jnp.float32)
    w2p = jnp.pad(w2, ((0, hp - w2.shape[0]), (0, cp - c))).astype(jnp.bfloat16)
    b2p = jnp.pad(b2, ((0, 0), (0, cp - c))).astype(jnp.float32)

    adj_b = adj.astype(jnp.bfloat16)   # halves adjacency DMA bytes, bf16 MXU path
    x_b = x.astype(jnp.bfloat16)

    # Layer 1: GraphConv(F -> H) + ReLU (hidden activations kept bf16 for layer 2).
    h = _graph_conv(adj_b, x_b, w1p, b1p,
                    activation="relu", num_valid_cols=hp,
                    out_dtype=jnp.bfloat16, row_tile=row_tile, col_tile=col_tile)

    # Dropout is identity at inference (self.training == False).
    # TODO(synk): add training-mode dropout via pltpu.prng_random_bits if needed.

    # Layer 2: GraphConv(H -> C) + masked log_softmax over the true C classes.
    z = _graph_conv(adj_b, h, w2p, b2p,
                    activation="log_softmax", num_valid_cols=c,
                    out_dtype=jnp.float32, row_tile=row_tile, col_tile=col_tile)

    return z[:, :c]


def build_normalized_adjacency(edge_index, num_nodes):
    """Dense D^{-1/2} (A + I) D^{-1/2} from an edge list."""
    src, dst = edge_index
    adj = jnp.zeros((num_nodes, num_nodes), jnp.float32)
    adj = adj.at[src, dst].set(1.0)
    adj = adj.at[dst, src].set(1.0)                       # undirected
    adj = adj + jnp.eye(num_nodes, dtype=jnp.float32)     # self loops
    deg = jnp.sum(adj, axis=1)
    d_inv_sqrt = 1.0 / jnp.sqrt(deg)
    return adj * d_inv_sqrt[:, None] * d_inv_sqrt[None, :]


if __name__ == "__main__":
    # Small synthetic "Cora-like" graph (lane-dense feature dim).
    num_nodes = 512
    num_features = 128
    hidden = 16
    num_targets = 8
    num_edges = 4096

    key = jax.random.PRNGKey(0)
    k_x, k_e, k_w1, k_w2 = jax.random.split(key, 4)

    x = jax.random.normal(k_x, (num_nodes, num_features), jnp.float32)
    edge_index = jax.random.randint(k_e, (2, num_edges), 0, num_nodes)
    adj = build_normalized_adjacency(edge_index, num_nodes)

    def glorot(k, shape):
        limit = jnp.sqrt(6.0 / (shape[0] + shape[1]))
        return jax.random.uniform(k, shape, jnp.float32, -limit, limit)

    w1 = glorot(k_w1, (num_features, hidden))
    b1 = jnp.zeros((1, hidden), jnp.float32)
    w2 = glorot(k_w2, (hidden, num_targets))
    b2 = jnp.zeros((1, num_targets), jnp.float32)

    out = jax.block_until_ready(jax.jit(gcn_forward)(adj, x, w1, b1, w2, b2))
    assert out.shape == (num_nodes, num_targets)

    # Reference 1: pure-JAX path mimicking the kernel's bf16 operands /
    # f32 accumulation (tight tolerance).
    adj_b = adj.astype(jnp.bfloat16)
    x_b = x.astype(jnp.bfloat16)
    xw1 = jnp.dot(x_b, w1.astype(jnp.bfloat16),
                  preferred_element_type=jnp.float32).astype(jnp.bfloat16)
    h_ref = jnp.maximum(
        jnp.dot(adj_b, xw1, preferred_element_type=jnp.float32) + b1, 0.0
    ).astype(jnp.bfloat16)
    xw2 = jnp.dot(h_ref, w2.astype(jnp.bfloat16),
                  preferred_element_type=jnp.float32).astype(jnp.bfloat16)
    z_ref = jnp.dot(adj_b, xw2, preferred_element_type=jnp.float32) + b2
    ref_bf16 = jax.nn.log_softmax(z_ref, axis=1)
    assert jnp.allclose(out, ref_bf16, atol=2e-3, rtol=2e-3)

    # Reference 2: full-f32 path (coarse sanity check; difference is bf16 rounding).
    h32 = jnp.maximum(adj @ (x @ w1) + b1, 0.0)
    ref_f32 = jax.nn.log_softmax(adj @ (h32 @ w2) + b2, axis=1)
    assert jnp.allclose(out, ref_f32, atol=3e-1)

    # Valid log-probabilities: exp sums to 1 over the true class axis.
    assert jnp.allclose(jnp.exp(out).sum(axis=1), 1.0, atol=1e-2)

    print("KERNEL_OK")
</pallas_src>

<mosaic_0001>
module attributes {stable_mosaic.version = 11 : i64} {
  func.func @_project_kernel(%arg0: i32, %arg1: memref<256x128xbf16, #tpu.memory_space<vmem>>, %arg2: memref<128x128xbf16, #tpu.memory_space<vmem>>, %arg3: memref<256x128xbf16, #tpu.memory_space<vmem>>) attributes {dimension_semantics = [#tpu.dimension_semantics<parallel>], iteration_bounds = array<i64: 2>, scalar_prefetch = 0 : i64, scratch_operands = 0 : i64, tpu.core_type = #tpu.core_type<tc>, window_params = [{transform_indices = @transform_0, window_bounds = array<i64: 256, 128>}, {pipeline_mode = #tpu.pipeline_mode<synchronous>, transform_indices = @transform_1, window_bounds = array<i64: 128, 128>}, {transform_indices = @transform_2, window_bounds = array<i64: 256, 128>}]} {
    %c0 = arith.constant 0 : index
    %c0_0 = arith.constant 0 : index
    %0 = vector.load %arg1[%c0, %c0_0] : memref<256x128xbf16, #tpu.memory_space<vmem>>, vector<256x128xbf16>
    %c0_1 = arith.constant 0 : index
    %c0_2 = arith.constant 0 : index
    %1 = vector.load %arg2[%c0_1, %c0_2] : memref<128x128xbf16, #tpu.memory_space<vmem>>, vector<128x128xbf16>
    %cst = arith.constant dense<0.000000e+00> : vector<256x128xf32>
    %2 = tpu.matmul %0, %1, %cst {dimension_numbers = #tpu.dot_dimension_numbers<[1], [0], [0], [1], [0, 0, 1, 1], [], []>} : vector<256x128xbf16>, vector<128x128xbf16>, vector<256x128xf32> -> vector<256x128xf32>
    %3 = arith.truncf %2 : vector<256x128xf32> to vector<256x128xbf16>
    %c0_3 = arith.constant 0 : index
    %c0_4 = arith.constant 0 : index
    %4 = vector.load %arg3[%c0_3, %c0_4] : memref<256x128xbf16, #tpu.memory_space<vmem>>, vector<256x128xbf16>
    tpu.vector_store %arg3[%c0_3, %c0_4], %3 {strides = array<i32>} : memref<256x128xbf16, #tpu.memory_space<vmem>>, vector<256x128xbf16>,
    return
  }
  func.func @transform_0(%arg0: i32) -> (i32, i32) {
    %c0_i32 = arith.constant 0 : i32
    %c0_i32_0 = arith.constant 0 : i32
    return %arg0, %c0_i32 : i32, i32
  }
  func.func @transform_1(%arg0: i32) -> (i32, i32) {
    %c0_i32 = arith.constant 0 : i32
    %c0_i32_0 = arith.constant 0 : i32
    %c0_i32_1 = arith.constant 0 : i32
    return %c0_i32, %c0_i32_0 : i32, i32
  }
  func.func @transform_2(%arg0: i32) -> (i32, i32) {
    %c0_i32 = arith.constant 0 : i32
    %c0_i32_0 = arith.constant 0 : i32
    return %arg0, %c0_i32 : i32, i32
  }
}

module attributes {stable_mosaic.version = 11 : i64} {
  func.func @_aggregate_kernel(%arg0: i32, %arg1: i32, %arg2: memref<256x256xbf16, #tpu.memory_space<vmem>>, %arg3: memref<256x128xbf16, #tpu.memory_space<vmem>>, %arg4: memref<1x128xf32, #tpu.memory_space<vmem>>, %arg5: memref<256x128xbf16, #tpu.memory_space<vmem>>, %arg6: memref<256x128xf32, #tpu.memory_space<vmem>>) attributes {dimension_semantics = [#tpu.dimension_semantics<parallel>, #tpu.dimension_semantics<arbitrary>], iteration_bounds = array<i64: 2, 2>, scalar_prefetch = 0 : i64, scratch_operands = 1 : i64, tpu.core_type = #tpu.core_type<tc>, window_params = [{transform_indices = @transform_0, window_bounds = array<i64: 256, 256>}, {transform_indices = @transform_1, window_bounds = array<i64: 256, 128>}, {pipeline_mode = #tpu.pipeline_mode<synchronous>, transform_indices = @transform_2, window_bounds = array<i64: 1, 128>}, {transform_indices = @transform_3, window_bounds = array<i64: 256, 128>}]} {
    %c0_i32 = arith.constant 0 : i32
    %0 = arith.cmpi eq, %arg1, %c0_i32 : i32
    %1 = arith.extui %0 : i1 to i32
    %c0_i32_0 = arith.constant 0 : i32
    %2 = arith.cmpi ne, %1, %c0_i32_0 : i32
    scf.if %2 {
      %cst_9 = arith.constant 0.000000e+00 : f32
      %12 = vector.broadcast %cst_9 : f32 to vector<256x128xf32>
      %c0_10 = arith.constant 0 : index
      %c0_11 = arith.constant 0 : index
      %13 = vector.load %arg6[%c0_10, %c0_11] : memref<256x128xf32, #tpu.memory_space<vmem>>, vector<256x128xf32>
      tpu.vector_store %arg6[%c0_10, %c0_11], %12 {strides = array<i32>} : memref<256x128xf32, #tpu.memory_space<vmem>>, vector<256x128xf32>,
    } else {
    }
    %c0 = arith.constant 0 : index
    %c0_1 = arith.constant 0 : index
    %3 = vector.load %arg6[%c0, %c0_1] : memref<256x128xf32, #tpu.memory_space<vmem>>, vector<256x128xf32>
    %c0_2 = arith.constant 0 : index
    %c0_3 = arith.constant 0 : index
    %4 = vector.load %arg2[%c0_2, %c0_3] : memref<256x256xbf16, #tpu.memory_space<vmem>>, vector<256x256xbf16>
    %c0_4 = arith.constant 0 : index
    %c0_5 = arith.constant 0 : index
    %5 = vector.load %arg3[%c0_4, %c0_5] : memref<256x128xbf16, #tpu.memory_space<vmem>>, vector<256x128xbf16>
    %cst = arith.constant dense<0.000000e+00> : vector<256x128xf32>
    %6 = tpu.matmul %4, %5, %cst {dimension_numbers = #tpu.dot_dimension_numbers<[1], [0], [0], [1], [0, 0, 1, 1], [], []>} : vector<256x256xbf16>, vector<256x128xbf16>, vector<256x128xf32> -> vector<256x128xf32>
    %7 = arith.addf %3, %6 : vector<256x128xf32>
    %c0_6 = arith.constant 0 : index
    %c0_7 = arith.constant 0 : index
    %8 = vector.load %arg6[%c0_6, %c0_7] : memref<256x128xf32, #tpu.memory_space<vmem>>, vector<256x128xf32>
    tpu.vector_store %arg6[%c0_6, %c0_7], %7 {strides = array<i32>} : memref<256x128xf32, #tpu.memory_space<vmem>>, vector<256x128xf32>,
    %c1_i32 = arith.constant 1 : i32
    %9 = arith.cmpi eq, %arg1, %c1_i32 : i32
    %10 = arith.extui %9 : i1 to i32
    %c0_i32_8 = arith.constant 0 : i32
    %11 = arith.cmpi ne, %10, %c0_i32_8 : i32
    scf.if %11 {
      %c0_9 = arith.constant 0 : index
      %c0_10 = arith.constant 0 : index
      %12 = vector.load %arg6[%c0_9, %c0_10] : memref<256x128xf32, #tpu.memory_space<vmem>>, vector<256x128xf32>
      %c0_11 = arith.constant 0 : index
      %c0_12 = arith.constant 0 : index
      %13 = vector.load %arg4[%c0_11, %c0_12] : memref<1x128xf32, #tpu.memory_space<vmem>>, vector<1x128xf32>
      %14 = vector.broadcast %13 : vector<1x128xf32> to vector<256x128xf32>
      %15 = arith.addf %12, %14 : vector<256x128xf32>
      %cst_13 = arith.constant 0.000000e+00 : f32
      %16 = vector.broadcast %cst_13 : f32 to vector<256x128xf32>
      %17 = arith.maximumf %15, %16 : vector<256x128xf32>
      %18 = arith.truncf %17 : vector<256x128xf32> to vector<256x128xbf16>
      %c0_14 = arith.constant 0 : index
      %c0_15 = arith.constant 0 : index
      %19 = vector.load %arg5[%c0_14, %c0_15] : memref<256x128xbf16, #tpu.memory_space<vmem>>, vector<256x128xbf16>
      tpu.vector_store %arg5[%c0_14, %c0_15], %18 {strides = array<i32>} : memref<256x128xbf16, #tpu.memory_space<vmem>>, vector<256x128xbf16>,
    } else {
    }
    return
  }
  func.func @transform_0(%arg0: i32, %arg1: i32) -> (i32, i32) {
    %c0_i32 = arith.constant 0 : i32
    return %arg0, %arg1 : i32, i32
  }
  func.func @transform_1(%arg0: i32, %arg1: i32) -> (i32, i32) {
    %c0_i32 = arith.constant 0 : i32
    %c0_i32_0 = arith.constant 0 : i32
    return %arg1, %c0_i32 : i32, i32
  }
  func.func @transform_2(%arg0: i32, %arg1: i32) -> (i32, i32) {
    %c0_i32 = arith.constant 0 : i32
    %c0_i32_0 = arith.constant 0 : i32
    %c0_i32_1 = arith.constant 0 : i32
    return %c0_i32, %c0_i32_0 : i32, i32
  }
  func.func @transform_3(%arg0: i32, %arg1: i32) -> (i32, i32) {
    %c0_i32 = arith.constant 0 : i32
    %c0_i32_0 = arith.constant 0 : i32
    return %arg0, %c0_i32 : i32, i32
  }
}

module attributes {stable_mosaic.version = 11 : i64} {
  func.func @_aggregate_kernel(%arg0: i32, %arg1: i32, %arg2: memref<256x256xbf16, #tpu.memory_space<vmem>>, %arg3: memref<256x128xbf16, #tpu.memory_space<vmem>>, %arg4: memref<1x128xf32, #tpu.memory_space<vmem>>, %arg5: memref<256x128xf32, #tpu.memory_space<vmem>>, %arg6: memref<256x128xf32, #tpu.memory_space<vmem>>) attributes {dimension_semantics = [#tpu.dimension_semantics<parallel>, #tpu.dimension_semantics<arbitrary>], iteration_bounds = array<i64: 2, 2>, scalar_prefetch = 0 : i64, scratch_operands = 1 : i64, tpu.core_type = #tpu.core_type<tc>, window_params = [{transform_indices = @transform_0, window_bounds = array<i64: 256, 256>}, {transform_indices = @transform_1, window_bounds = array<i64: 256, 128>}, {pipeline_mode = #tpu.pipeline_mode<synchronous>, transform_indices = @transform_2, window_bounds = array<i64: 1, 128>}, {transform_indices = @transform_3, window_bounds = array<i64: 256, 128>}]} {
    %c0_i32 = arith.constant 0 : i32
    %0 = arith.cmpi eq, %arg1, %c0_i32 : i32
    %1 = arith.extui %0 : i1 to i32
    %c0_i32_0 = arith.constant 0 : i32
    %2 = arith.cmpi ne, %1, %c0_i32_0 : i32
    scf.if %2 {
      %cst_9 = arith.constant 0.000000e+00 : f32
      %12 = vector.broadcast %cst_9 : f32 to vector<256x128xf32>
      %c0_10 = arith.constant 0 : index
      %c0_11 = arith.constant 0 : index
      %13 = vector.load %arg6[%c0_10, %c0_11] : memref<256x128xf32, #tpu.memory_space<vmem>>, vector<256x128xf32>
      tpu.vector_store %arg6[%c0_10, %c0_11], %12 {strides = array<i32>} : memref<256x128xf32, #tpu.memory_space<vmem>>, vector<256x128xf32>,
    } else {
    }
    %c0 = arith.constant 0 : index
    %c0_1 = arith.constant 0 : index
    %3 = vector.load %arg6[%c0, %c0_1] : memref<256x128xf32, #tpu.memory_space<vmem>>, vector<256x128xf32>
    %c0_2 = arith.constant 0 : index
    %c0_3 = arith.constant 0 : index
    %4 = vector.load %arg2[%c0_2, %c0_3] : memref<256x256xbf16, #tpu.memory_space<vmem>>, vector<256x256xbf16>
    %c0_4 = arith.constant 0 : index
    %c0_5 = arith.constant 0 : index
    %5 = vector.load %arg3[%c0_4, %c0_5] : memref<256x128xbf16, #tpu.memory_space<vmem>>, vector<256x128xbf16>
    %cst = arith.constant dense<0.000000e+00> : vector<256x128xf32>
    %6 = tpu.matmul %4, %5, %cst {dimension_numbers = #tpu.dot_dimension_numbers<[1], [0], [0], [1], [0, 0, 1, 1], [], []>} : vector<256x256xbf16>, vector<256x128xbf16>, vector<256x128xf32> -> vector<256x128xf32>
    %7 = arith.addf %3, %6 : vector<256x128xf32>
    %c0_6 = arith.constant 0 : index
    %c0_7 = arith.constant 0 : index
    %8 = vector.load %arg6[%c0_6, %c0_7] : memref<256x128xf32, #tpu.memory_space<vmem>>, vector<256x128xf32>
    tpu.vector_store %arg6[%c0_6, %c0_7], %7 {strides = array<i32>} : memref<256x128xf32, #tpu.memory_space<vmem>>, vector<256x128xf32>,
    %c1_i32 = arith.constant 1 : i32
    %9 = arith.cmpi eq, %arg1, %c1_i32 : i32
    %10 = arith.extui %9 : i1 to i32
    %c0_i32_8 = arith.constant 0 : i32
    %11 = arith.cmpi ne, %10, %c0_i32_8 : i32
    scf.if %11 {
      %c0_9 = arith.constant 0 : index
      %c0_10 = arith.constant 0 : index
      %12 = vector.load %arg6[%c0_9, %c0_10] : memref<256x128xf32, #tpu.memory_space<vmem>>, vector<256x128xf32>
      %c0_11 = arith.constant 0 : index
      %c0_12 = arith.constant 0 : index
      %13 = vector.load %arg4[%c0_11, %c0_12] : memref<1x128xf32, #tpu.memory_space<vmem>>, vector<1x128xf32>
      %14 = vector.broadcast %13 : vector<1x128xf32> to vector<256x128xf32>
      %15 = arith.addf %12, %14 : vector<256x128xf32>
      %16 = tpu.iota {dimensions = array<i32: 1>} : vector<256x128xi32>
      %c8_i32 = arith.constant 8 : i32
      %17 = vector.broadcast %c8_i32 : i32 to vector<256x128xi32>
      %18 = arith.cmpi slt, %16, %17 : vector<256x128xi32>
      %cst_13 = arith.constant -1.000000e+30 : f32
      %19 = vector.broadcast %cst_13 : f32 to vector<256x128xf32>
      %20 = arith.select %18, %15, %19 : vector<256x128xi1>, vector<256x128xf32>
      %cst_14 = arith.constant dense<0xFF800000> : vector<256xf32>
      %21 = vector.multi_reduction <maximumf>, %20, %cst_14 [1] : vector<256x128xf32> to vector<256xf32>
      %22 = vector.shape_cast %21 : vector<256xf32> to vector<256x1xf32>
      %23 = vector.broadcast %22 : vector<256x1xf32> to vector<256x128xf32>
      %24 = arith.subf %20, %23 : vector<256x128xf32>
      %25 = math.exp %24 : vector<256x128xf32>
      %cst_15 = arith.constant dense<0.000000e+00> : vector<256xf32>
      %26 = vector.multi_reduction <add>, %25, %cst_15 [1] : vector<256x128xf32> to vector<256xf32>
      %27 = vector.shape_cast %26 : vector<256xf32> to vector<256x1xf32>
      %28 = math.log %27 : vector<256x1xf32>
      %29 = vector.broadcast %28 : vector<256x1xf32> to vector<256x128xf32>
      %30 = arith.subf %24, %29 : vector<256x128xf32>
      %c0_16 = arith.constant 0 : index
      %c0_17 = arith.constant 0 : index
      %31 = vector.load %arg5[%c0_16, %c0_17] : memref<256x128xf32, #tpu.memory_space<vmem>>, vector<256x128xf32>
      tpu.vector_store %arg5[%c0_16, %c0_17], %30 {strides = array<i32>} : memref<256x128xf32, #tpu.memory_space<vmem>>, vector<256x128xf32>,
    } else {
    }
    return
  }
  func.func @transform_0(%arg0: i32, %arg1: i32) -> (i32, i32) {
    %c0_i32 = arith.constant 0 : i32
    return %arg0, %arg1 : i32, i32
  }
  func.func @transform_1(%arg0: i32, %arg1: i32) -> (i32, i32) {
    %c0_i32 = arith.constant 0 : i32
    %c0_i32_0 = arith.constant 0 : i32
    return %arg1, %c0_i32 : i32, i32
  }
  func.func @transform_2(%arg0: i32, %arg1: i32) -> (i32, i32) {
    %c0_i32 = arith.constant 0 : i32
    %c0_i32_0 = arith.constant 0 : i32
    %c0_i32_1 = arith.constant 0 : i32
    return %c0_i32, %c0_i32_0 : i32, i32
  }
  func.func @transform_3(%arg0: i32, %arg1: i32) -> (i32, i32) {
    %c0_i32 = arith.constant 0 : i32
    %c0_i32_0 = arith.constant 0 : i32
    return %arg0, %c0_i32 : i32, i32
  }
}

</mosaic_0001>

<llo_original>
// kernel: gcn_forward.4
$region0: #{gcn_forward.4}
  #allocation0 [shape = 'u32[]', space=smem, size = 0x4, offset = 0x4, fixed_abs, tag = 'smem constant byte address 0x4 - core index']
  #allocation1 [shape = 'u32[72,128]{1,0:T(1,128)}', space=vmem, size = 0x9000, scoped, tag = 'internal scratch']
  %s0 = inlined_call_operand.vmem [shape: bf16[512,128], index: 0, kind: input, shape index: {}]
  %s1 = inlined_call_operand.vmem [shape: bf16[128,128], index: 1, kind: input, shape index: {}]
  %s2 = inlined_call_operand.vmem [shape: bf16[512,128], index: 2, kind: output, shape index: {}]
  %s3 = sld [smem:[#allocation0]]
  $region41: #{gcn_forward.4} parent=0
    _
  %s5 = ssub.s32 1, %s3
  %s6 = scalar_select 0, %s5, %s3
  loop: start=0, step=1, limit=4
  $region2: #{gcn_forward.4} parent=0 // loop_pre_header
    _
  $region3: #{gcn_forward.4} parent=0 // loop_header
    %s8 = sphi 0, %s12
    %p9 = scmp.ge.s32.totalorder %s8, 4
    %s18 = sphi 0, %s20
    %s21 = sphi 0, %s18
    %s22 = sphi 0, %s21
    %s38 = sphi 0, %s22
    %s42 = sphi 0, %s42
    %s44 = sphi 0, %s42
    %s45 = sphi 0, %s44
    %s59 = sphi 0, %s45
    %s65 = sphi 0, %s67
    %s68 = sphi 0, %s65
    %s69 = sphi 0, %s68
    %s85 = sphi 0, %s69
  $region4: #{gcn_forward.4} parent=0 // loop_header_branch
    %11 = sbr.rel (%p9) target = $region8
  $region5: #{gcn_forward.4} parent=0 // loop_body
    %s13 = ssub.s32 %s8, 1
    %s14 = ssub.s32 %s8, 2
    %s15 = sadd.s32 %s8, 1
    %s16 = ssub.s32 %s8, %s15
    %p17 = scmp.eq.s32.totalorder %s16, 0
    %s19 = sadd.s32 %s18, 1
    %s20 = scalar_select %p17, %s18, %s19
    %p23 = pneg %p17
    %p24 = scmp.eq.s32.totalorder %s8, 1
    %p25 = por %p23, %p24
    %p26 = scmp.ne.s32.totalorder %s18, %s21
    %p27 = scmp.eq.s32.totalorder %s8, 0
    %p28 = por %p26, %p27
    %p29 = scmp.ne.s32.totalorder %s18, %s21
    %p30 = scmp.eq.s32.totalorder %s13, 1
    %p31 = por %p29, %p30
    %p32 = scmp.ne.s32.totalorder %s21, %s22
    %p33 = scmp.eq.s32.totalorder %s13, 0
    %p34 = por %p32, %p33
    %p35 = scmp.ne.s32.totalorder %s21, %s22
    %p36 = scmp.eq.s32.totalorder %s14, 1
    %p37 = por %p35, %p36
    %p39 = scmp.ne.s32.totalorder %s22, %s38
    %p40 = scmp.eq.s32.totalorder %s14, 0
    %p41 = por %p39, %p40
    %s43 = sadd.s32 %s42, 1
    %p46 = scmp.eq.s32.totalorder %s8, 1
    %p47 = scmp.ne.s32.totalorder %s42, %s44
    %p48 = scmp.eq.s32.totalorder %s8, 0
    %p49 = por %p47, %p48
    %p50 = scmp.ne.s32.totalorder %s42, %s44
    %p51 = scmp.eq.s32.totalorder %s13, 1
    %p52 = por %p50, %p51
    %p53 = scmp.ne.s32.totalorder %s44, %s45
    %p54 = scmp.eq.s32.totalorder %s13, 0
    %p55 = por %p53, %p54
    %p56 = scmp.ne.s32.totalorder %s44, %s45
    %p57 = scmp.eq.s32.totalorder %s14, 1
    %p58 = por %p56, %p57
    %p60 = scmp.ne.s32.totalorder %s45, %s59
    %p61 = scmp.eq.s32.totalorder %s14, 0
    %p62 = por %p60, %p61
    %s63 = ssub.s32 %s8, %s15
    %p64 = scmp.eq.s32.totalorder %s63, 0
    %s66 = sadd.s32 %s65, 1
    %s67 = scalar_select %p64, %s65, %s66
    %p70 = pneg %p64
    %p71 = scmp.eq.s32.totalorder %s8, 1
    %p72 = por %p70, %p71
    %p73 = scmp.ne.s32.totalorder %s65, %s68
    %p74 = scmp.eq.s32.totalorder %s8, 0
    %p75 = por %p73, %p74
    %p76 = scmp.ne.s32.totalorder %s65, %s68
    %p77 = scmp.eq.s32.totalorder %s13, 1
    %p78 = por %p76, %p77
    %p79 = scmp.ne.s32.totalorder %s68, %s69
    %p80 = scmp.eq.s32.totalorder %s13, 0
    %p81 = por %p79, %p80
    %p82 = scmp.ne.s32.totalorder %s68, %s69
    %p83 = scmp.eq.s32.totalorder %s14, 1
    %p84 = por %p82, %p83
    %p86 = scmp.ne.s32.totalorder %s69, %s85
    %p87 = scmp.eq.s32.totalorder %s14, 0
    %p88 = por %p86, %p87
    %p89 = scmp.le.s32.totalorder 1, %s8
    %p90 = scmp.lt.s32.totalorder %s8, 3
    %p91 = pnand %p89, %p90
    %p92 = pneg %p91
    // Predicated region
    $region9: #{gcn_forward.4} parent=5 // pred_check
      _
    $region10: #{gcn_forward.4} parent=5 // pred_check_branch
      %94 = sbr.rel (%p91) target = $region12
    $region11: #{gcn_forward.4} parent=5 // pred_region
      %s95 = ssub.s32 %s8, 1
      // Predicated region
      $region13: #{gcn_forward.4} parent=11 // pred_check
        %p96 = pneg %p55
      $region14: #{gcn_forward.4} parent=11 // pred_check_branch
        %98 = sbr.rel (%p96) target = $region16
      $region15: #{gcn_forward.4} parent=11 // pred_region
        _
      $region16: #{gcn_forward.4} parent=11 // pred_fallthru
        _
    $region12: #{gcn_forward.4} parent=5 // pred_fallthru
      _
    %p99 = scmp.lt.s32.totalorder %s8, 2
    // Predicated region
    $region17: #{gcn_forward.4} parent=5 // pred_check
      %p100 = pneg %p99
    $region18: #{gcn_forward.4} parent=5 // pred_check_branch
      %102 = sbr.rel (%p100) target = $region20
    $region19: #{gcn_forward.4} parent=5 // pred_region
      // Predicated region
      $region21: #{gcn_forward.4} parent=19 // pred_check
        %p103 = pneg %p28
      $region22: #{gcn_forward.4} parent=19 // pred_check_branch
        %105 = sbr.rel (%p103) target = $region24
      $region23: #{gcn_forward.4} parent=19 // pred_region
        %s106 = smul.u32 32, %s8
        %p107 = scmp.lt.s32.totalorder %s106, 63
        %s108 = scalar_select %p107, %s106, 63
        %s109 = smul.addr %s108, 4
        %s110 = scalar_lea.vmem %s0, %s109
        %s111 = smul.u32 32, %s8
      $region24: #{gcn_forward.4} parent=19 // pred_fallthru
        _
    $region20: #{gcn_forward.4} parent=5 // pred_fallthru
      _
    %p112 = scmp.le.s32.totalorder 1, %s8
    %p113 = scmp.lt.s32.totalorder %s8, 3
    %p114 = pnand %p112, %p113
    %p115 = pneg %p114
    // Predicated region
    $region25: #{gcn_forward.4} parent=5 // pred_check
      _
    $region26: #{gcn_forward.4} parent=5 // pred_check_branch
      %117 = sbr.rel (%p114) target = $region28
    $region27: #{gcn_forward.4} parent=5 // pred_region
      %s118 = ssub.s32 %s8, 1
      %s119 = smul.u32 32, %s13
      %p120 = scmp.lt.s32.totalorder %s119, 63
      %s121 = scalar_select %p120, %s119, 63
      %s122 = smul.addr %s121, 4
      %s123 = scalar_lea.vmem %s0, %s122
      %p124 = pneg %p34
      %p125 = pneg %p31
      %p126 = pneg %p55
      %p127 = pneg %p52
      %p128 = pneg %p81
      %p129 = pneg %p78
      %s130 = smul.u32 32, %s13
      %p131 = scmp.lt.s32.totalorder %s130, 63
      %s132 = scalar_select %p131, %s130, 63
      %s133 = smul.addr %s132, 4
      %s134 = scalar_lea.vmem %s2, %s133
      %s135 = smul.u32 32, %s13
      %p136 = scmp.lt.s32.totalorder %s135, 63
      %s137 = scalar_select %p136, %s135, 63
      %s138 = smul.addr %s137, 4
      %s139 = scalar_lea.vmem %s0, %s138
      %s140 = smul.u32 32, %s13
      %s141 = smul.u32 32, %s13
      %p142 = scmp.lt.s32.totalorder %s141, 63
      %s143 = scalar_select %p142, %s141, 63
      %s144 = smul.addr %s143, 4
      %s145 = scalar_lea.vmem %s2, %s144
      %s146 = smul.u32 32, %s13
      %v147 = vld [vmem:[%s139] sm:$0xf]
      %v148 = vld [vmem:[%s139 + $0x4] sm:$0xf]
      %v149 = vld [vmem:[%s139 + $0x8] sm:$0xf]
      %v150 = vld [vmem:[%s139 + $0xc] sm:$0xf]
      %v151 = vld [vmem:[%s139 + $0x10] sm:$0xf]
      %v152 = vld [vmem:[%s139 + $0x14] sm:$0xf]
      %v153 = vld [vmem:[%s139 + $0x18] sm:$0xf]
      %v154 = vld [vmem:[%s139 + $0x1c] sm:$0xf]
      %v155 = vld [vmem:[%s139 + $0x20] sm:$0xf]
      %v156 = vld [vmem:[%s139 + $0x24] sm:$0xf]
      %v157 = vld [vmem:[%s139 + $0x28] sm:$0xf]
      %v158 = vld [vmem:[%s139 + $0x2c] sm:$0xf]
      %v159 = vld [vmem:[%s139 + $0x30] sm:$0xf]
      %v160 = vld [vmem:[%s139 + $0x34] sm:$0xf]
      %v161 = vld [vmem:[%s139 + $0x38] sm:$0xf]
      %v162 = vld [vmem:[%s139 + $0x3c] sm:$0xf]
      %v163 = vld [vmem:[%s139 + $0x40] sm:$0xf]
      %v164 = vld [vmem:[%s139 + $0x44] sm:$0xf]
      %v165 = vld [vmem:[%s139 + $0x48] sm:$0xf]
      %v166 = vld [vmem:[%s139 + $0x4c] sm:$0xf]
      %v167 = vld [vmem:[%s139 + $0x50] sm:$0xf]
      %v168 = vld [vmem:[%s139 + $0x54] sm:$0xf]
      %v169 = vld [vmem:[%s139 + $0x58] sm:$0xf]
      %v170 = vld [vmem:[%s139 + $0x5c] sm:$0xf]
      %v171 = vld [vmem:[%s139 + $0x60] sm:$0xf]
      %v172 = vld [vmem:[%s139 + $0x64] sm:$0xf]
      %v173 = vld [vmem:[%s139 + $0x68] sm:$0xf]
      %v174 = vld [vmem:[%s139 + $0x6c] sm:$0xf]
      %v175 = vld [vmem:[%s139 + $0x70] sm:$0xf]
      %v176 = vld [vmem:[%s139 + $0x74] sm:$0xf]
      %v177 = vld [vmem:[%s139 + $0x78] sm:$0xf]
      %v178 = vld [vmem:[%s139 + $0x7c] sm:$0xf]
      %v179 = vld [vmem:[%s1] sm:$0xf]
      %v180 = vld [vmem:[%s1 + $0x4] sm:$0xf]
      %v181 = vld [vmem:[%s1 + $0x8] sm:$0xf]
      %v182 = vld [vmem:[%s1 + $0xc] sm:$0xf]
      %v183 = vld [vmem:[%s1 + $0x10] sm:$0xf]
      %v184 = vld [vmem:[%s1 + $0x14] sm:$0xf]
      %v185 = vld [vmem:[%s1 + $0x18] sm:$0xf]
      %v186 = vld [vmem:[%s1 + $0x1c] sm:$0xf]
      %v187 = vld [vmem:[%s1 + $0x20] sm:$0xf]
      %v188 = vld [vmem:[%s1 + $0x24] sm:$0xf]
      %v189 = vld [vmem:[%s1 + $0x28] sm:$0xf]
      %v190 = vld [vmem:[%s1 + $0x2c] sm:$0xf]
      %v191 = vld [vmem:[%s1 + $0x30] sm:$0xf]
      %v192 = vld [vmem:[%s1 + $0x34] sm:$0xf]
      %v193 = vld [vmem:[%s1 + $0x38] sm:$0xf]
      %v194 = vld [vmem:[%s1 + $0x3c] sm:$0xf]
      %v227 = vunpack.c.l.b16 %v147
      %v228 = vunpack.c.l.b16 %v148
      %v229 = vunpack.c.l.b16 %v149
      %v230 = vunpack.c.l.b16 %v150
      %v231 = vunpack.c.l.b16 %v151
      %v232 = vunpack.c.l.b16 %v152
      %v233 = vunpack.c.l.b16 %v153
      %v234 = vunpack.c.l.b16 %v154
      %v235 = vunpack.c.l.b16 %v155
      %v236 = vunpack.c.l.b16 %v156
      %v237 = vunpack.c.l.b16 %v157
      %v238 = vunpack.c.l.b16 %v158
      %v239 = vunpack.c.l.b16 %v159
      %v240 = vunpack.c.l.b16 %v160
      %v241 = vunpack.c.l.b16 %v161
      %v242 = vunpack.c.l.b16 %v162
      %v243 = vunpack.c.l.b16 %v163
      %v244 = vunpack.c.l.b16 %v164
      %v245 = vunpack.c.l.b16 %v165
      %v246 = vunpack.c.l.b16 %v166
      %v247 = vunpack.c.l.b16 %v167
      %v248 = vunpack.c.l.b16 %v168
      %v249 = vunpack.c.l.b16 %v169
      %v250 = vunpack.c.l.b16 %v170
      %v251 = vunpack.c.l.b16 %v171
      %v252 = vunpack.c.l.b16 %v172
      %v253 = vunpack.c.l.b16 %v173
      %v254 = vunpack.c.l.b16 %v174
      %v255 = vunpack.c.l.b16 %v175
      %v256 = vunpack.c.l.b16 %v176
      %v257 = vunpack.c.l.b16 %v177
      %v258 = vunpack.c.l.b16 %v178
      %v259 = vpack.c.b16 %v228, %v227
      %v260 = vpack.c.b16 %v230, %v229
      %v261 = vpack.c.b16 %v232, %v231
      %v262 = vpack.c.b16 %v234, %v233
      %v263 = vpack.c.b16 %v236, %v235
      %v264 = vpack.c.b16 %v238, %v237
      %v265 = vpack.c.b16 %v240, %v239
      %v266 = vpack.c.b16 %v242, %v241
      %v267 = vpack.c.b16 %v244, %v243
      %v268 = vpack.c.b16 %v246, %v245
      %v269 = vpack.c.b16 %v248, %v247
      %v270 = vpack.c.b16 %v250, %v249
      %v271 = vpack.c.b16 %v252, %v251
      %v272 = vpack.c.b16 %v254, %v253
      %v273 = vpack.c.b16 %v256, %v255
      %v274 = vpack.c.b16 %v258, %v257
      %v307 = vunpack.c.l.b16 %v179
      %v308 = vunpack.c.l.b16 %v180
      %v309 = vunpack.c.l.b16 %v181
      %v310 = vunpack.c.l.b16 %v182
      %v311 = vunpack.c.l.b16 %v183
      %v312 = vunpack.c.l.b16 %v184
      %v313 = vunpack.c.l.b16 %v185
      %v314 = vunpack.c.l.b16 %v186
      %v315 = vunpack.c.l.b16 %v187
      %v316 = vunpack.c.l.b16 %v188
      %v317 = vunpack.c.l.b16 %v189
      %v318 = vunpack.c.l.b16 %v190
      %v319 = vunpack.c.l.b16 %v191
      %v320 = vunpack.c.l.b16 %v192
      %v321 = vunpack.c.l.b16 %v193
      %v322 = vunpack.c.l.b16 %v194
      %v323 = vpack.c.b16 %v308, %v307
      %v324 = vpack.c.b16 %v310, %v309
      %v325 = vpack.c.b16 %v312, %v311
      %v326 = vpack.c.b16 %v314, %v313
      %v327 = vpack.c.b16 %v316, %v315
      %v328 = vpack.c.b16 %v318, %v317
      %v329 = vpack.c.b16 %v320, %v319
      %v330 = vpack.c.b16 %v322, %v321
      %339 = vmatpush.bf16.msra.mxu0 %v330
      %340 = vmatpush.bf16.msra.mxu0 %v329
      %341 = vmatpush.bf16.msra.mxu0 %v328
      %342 = vmatpush.bf16.msra.mxu0 %v327
      %343 = vmatpush.bf16.msra.mxu0 %v326
      %344 = vmatpush.bf16.msra.mxu0 %v325
      %345 = vmatpush.bf16.msra.mxu0 %v324
      %346 = vmatpush.bf16.msra.mxu0 %v323
      %347 = vmatmul.bf16.gmra.mxu0 %v259
      %v348 = vpop.f32.mrf.mxu0
      %v349 = vadd.f32 0.0, %v348
      %v350 = vpop.f32.mrf.mxu0
      %v351 = vadd.f32 0.0, %v350
      %352 = vmatmul.bf16.gmra.mxu0 %v260
      %v353 = vpop.f32.mrf.mxu0
      %v354 = vadd.f32 0.0, %v353
      %v355 = vpop.f32.mrf.mxu0
      %v356 = vadd.f32 0.0, %v355
      %357 = vmatmul.bf16.gmra.mxu0 %v261
      %v358 = vpop.f32.mrf.mxu0
      %v359 = vadd.f32 0.0, %v358
      %v360 = vpop.f32.mrf.mxu0
      %v361 = vadd.f32 0.0, %v360
      %362 = vmatmul.bf16.gmra.mxu0 %v262
      %v363 = vpop.f32.mrf.mxu0
      %v364 = vadd.f32 0.0, %v363
      %v365 = vpop.f32.mrf.mxu0
      %v366 = vadd.f32 0.0, %v365
      %367 = vmatmul.bf16.gmra.mxu0 %v263
      %v368 = vpop.f32.mrf.mxu0
      %v369 = vadd.f32 0.0, %v368
      %v370 = vpop.f32.mrf.mxu0
      %v371 = vadd.f32 0.0, %v370
      %372 = vmatmul.bf16.gmra.mxu0 %v264
      %v373 = vpop.f32.mrf.mxu0
      %v374 = vadd.f32 0.0, %v373
      %v375 = vpop.f32.mrf.mxu0
      %v376 = vadd.f32 0.0, %v375
      %377 = vmatmul.bf16.gmra.mxu0 %v265
      %v378 = vpop.f32.mrf.mxu0
      %v379 = vadd.f32 0.0, %v378
      %v380 = vpop.f32.mrf.mxu0
      %v381 = vadd.f32 0.0, %v380
      %382 = vmatmul.bf16.gmra.mxu0 %v266
      %v383 = vpop.f32.mrf.mxu0
      %v384 = vadd.f32 0.0, %v383
      %v385 = vpop.f32.mrf.mxu0
      %v386 = vadd.f32 0.0, %v385
      %387 = vmatmul.bf16.gmra.mxu0 %v267
      %v388 = vpop.f32.mrf.mxu0
      %v389 = vadd.f32 0.0, %v388
      %v390 = vpop.f32.mrf.mxu0
      %v391 = vadd.f32 0.0, %v390
      %392 = vmatmul.bf16.gmra.mxu0 %v268
      %v393 = vpop.f32.mrf.mxu0
      %v394 = vadd.f32 0.0, %v393
      %v395 = vpop.f32.mrf.mxu0
      %v396 = vadd.f32 0.0, %v395
      %397 = vmatmul.bf16.gmra.mxu0 %v269
      %v398 = vpop.f32.mrf.mxu0
      %v399 = vadd.f32 0.0, %v398
      %v400 = vpop.f32.mrf.mxu0
      %v401 = vadd.f32 0.0, %v400
      %402 = vmatmul.bf16.gmra.mxu0 %v270
      %v403 = vpop.f32.mrf.mxu0
      %v404 = vadd.f32 0.0, %v403
      %v405 = vpop.f32.mrf.mxu0
      %v406 = vadd.f32 0.0, %v405
      %407 = vmatmul.bf16.gmra.mxu0 %v271
      %v408 = vpop.f32.mrf.mxu0
      %v409 = vadd.f32 0.0, %v408
      %v410 = vpop.f32.mrf.mxu0
      %v411 = vadd.f32 0.0, %v410
      %412 = vmatmul.bf16.gmra.mxu0 %v272
      %v413 = vpop.f32.mrf.mxu0
      %v414 = vadd.f32 0.0, %v413
      %v415 = vpop.f32.mrf.mxu0
      %v416 = vadd.f32 0.0, %v415
      %417 = vmatmul.bf16.gmra.mxu0 %v273
      %v418 = vpop.f32.mrf.mxu0
      %v419 = vadd.f32 0.0, %v418
      %v420 = vpop.f32.mrf.mxu0
      %v421 = vadd.f32 0.0, %v420
      %422 = vmatmul.bf16.gmra.mxu0 %v274
      %v423 = vpop.f32.mrf.mxu0
      %v424 = vadd.f32 0.0, %v423
      %v425 = vpop.f32.mrf.mxu0
      %v426 = vadd.f32 0.0, %v425
      %427 = vdwg.mxu0
      %v428 = vpack.c.bf16 %v349, %v349
      %v429 = vpack.c.bf16 %v351, %v351
      %v430 = vpack.c.bf16 %v354, %v354
      %v431 = vpack.c.bf16 %v356, %v356
      %v432 = vpack.c.bf16 %v359, %v359
      %v433 = vpack.c.bf16 %v361, %v361
      %v434 = vpack.c.bf16 %v364, %v364
      %v435 = vpack.c.bf16 %v366, %v366
      %v436 = vpack.c.bf16 %v369, %v369
      %v437 = vpack.c.bf16 %v371, %v371
      %v438 = vpack.c.bf16 %v374, %v374
      %v439 = vpack.c.bf16 %v376, %v376
      %v440 = vpack.c.bf16 %v379, %v379
      %v441 = vpack.c.bf16 %v381, %v381
      %v442 = vpack.c.bf16 %v384, %v384
      %v443 = vpack.c.bf16 %v386, %v386
      %v444 = vpack.c.bf16 %v389, %v389
      %v445 = vpack.c.bf16 %v391, %v391
      %v446 = vpack.c.bf16 %v394, %v394
      %v447 = vpack.c.bf16 %v396, %v396
      %v448 = vpack.c.bf16 %v399, %v399
      %v449 = vpack.c.bf16 %v401, %v401
      %v450 = vpack.c.bf16 %v404, %v404
      %v451 = vpack.c.bf16 %v406, %v406
      %v452 = vpack.c.bf16 %v409, %v409
      %v453 = vpack.c.bf16 %v411, %v411
      %v454 = vpack.c.bf16 %v414, %v414
      %v455 = vpack.c.bf16 %v416, %v416
      %v456 = vpack.c.bf16 %v419, %v419
      %v457 = vpack.c.bf16 %v421, %v421
      %v458 = vpack.c.bf16 %v424, %v424
      %v459 = vpack.c.bf16 %v426, %v426
      %460 = vst [vmem:[%s145] sm:$0xf] %v428
      %461 = vst [vmem:[%s145 + $0x4] sm:$0xf] %v429
      %462 = vst [vmem:[%s145 + $0x8] sm:$0xf] %v430
      %463 = vst [vmem:[%s145 + $0xc] sm:$0xf] %v431
      %464 = vst [vmem:[%s145 + $0x10] sm:$0xf] %v432
      %465 = vst [vmem:[%s145 + $0x14] sm:$0xf] %v433
      %466 = vst [vmem:[%s145 + $0x18] sm:$0xf] %v434
      %467 = vst [vmem:[%s145 + $0x1c] sm:$0xf] %v435
      %468 = vst [vmem:[%s145 + $0x20] sm:$0xf] %v436
      %469 = vst [vmem:[%s145 + $0x24] sm:$0xf] %v437
      %470 = vst [vmem:[%s145 + $0x28] sm:$0xf] %v438
      %471 = vst [vmem:[%s145 + $0x2c] sm:$0xf] %v439
      %472 = vst [vmem:[%s145 + $0x30] sm:$0xf] %v440
      %473 = vst [vmem:[%s145 + $0x34] sm:$0xf] %v441
      %474 = vst [vmem:[%s145 + $0x38] sm:$0xf] %v442
      %475 = vst [vmem:[%s145 + $0x3c] sm:$0xf] %v443
      %476 = vst [vmem:[%s145 + $0x40] sm:$0xf] %v444
      %477 = vst [vmem:[%s145 + $0x44] sm:$0xf] %v445
      %478 = vst [vmem:[%s145 + $0x48] sm:$0xf] %v446
      %479 = vst [vmem:[%s145 + $0x4c] sm:$0xf] %v447
      %480 = vst [vmem:[%s145 + $0x50] sm:$0xf] %v448
      %481 = vst [vmem:[%s145 + $0x54] sm:$0xf] %v449
      %482 = vst [vmem:[%s145 + $0x58] sm:$0xf] %v450
      %483 = vst [vmem:[%s145 + $0x5c] sm:$0xf] %v451
      %484 = vst [vmem:[%s145 + $0x60] sm:$0xf] %v452
      %485 = vst [vmem:[%s145 + $0x64] sm:$0xf] %v453
      %486 = vst [vmem:[%s145 + $0x68] sm:$0xf] %v454
      %487 = vst [vmem:[%s145 + $0x6c] sm:$0xf] %v455
      %488 = vst [vmem:[%s145 + $0x70] sm:$0xf] %v456
      %489 = vst [vmem:[%s145 + $0x74] sm:$0xf] %v457
      %490 = vst [vmem:[%s145 + $0x78] sm:$0xf] %v458
      %491 = vst [vmem:[%s145 + $0x7c] sm:$0xf] %v459
      %s492 = smul.u32 32, %s13
      %p493 = scmp.lt.s32.totalorder %s492, 63
      %s494 = scalar_select %p493, %s492, 63
      %s495 = smul.addr %s494, 4
      %s496 = scalar_lea.vmem %s2, %s495
      // Predicated region
      $region29: #{gcn_forward.4} parent=27 // pred_check
        %p497 = pneg %p78
      $region30: #{gcn_forward.4} parent=27 // pred_check_branch
        %499 = sbr.rel (%p497) target = $region32
      $region31: #{gcn_forward.4} parent=27 // pred_region
        %s500 = smul.u32 32, %s13
      $region32: #{gcn_forward.4} parent=27 // pred_fallthru
        _
    $region28: #{gcn_forward.4} parent=5 // pred_fallthru
      _
    %p501 = scmp.le.s32.totalorder 2, %s8
    // Predicated region
    $region33: #{gcn_forward.4} parent=5 // pred_check
      %p502 = pneg %p501
    $region34: #{gcn_forward.4} parent=5 // pred_check_branch
      %504 = sbr.rel (%p502) target = $region36
    $region35: #{gcn_forward.4} parent=5 // pred_region
      %s505 = ssub.s32 %s8, 2
      // Predicated region
      $region37: #{gcn_forward.4} parent=35 // pred_check
        %p506 = pneg %p84
      $region38: #{gcn_forward.4} parent=35 // pred_check_branch
        %508 = sbr.rel (%p506) target = $region40
      $region39: #{gcn_forward.4} parent=35 // pred_region
        %s509 = smul.u32 32, %s14
        %p510 = scmp.lt.s32.totalorder %s509, 63
        %s511 = scalar_select %p510, %s509, 63
        %s512 = smul.addr %s511, 4
        %s513 = scalar_lea.vmem %s2, %s512
      $region40: #{gcn_forward.4} parent=35 // pred_fallthru
        _
    $region36: #{gcn_forward.4} parent=5 // pred_fallthru
      _
  $region6: #{gcn_forward.4} parent=0 // loop_footer
    %s12 = sadd.s32 1, %s8
  $region7: #{gcn_forward.4} parent=0 // loop_footer_branch
    %7 = sbr.rel target = $region3
  $region8: #{gcn_forward.4} parent=0 // loop_exit
    _

// kernel: gcn_forward.7
$region0: #{gcn_forward.7}
  #allocation0 [shape = 'u32[]', space=smem, size = 0x4, offset = 0x4, fixed_abs, tag = 'smem constant byte address 0x4 - core index']
  #allocation1 [shape = 'u32[72,128]{1,0:T(1,128)}', space=vmem, size = 0x9000, scoped, tag = 'internal scratch']
  #allocation2 [shape = 'f32[256,128]{1,0:T(8,128)}', space=vmem, size = 0x20000, scoped, tag = 'scratch operand']
  %s0 = inlined_call_operand.vmem [shape: bf16[512,512], index: 0, kind: input, shape index: {}]
  %s1 = inlined_call_operand.vmem [shape: bf16[512,128], index: 1, kind: input, shape index: {}]
  %s2 = inlined_call_operand.vmem [shape: f32[1,128], index: 2, kind: input, shape index: {}]
  %s3 = inlined_call_operand.vmem [shape: f32[512,128], index: 3, kind: output, shape index: {}]
  %s4 = sld [smem:[#allocation0]]
  $region91: #{gcn_forward.7} parent=0
    _
  %s6 = ssub.s32 1, %s4
  %s7 = scalar_select 0, %s6, %s4
  $region1: #{gcn_forward.7} parent=0
    #allocation3 [shape = 'u8[262144]{0}', space=vmem, size = 0x40000, scoped, tag = 'input window, operand 0']
    loop: start=0, step=1, limit=6
    $region2: #{gcn_forward.7} parent=1 // loop_pre_header
      _
    $region3: #{gcn_forward.7} parent=1 // loop_header
      %s9 = sphi 0, %s13
      %p10 = scmp.ge.s32.totalorder %s9, 6
      %s16 = sphi 0, %s28
      %s17 = sphi 0, %s24
      %s18 = sphi 0, %s16
      %s19 = sphi 0, %s17
      %s20 = sphi 0, %s18
      %s21 = sphi 0, %s19
      %s33 = sphi 0, %s35
      %s36 = sphi 0, %s33
      %s37 = sphi 0, %s36
      %s53 = sphi 0, %s37
      %s59 = sphi 0, %s61
      %s62 = sphi 0, %s59
      %s63 = sphi 0, %s62
      %s79 = sphi 0, %s63
      %s83 = sphi 0, %s83
      %s85 = sphi 0, %s83
      %s86 = sphi 0, %s85
      %s100 = sphi 0, %s86
      %s106 = sphi 0, %s108
      %s109 = sphi 0, %s106
      %s110 = sphi 0, %s109
      %s126 = sphi 0, %s110
    $region4: #{gcn_forward.7} parent=1 // loop_header_branch
      %12 = sbr.rel (%p10) target = $region8
    $region5: #{gcn_forward.7} parent=1 // loop_body
      %s14 = ssub.s32 %s9, 1
      %s15 = ssub.s32 %s9, 2
      %s22 = sadd.s32 1, %s17
      %p23 = scmp.ge.s32.totalorder %s22, 2
      %s24 = scalar_select %p23, 0, %s22
      %s25 = sadd.s32 1, %s16
      %s26 = scalar_select %p23, %s25, %s16
      %p27 = scmp.ge.s32.totalorder %s26, 2
      %s28 = scalar_select %p27, 0, %s26
      %s29 = ssub.s32 %s16, %s28
      %s30 = ssub.s32 %s17, %s24
      %s31 = sor.u32 %s29, %s30
      %p32 = scmp.eq.s32.totalorder %s31, 0
      %s34 = sadd.s32 %s33, 1
      %s35 = scalar_select %p32, %s33, %s34
      %p38 = pneg %p32
      %p39 = scmp.eq.s32.totalorder %s9, 3
      %p40 = por %p38, %p39
      %p41 = scmp.ne.s32.totalorder %s33, %s36
      %p42 = scmp.eq.s32.totalorder %s9, 0
      %p43 = por %p41, %p42
      %p44 = scmp.ne.s32.totalorder %s33, %s36
      %p45 = scmp.eq.s32.totalorder %s14, 3
      %p46 = por %p44, %p45
      %p47 = scmp.ne.s32.totalorder %s36, %s37
      %p48 = scmp.eq.s32.totalorder %s14, 0
      %p49 = por %p47, %p48
      %p50 = scmp.ne.s32.totalorder %s36, %s37
      %p51 = scmp.eq.s32.totalorder %s15, 3
      %p52 = por %p50, %p51
      %p54 = scmp.ne.s32.totalorder %s37, %s53
      %p55 = scmp.eq.s32.totalorder %s15, 0
      %p56 = por %p54, %p55
      %s57 = ssub.s32 %s17, %s24
      %p58 = scmp.eq.s32.totalorder %s57, 0
      %s60 = sadd.s32 %s59, 1
      %s61 = scalar_select %p58, %s59, %s60
      %p64 = pneg %p58
      %p65 = scmp.eq.s32.totalorder %s9, 3
      %p66 = por %p64, %p65
      %p67 = scmp.ne.s32.totalorder %s59, %s62
      %p68 = scmp.eq.s32.totalorder %s9, 0
      %p69 = por %p67, %p68
      %p70 = scmp.ne.s32.totalorder %s59, %s62
      %p71 = scmp.eq.s32.totalorder %s14, 3
      %p72 = por %p70, %p71
      %p73 = scmp.ne.s32.totalorder %s62, %s63
      %p74 = scmp.eq.s32.totalorder %s14, 0
      %p75 = por %p73, %p74
      %p76 = scmp.ne.s32.totalorder %s62, %s63
      %p77 = scmp.eq.s32.totalorder %s15, 3
      %p78 = por %p76, %p77
      %p80 = scmp.ne.s32.totalorder %s63, %s79
      %p81 = scmp.eq.s32.totalorder %s15, 0
      %p82 = por %p80, %p81
      %s84 = sadd.s32 %s83, 1
      %p87 = scmp.eq.s32.totalorder %s9, 3
      %p88 = scmp.ne.s32.totalorder %s83, %s85
      %p89 = scmp.eq.s32.totalorder %s9, 0
      %p90 = por %p88, %p89
      %p91 = scmp.ne.s32.totalorder %s83, %s85
      %p92 = scmp.eq.s32.totalorder %s14, 3
      %p93 = por %p91, %p92
      %p94 = scmp.ne.s32.totalorder %s85, %s86
      %p95 = scmp.eq.s32.totalorder %s14, 0
      %p96 = por %p94, %p95
      %p97 = scmp.ne.s32.totalorder %s85, %s86
      %p98 = scmp.eq.s32.totalorder %s15, 3
      %p99 = por %p97, %p98
      %p101 = scmp.ne.s32.totalorder %s86, %s100
      %p102 = scmp.eq.s32.totalorder %s15, 0
      %p103 = por %p101, %p102
      %s104 = ssub.s32 %s16, %s28
      %p105 = scmp.eq.s32.totalorder %s104, 0
      %s107 = sadd.s32 %s106, 1
      %s108 = scalar_select %p105, %s106, %s107
      %p111 = pneg %p105
      %p112 = scmp.eq.s32.totalorder %s9, 3
      %p113 = por %p111, %p112
      %p114 = scmp.ne.s32.totalorder %s106, %s109
      %p115 = scmp.eq.s32.totalorder %s9, 0
      %p116 = por %p114, %p115
      %p117 = scmp.ne.s32.totalorder %s106, %s109
      %p118 = scmp.eq.s32.totalorder %s14, 3
      %p119 = por %p117, %p118
      %p120 = scmp.ne.s32.totalorder %s109, %s110
      %p121 = scmp.eq.s32.totalorder %s14, 0
      %p122 = por %p120, %p121
      %p123 = scmp.ne.s32.totalorder %s109, %s110
      %p124 = scmp.eq.s32.totalorder %s15, 3
      %p125 = por %p123, %p124
      %p127 = scmp.ne.s32.totalorder %s110, %s126
      %p128 = scmp.eq.s32.totalorder %s15, 0
      %p129 = por %p127, %p128
      %p130 = scmp.le.s32.totalorder 1, %s9
      %p131 = scmp.lt.s32.totalorder %s9, 5
      %p132 = pnand %p130, %p131
      %p133 = pneg %p132
      // Predicated region
      $region9: #{gcn_forward.7} parent=5 // pred_check
        _
      $region10: #{gcn_forward.7} parent=5 // pred_check_branch
        %135 = sbr.rel (%p132) target = $region12
      $region11: #{gcn_forward.7} parent=5 // pred_region
        %s136 = ssub.s32 %s9, 1
        // Predicated region
        $region13: #{gcn_forward.7} parent=11 // pred_check
          %p137 = pneg %p96
        $region14: #{gcn_forward.7} parent=11 // pred_check_branch
          %139 = sbr.rel (%p137) target = $region16
        $region15: #{gcn_forward.7} parent=11 // pred_region
          _
        $region16: #{gcn_forward.7} parent=11 // pred_fallthru
          _
      $region12: #{gcn_forward.7} parent=5 // pred_fallthru
        _
      %p140 = scmp.lt.s32.totalorder %s9, 4
      // Predicated region
      $region17: #{gcn_forward.7} parent=5 // pred_check
        %p141 = pneg %p140
      $region18: #{gcn_forward.7} parent=5 // pred_check_branch
        %143 = sbr.rel (%p141) target = $region20
      $region19: #{gcn_forward.7} parent=5 // pred_region
        // Predicated region
        $region21: #{gcn_forward.7} parent=19 // pred_check
          %p144 = pneg %p43
        $region22: #{gcn_forward.7} parent=19 // pred_check_branch
          %146 = sbr.rel (%p144) target = $region24
        $region23: #{gcn_forward.7} parent=19 // pred_region
          %s147 = sand.u32 %s33, 1
          %s148 = sand.u32 %s33, 1
          %s149 = smul.addr %s148, 256
          %s150 = scalar_lea.vmem [#allocation3], %s149
          %s151 = smul.u32 32, %s16
          %s152 = smul.u32 2, %s17
          %s153 = smul.addr %s151, 4
          %s154 = sadd.s32 %s152, %s153
          %s155 = smul.addr %s154, 4
          %s156 = scalar_lea.vmem %s0, %s155
          // Predicated region
          $region25: #{gcn_forward.7} parent=23 // pred_check
            _
          $region26: #{gcn_forward.7} parent=23 // pred_check_branch
            %158 = sbr.rel (0) target = $region28
          $region27: #{gcn_forward.7} parent=23 // pred_region
            // Predicated region
            $region29: #{gcn_forward.7} parent=27 // pred_check
              _
            $region30: #{gcn_forward.7} parent=27 // pred_check_branch
              %160 = sbr.rel (0) target = $region32
            $region31: #{gcn_forward.7} parent=27 // pred_region
              // Predicated region
              $region44: #{gcn_forward.7} parent=31 // pred_check
                _
              $region45: #{gcn_forward.7} parent=31 // pred_check_branch
                %238 = sbr.rel (0) target = $region47
              $region46: #{gcn_forward.7} parent=31 // pred_region
                loop: start=0, step=1, limit=1
                $region48: #{gcn_forward.7} parent=46 // loop_pre_header
                  _
                $region49: #{gcn_forward.7} parent=46 // loop_header
                  %s240 = sphi 0, %s244
                  %p241 = scmp.ge.s32.totalorder %s240, 1
                  %s245 = sphi %s156, %s156
                  %s246 = sphi %s150, %s150
                $region50: #{gcn_forward.7} parent=46 // loop_header_branch
                  %243 = sbr.rel (%p241) target = $region54
                $region51: #{gcn_forward.7} parent=46 // loop_body
                  %v247 = vld [vmem:[%s245] sm:$0xff]
                  %248 = vst [vmem:[%s246] sm:$0xff] %v247
                  %v249 = vld [vmem:[%s245 + $0x10] sm:$0xff]
                  %250 = vst [vmem:[%s246 + $0x8] sm:$0xff] %v249
                  %v251 = vld [vmem:[%s245 + $0x20] sm:$0xff]
                  %252 = vst [vmem:[%s246 + $0x10] sm:$0xff] %v251
                  %v253 = vld [vmem:[%s245 + $0x30] sm:$0xff]
                  %254 = vst [vmem:[%s246 + $0x18] sm:$0xff] %v253
                  %v255 = vld [vmem:[%s245 + $0x40] sm:$0xff]
                  %256 = vst [vmem:[%s246 + $0x20] sm:$0xff] %v255
                  %v257 = vld [vmem:[%s245 + $0x50] sm:$0xff]
                  %258 = vst [vmem:[%s246 + $0x28] sm:$0xff] %v257
                  %v259 = vld [vmem:[%s245 + $0x60] sm:$0xff]
                  %260 = vst [vmem:[%s246 + $0x30] sm:$0xff] %v259
                  %v261 = vld [vmem:[%s245 + $0x70] sm:$0xff]
                  %262 = vst [vmem:[%s246 + $0x38] sm:$0xff] %v261
                  %v263 = vld [vmem:[%s245 + $0x80] sm:$0xff]
                  %264 = vst [vmem:[%s246 + $0x40] sm:$0xff] %v263
                  %v265 = vld [vmem:[%s245 + $0x90] sm:$0xff]
                  %266 = vst [vmem:[%s246 + $0x48] sm:$0xff] %v265
                  %v267 = vld [vmem:[%s245 + $0xa0] sm:$0xff]
                  %268 = vst [vmem:[%s246 + $0x50] sm:$0xff] %v267
                  %v269 = vld [vmem:[%s245 + $0xb0] sm:$0xff]
                  %270 = vst [vmem:[%s246 + $0x58] sm:$0xff] %v269
                  %v271 = vld [vmem:[%s245 + $0xc0] sm:$0xff]
                  %272 = vst [vmem:[%s246 + $0x60] sm:$0xff] %v271
                  %v273 = vld [vmem:[%s245 + $0xd0] sm:$0xff]
                  %274 = vst [vmem:[%s246 + $0x68] sm:$0xff] %v273
                  %v275 = vld [vmem:[%s245 + $0xe0] sm:$0xff]
                  %276 = vst [vmem:[%s246 + $0x70] sm:$0xff] %v275
                  %v277 = vld [vmem:[%s245 + $0xf0] sm:$0xff]
                  %278 = vst [vmem:[%s246 + $0x78] sm:$0xff] %v277
                  %v279 = vld [vmem:[%s245 + $0x100] sm:$0xff]
                  %280 = vst [vmem:[%s246 + $0x80] sm:$0xff] %v279
                  %v281 = vld [vmem:[%s245 + $0x110] sm:$0xff]
                  %282 = vst [vmem:[%s246 + $0x88] sm:$0xff] %v281
                  %v283 = vld [vmem:[%s245 + $0x120] sm:$0xff]
                  %284 = vst [vmem:[%s246 + $0x90] sm:$0xff] %v283
                  %v285 = vld [vmem:[%s245 + $0x130] sm:$0xff]
                  %286 = vst [vmem:[%s246 + $0x98] sm:$0xff] %v285
                  %v287 = vld [vmem:[%s245 + $0x140] sm:$0xff]
                  %288 = vst [vmem:[%s246 + $0xa0] sm:$0xff] %v287
                  %v289 = vld [vmem:[%s245 + $0x150] sm:$0xff]
                  %290 = vst [vmem:[%s246 + $0xa8] sm:$0xff] %v289
                  %v291 = vld [vmem:[%s245 + $0x160] sm:$0xff]
                  %292 = vst [vmem:[%s246 + $0xb0] sm:$0xff] %v291
                  %v293 = vld [vmem:[%s245 + $0x170] sm:$0xff]
                  %294 = vst [vmem:[%s246 + $0xb8] sm:$0xff] %v293
                  %v295 = vld [vmem:[%s245 + $0x180] sm:$0xff]
                  %296 = vst [vmem:[%s246 + $0xc0] sm:$0xff] %v295
                  %v297 = vld [vmem:[%s245 + $0x190] sm:$0xff]
                  %298 = vst [vmem:[%s246 + $0xc8] sm:$0xff] %v297
                  %v299 = vld [vmem:[%s245 + $0x1a0] sm:$0xff]
                  %300 = vst [vmem:[%s246 + $0xd0] sm:$0xff] %v299
                  %v301 = vld [vmem:[%s245 + $0x1b0] sm:$0xff]
                  %302 = vst [vmem:[%s246 + $0xd8] sm:$0xff] %v301
                  %v303 = vld [vmem:[%s245 + $0x1c0] sm:$0xff]
                  %304 = vst [vmem:[%s246 + $0xe0] sm:$0xff] %v303
                  %v305 = vld [vmem:[%s245 + $0x1d0] sm:$0xff]
                  %306 = vst [vmem:[%s246 + $0xe8] sm:$0xff] %v305
                  %v307 = vld [vmem:[%s245 + $0x1e0] sm:$0xff]
                  %308 = vst [vmem:[%s246 + $0xf0] sm:$0xff] %v307
                  %v309 = vld [vmem:[%s245 + $0x1f0] sm:$0xff]
                  %310 = vst [vmem:[%s246 + $0xf8] sm:$0xff] %v309
                $region52: #{gcn_forward.7} parent=46 // loop_footer
                  %s244 = sadd.s32 1, %s240
                $region53: #{gcn_forward.7} parent=46 // loop_footer_branch
                  %239 = sbr.rel target = $region49
                $region54: #{gcn_forward.7} parent=46 // loop_exit
                  _
              $region47: #{gcn_forward.7} parent=31 // pred_fallthru
                _
              // Predicated region
              $region55: #{gcn_forward.7} parent=31 // pred_check
                _
              $region56: #{gcn_forward.7} parent=31 // pred_check_branch
                %312 = sbr.rel target = $region58
              $region57: #{gcn_forward.7} parent=31 // pred_region
                _
              $region58: #{gcn_forward.7} parent=31 // pred_fallthru
                _
            $region32: #{gcn_forward.7} parent=27 // pred_fallthru
              _
            // Predicated region
            $region33: #{gcn_forward.7} parent=27 // pred_check
              _
            $region34: #{gcn_forward.7} parent=27 // pred_check_branch
              %162 = sbr.rel target = $region36
            $region35: #{gcn_forward.7} parent=27 // pred_region
              %s164 = ssub.s32 256, 1
              loop: start=0, step=1, limit=1
              $region37: #{gcn_forward.7} parent=35 // loop_pre_header
                _
              $region38: #{gcn_forward.7} parent=35 // loop_header
                %s166 = sphi 0, %s170
                %p167 = scmp.ge.s32.totalorder %s166, 1
                %s171 = sphi %s156, %s156
                %s172 = sphi %s150, %s150
              $region39: #{gcn_forward.7} parent=35 // loop_header_branch
                %169 = sbr.rel (%p167) target = $region43
              $region40: #{gcn_forward.7} parent=35 // loop_body
                %v173 = vld [vmem:[%s171] sm:%s164]
                %174 = vst [vmem:[%s172] sm:%s164] %v173
                %v175 = vld [vmem:[%s171 + $0x10] sm:%s164]
                %176 = vst [vmem:[%s172 + $0x8] sm:%s164] %v175
                %v177 = vld [vmem:[%s171 + $0x20] sm:%s164]
                %178 = vst [vmem:[%s172 + $0x10] sm:%s164] %v177
                %v179 = vld [vmem:[%s171 + $0x30] sm:%s164]
                %180 = vst [vmem:[%s172 + $0x18] sm:%s164] %v179
                %v181 = vld [vmem:[%s171 + $0x40] sm:%s164]
                %182 = vst [vmem:[%s172 + $0x20] sm:%s164] %v181
                %v183 = vld [vmem:[%s171 + $0x50] sm:%s164]
                %184 = vst [vmem:[%s172 + $0x28] sm:%s164] %v183
                %v185 = vld [vmem:[%s171 + $0x60] sm:%s164]
                %186 = vst [vmem:[%s172 + $0x30] sm:%s164] %v185
                %v187 = vld [vmem:[%s171 + $0x70] sm:%s164]
                %188 = vst [vmem:[%s172 + $0x38] sm:%s164] %v187
                %v189 = vld [vmem:[%s171 + $0x80] sm:%s164]
                %190 = vst [vmem:[%s172 + $0x40] sm:%s164] %v189
                %v191 = vld [vmem:[%s171 + $0x90] sm:%s164]
                %192 = vst [vmem:[%s172 + $0x48] sm:%s164] %v191
                %v193 = vld [vmem:[%s171 + $0xa0] sm:%s164]
                %194 = vst [vmem:[%s172 + $0x50] sm:%s164] %v193
                %v195 = vld [vmem:[%s171 + $0xb0] sm:%s164]
                %196 = vst [vmem:[%s172 + $0x58] sm:%s164] %v195
                %v197 = vld [vmem:[%s171 + $0xc0] sm:%s164]
                %198 = vst [vmem:[%s172 + $0x60] sm:%s164] %v197
                %v199 = vld [vmem:[%s171 + $0xd0] sm:%s164]
                %200 = vst [vmem:[%s172 + $0x68] sm:%s164] %v199
                %v201 = vld [vmem:[%s171 + $0xe0] sm:%s164]
                %202 = vst [vmem:[%s172 + $0x70] sm:%s164] %v201
                %v203 = vld [vmem:[%s171 + $0xf0] sm:%s164]
                %204 = vst [vmem:[%s172 + $0x78] sm:%s164] %v203
                %v205 = vld [vmem:[%s171 + $0x100] sm:%s164]
                %206 = vst [vmem:[%s172 + $0x80] sm:%s164] %v205
                %v207 = vld [vmem:[%s171 + $0x110] sm:%s164]
                %208 = vst [vmem:[%s172 + $0x88] sm:%s164] %v207
                %v209 = vld [vmem:[%s171 + $0x120] sm:%s164]
                %210 = vst [vmem:[%s172 + $0x90] sm:%s164] %v209
                %v211 = vld [vmem:[%s171 + $0x130] sm:%s164]
                %212 = vst [vmem:[%s172 + $0x98] sm:%s164] %v211
                %v213 = vld [vmem:[%s171 + $0x140] sm:%s164]
                %214 = vst [vmem:[%s172 + $0xa0] sm:%s164] %v213
                %v215 = vld [vmem:[%s171 + $0x150] sm:%s164]
                %216 = vst [vmem:[%s172 + $0xa8] sm:%s164] %v215
                %v217 = vld [vmem:[%s171 + $0x160] sm:%s164]
                %218 = vst [vmem:[%s172 + $0xb0] sm:%s164] %v217
                %v219 = vld [vmem:[%s171 + $0x170] sm:%s164]
                %220 = vst [vmem:[%s172 + $0xb8] sm:%s164] %v219
                %v221 = vld [vmem:[%s171 + $0x180] sm:%s164]
                %222 = vst [vmem:[%s172 + $0xc0] sm:%s164] %v221
                %v223 = vld [vmem:[%s171 + $0x190] sm:%s164]
                %224 = vst [vmem:[%s172 + $0xc8] sm:%s164] %v223
                %v225 = vld [vmem:[%s171 + $0x1a0] sm:%s164]
                %226 = vst [vmem:[%s172 + $0xd0] sm:%s164] %v225
                %v227 = vld [vmem:[%s171 + $0x1b0] sm:%s164]
                %228 = vst [vmem:[%s172 + $0xd8] sm:%s164] %v227
                %v229 = vld [vmem:[%s171 + $0x1c0] sm:%s164]
                %230 = vst [vmem:[%s172 + $0xe0] sm:%s164] %v229
                %v231 = vld [vmem:[%s171 + $0x1d0] sm:%s164]
                %232 = vst [vmem:[%s172 + $0xe8] sm:%s164] %v231
                %v233 = vld [vmem:[%s171 + $0x1e0] sm:%s164]
                %234 = vst [vmem:[%s172 + $0xf0] sm:%s164] %v233
                %v235 = vld [vmem:[%s171 + $0x1f0] sm:%s164]
                %236 = vst [vmem:[%s172 + $0xf8] sm:%s164] %v235
              $region41: #{gcn_forward.7} parent=35 // loop_footer
                %s170 = sadd.s32 1, %s166
              $region42: #{gcn_forward.7} parent=35 // loop_footer_branch
                %165 = sbr.rel target = $region38
              $region43: #{gcn_forward.7} parent=35 // loop_exit
                _
            $region36: #{gcn_forward.7} parent=27 // pred_fallthru
              _
          $region28: #{gcn_forward.7} parent=23 // pred_fallthru
            _
          %313 = vnop
        $region24: #{gcn_forward.7} parent=19 // pred_fallthru
          _
        // Predicated region
        $region59: #{gcn_forward.7} parent=19 // pred_check
          %p314 = pneg %p69
        $region60: #{gcn_forward.7} parent=19 // pred_check_branch
          %316 = sbr.rel (%p314) target = $region62
        $region61: #{gcn_forward.7} parent=19 // pred_region
          %s317 = smul.u32 32, %s17
          %p318 = scmp.lt.s32.totalorder %s317, 63
          %s319 = scalar_select %p318, %s317, 63
          %s320 = smul.addr %s319, 4
          %s321 = scalar_lea.vmem %s1, %s320
          %s322 = smul.u32 32, %s17
        $region62: #{gcn_forward.7} parent=19 // pred_fallthru
          _
      $region20: #{gcn_forward.7} parent=5 // pred_fallthru
        _
      %p323 = scmp.le.s32.totalorder 1, %s9
      %p324 = scmp.lt.s32.totalorder %s9, 5
      %p325 = pnand %p323, %p324
      %p326 = pneg %p325
      // Predicated region
      $region63: #{gcn_forward.7} parent=5 // pred_check
        _
      $region64: #{gcn_forward.7} parent=5 // pred_check_branch
        %328 = sbr.rel (%p325) target = $region66
      $region65: #{gcn_forward.7} parent=5 // pred_region
        %s329 = ssub.s32 %s9, 1
        %s330 = sand.u32 %s36, 1
        %s331 = sand.u32 %s36, 1
        %s332 = smul.addr %s331, 256
        %s333 = scalar_lea.vmem [#allocation3], %s332
        // Predicated region
        $region67: #{gcn_forward.7} parent=65 // pred_check
          %p334 = pneg %p49
        $region68: #{gcn_forward.7} parent=65 // pred_check_branch
          %336 = sbr.rel (%p334) target = $region70
        $region69: #{gcn_forward.7} parent=65 // pred_region
          _
        $region70: #{gcn_forward.7} parent=65 // pred_fallthru
          _
        %s337 = sand.u32 %s36, 1
        %s338 = sand.u32 %s36, 1
        %s339 = smul.addr %s338, 256
        %s340 = scalar_lea.vmem [#allocation3], %s339
        %p341 = pneg %p49
        %p342 = pneg %p46
        %s343 = smul.u32 32, %s19
        %p344 = scmp.lt.s32.totalorder %s343, 63
        %s345 = scalar_select %p344, %s343, 63
        %s346 = smul.addr %s345, 4
        %s347 = scalar_lea.vmem %s1, %s346
        %p348 = pneg %p75
        %p349 = pneg %p72
        %p350 = pneg %p96
        %p351 = pneg %p93
        %p352 = pneg %p122
        %p353 = pneg %p119
        %s354 = smul.u32 32, %s18
        %p355 = scmp.lt.s32.totalorder %s354, 63
        %s356 = scalar_select %p355, %s354, 63
        %s357 = smul.addr %s356, 8
        %s358 = scalar_lea.vmem %s3, %s357
        %s359 = smul.u32 32, %s18
        %s360 = smul.u32 2, %s19
        %s361 = smul.u32 32, %s19
        %p362 = scmp.lt.s32.totalorder %s361, 63
        %s363 = scalar_select %p362, %s361, 63
        %s364 = smul.addr %s363, 4
        %s365 = scalar_lea.vmem %s1, %s364
        %s366 = smul.u32 32, %s19
        %s367 = smul.u32 32, %s18
        %p368 = scmp.lt.s32.totalorder %s367, 63
        %s369 = scalar_select %p368, %s367, 63
        %s370 = smul.addr %s369, 8
        %s371 = scalar_lea.vmem %s3, %s370
        %s372 = smul.u32 32, %s18
        %p373 = scmp.eq.s32.totalorder %s19, 0
        // Predicated region
        $region71: #{gcn_forward.7} parent=65 // pred_check
          %p374 = pneg %p373
        $region72: #{gcn_forward.7} parent=65 // pred_check_branch
          %376 = sbr.rel (%p374) target = $region74
        $region73: #{gcn_forward.7} parent=65 // pred_region
          %377 = vst [vmem:[#allocation2] sm:$0xff] 0.0
          %378 = vst [vmem:[#allocation2 + $0x8] sm:$0xff] 0.0
          %379 = vst [vmem:[#allocation2 + $0x10] sm:$0xff] 0.0
          %380 = vst [vmem:[#allocation2 + $0x18] sm:$0xff] 0.0
          %381 = vst [vmem:[#allocation2 + $0x20] sm:$0xff] 0.0
          %382 = vst [vmem:[#allocation2 + $0x28] sm:$0xff] 0.0
          %383 = vst [vmem:[#allocation2 + $0x30] sm:$0xff] 0.0
          %384 = vst [vmem:[#allocation2 + $0x38] sm:$0xff] 0.0
          %385 = vst [vmem:[#allocation2 + $0x40] sm:$0xff] 0.0
          %386 = vst [vmem:[#allocation2 + $0x48] sm:$0xff] 0.0
          %387 = vst [vmem:[#allocation2 + $0x50] sm:$0xff] 0.0
          %388 = vst [vmem:[#allocation2 + $0x58] sm:$0xff] 0.0
          %389 = vst [vmem:[#allocation2 + $0x60] sm:$0xff] 0.0
          %390 = vst [vmem:[#allocation2 + $0x68] sm:$0xff] 0.0
          %391 = vst [vmem:[#allocation2 + $0x70] sm:$0xff] 0.0
          %392 = vst [vmem:[#allocation2 + $0x78] sm:$0xff] 0.0
          %393 = vst [vmem:[#allocation2 + $0x80] sm:$0xff] 0.0
          %394 = vst [vmem:[#allocation2 + $0x88] sm:$0xff] 0.0
          %395 = vst [vmem:[#allocation2 + $0x90] sm:$0xff] 0.0
          %396 = vst [vmem:[#allocation2 + $0x98] sm:$0xff] 0.0
          %397 = vst [vmem:[#allocation2 + $0xa0] sm:$0xff] 0.0
          %398 = vst [vmem:[#allocation2 + $0xa8] sm:$0xff] 0.0
          %399 = vst [vmem:[#allocation2 + $0xb0] sm:$0xff] 0.0
          %400 = vst [vmem:[#allocation2 + $0xb8] sm:$0xff] 0.0
          %401 = vst [vmem:[#allocation2 + $0xc0] sm:$0xff] 0.0
          %402 = vst [vmem:[#allocation2 + $0xc8] sm:$0xff] 0.0
          %403 = vst [vmem:[#allocation2 + $0xd0] sm:$0xff] 0.0
          %404 = vst [vmem:[#allocation2 + $0xd8] sm:$0xff] 0.0
          %405 = vst [vmem:[#allocation2 + $0xe0] sm:$0xff] 0.0
          %406 = vst [vmem:[#allocation2 + $0xe8] sm:$0xff] 0.0
          %407 = vst [vmem:[#allocation2 + $0xf0] sm:$0xff] 0.0
          %408 = vst [vmem:[#allocation2 + $0xf8] sm:$0xff] 0.0
        $region74: #{gcn_forward.7} parent=65 // pred_fallthru
          _
        %v409 = vld [vmem:[#allocation2] sm:$0xff]
        %v410 = vld [vmem:[#allocation2 + $0x8] sm:$0xff]
        %v411 = vld [vmem:[#allocation2 + $0x10] sm:$0xff]
        %v412 = vld [vmem:[#allocation2 + $0x18] sm:$0xff]
        %v413 = vld [vmem:[#allocation2 + $0x20] sm:$0xff]
        %v414 = vld [vmem:[#allocation2 + $0x28] sm:$0xff]
        %v415 = vld [vmem:[#allocation2 + $0x30] sm:$0xff]
        %v416 = vld [vmem:[#allocation2 + $0x38] sm:$0xff]
        %v417 = vld [vmem:[#allocation2 + $0x40] sm:$0xff]
        %v418 = vld [vmem:[#allocation2 + $0x48] sm:$0xff]
        %v419 = vld [vmem:[#allocation2 + $0x50] sm:$0xff]
        %v420 = vld [vmem:[#allocation2 + $0x58] sm:$0xff]
        %v421 = vld [vmem:[#allocation2 + $0x60] sm:$0xff]
        %v422 = vld [vmem:[#allocation2 + $0x68] sm:$0xff]
        %v423 = vld [vmem:[#allocation2 + $0x70] sm:$0xff]
        %v424 = vld [vmem:[#allocation2 + $0x78] sm:$0xff]
        %v425 = vld [vmem:[#allocation2 + $0x80] sm:$0xff]
        %v426 = vld [vmem:[#allocation2 + $0x88] sm:$0xff]
        %v427 = vld [vmem:[#allocation2 + $0x90] sm:$0xff]
        %v428 = vld [vmem:[#allocation2 + $0x98] sm:$0xff]
        %v429 = vld [vmem:[#allocation2 + $0xa0] sm:$0xff]
        %v430 = vld [vmem:[#allocation2 + $0xa8] sm:$0xff]
        %v431 = vld [vmem:[#allocation2 + $0xb0] sm:$0xff]
        %v432 = vld [vmem:[#allocation2 + $0xb8] sm:$0xff]
        %v433 = vld [vmem:[#allocation2 + $0xc0] sm:$0xff]
        %v434 = vld [vmem:[#allocation2 + $0xc8] sm:$0xff]
        %v435 = vld [vmem:[#allocation2 + $0xd0] sm:$0xff]
        %v436 = vld [vmem:[#allocation2 + $0xd8] sm:$0xff]
        %v437 = vld [vmem:[#allocation2 + $0xe0] sm:$0xff]
        %v438 = vld [vmem:[#allocation2 + $0xe8] sm:$0xff]
        %v439 = vld [vmem:[#allocation2 + $0xf0] sm:$0xff]
        %v440 = vld [vmem:[#allocation2 + $0xf8] sm:$0xff]
        %v441 = vld [vmem:[%s333] sm:$0xff]
        %v442 = vld [vmem:[%s333 + $0x8] sm:$0xff]
        %v443 = vld [vmem:[%s333 + $0x10] sm:$0xff]
        %v444 = vld [vmem:[%s333 + $0x18] sm:$0xff]
        %v445 = vld [vmem:[%s333 + $0x20] sm:$0xff]
        %v446 = vld [vmem:[%s333 + $0x28] sm:$0xff]
        %v447 = vld [vmem:[%s333 + $0x30] sm:$0xff]
        %v448 = vld [vmem:[%s333 + $0x38] sm:$0xff]
        %v449 = vld [vmem:[%s333 + $0x40] sm:$0xff]
        %v450 = vld [vmem:[%s333 + $0x48] sm:$0xff]
        %v451 = vld [vmem:[%s333 + $0x50] sm:$0xff]
        %v452 = vld [vmem:[%s333 + $0x58] sm:$0xff]
        %v453 = vld [vmem:[%s333 + $0x60] sm:$0xff]
        %v454 = vld [vmem:[%s333 + $0x68] sm:$0xff]
        %v455 = vld [vmem:[%s333 + $0x70] sm:$0xff]
        %v456 = vld [vmem:[%s333 + $0x78] sm:$0xff]
        %v457 = vld [vmem:[%s333 + $0x80] sm:$0xff]
        %v458 = vld [vmem:[%s333 + $0x88] sm:$0xff]
        %v459 = vld [vmem:[%s333 + $0x90] sm:$0xff]
        %v460 = vld [vmem:[%s333 + $0x98] sm:$0xff]
        %v461 = vld [vmem:[%s333 + $0xa0] sm:$0xff]
        %v462 = vld [vmem:[%s333 + $0xa8] sm:$0xff]
        %v463 = vld [vmem:[%s333 + $0xb0] sm:$0xff]
        %v464 = vld [vmem:[%s333 + $0xb8] sm:$0xff]
        %v465 = vld [vmem:[%s333 + $0xc0] sm:$0xff]
        %v466 = vld [vmem:[%s333 + $0xc8] sm:$0xff]
        %v467 = vld [vmem:[%s333 + $0xd0] sm:$0xff]
        %v468 = vld [vmem:[%s333 + $0xd8] sm:$0xff]
        %v469 = vld [vmem:[%s333 + $0xe0] sm:$0xff]
        %v470 = vld [vmem:[%s333 + $0xe8] sm:$0xff]
        %v471 = vld [vmem:[%s333 + $0xf0] sm:$0xff]
        %v472 = vld [vmem:[%s333 + $0xf8] sm:$0xff]
        %v473 = vld [vmem:[%s365] sm:$0xf]
        %v474 = vld [vmem:[%s365 + $0x4] sm:$0xf]
        %v475 = vld [vmem:[%s365 + $0x8] sm:$0xf]
        %v476 = vld [vmem:[%s365 + $0xc] sm:$0xf]
        %v477 = vld [vmem:[%s365 + $0x10] sm:$0xf]
        %v478 = vld [vmem:[%s365 + $0x14] sm:$0xf]
        %v479 = vld [vmem:[%s365 + $0x18] sm:$0xf]
        %v480 = vld [vmem:[%s365 + $0x1c] sm:$0xf]
        %v481 = vld [vmem:[%s365 + $0x20] sm:$0xf]
        %v482 = vld [vmem:[%s365 + $0x24] sm:$0xf]
        %v483 = vld [vmem:[%s365 + $0x28] sm:$0xf]
        %v484 = vld [vmem:[%s365 + $0x2c] sm:$0xf]
        %v485 = vld [vmem:[%s365 + $0x30] sm:$0xf]
        %v486 = vld [vmem:[%s365 + $0x34] sm:$0xf]
        %v487 = vld [vmem:[%s365 + $0x38] sm:$0xf]
        %v488 = vld [vmem:[%s365 + $0x3c] sm:$0xf]
        %v489 = vld [vmem:[%s365 + $0x40] sm:$0xf]
        %v490 = vld [vmem:[%s365 + $0x44] sm:$0xf]
        %v491 = vld [vmem:[%s365 + $0x48] sm:$0xf]
        %v492 = vld [vmem:[%s365 + $0x4c] sm:$0xf]
        %v493 = vld [vmem:[%s365 + $0x50] sm:$0xf]
        %v494 = vld [vmem:[%s365 + $0x54] sm:$0xf]
        %v495 = vld [vmem:[%s365 + $0x58] sm:$0xf]
        %v496 = vld [vmem:[%s365 + $0x5c] sm:$0xf]
        %v497 = vld [vmem:[%s365 + $0x60] sm:$0xf]
        %v498 = vld [vmem:[%s365 + $0x64] sm:$0xf]
        %v499 = vld [vmem:[%s365 + $0x68] sm:$0xf]
        %v500 = vld [vmem:[%s365 + $0x6c] sm:$0xf]
        %v501 = vld [vmem:[%s365 + $0x70] sm:$0xf]
        %v502 = vld [vmem:[%s365 + $0x74] sm:$0xf]
        %v503 = vld [vmem:[%s365 + $0x78] sm:$0xf]
        %v504 = vld [vmem:[%s365 + $0x7c] sm:$0xf]
        %v537 = vunpack.c.l.b16 %v441
        %v538 = vunpack.c.h.b16 %v441
        %v539 = vunpack.c.l.b16 %v442
        %v540 = vunpack.c.h.b16 %v442
        %v541 = vunpack.c.l.b16 %v443
        %v542 = vunpack.c.h.b16 %v443
        %v543 = vunpack.c.l.b16 %v444
        %v544 = vunpack.c.h.b16 %v444
        %v545 = vunpack.c.l.b16 %v445
        %v546 = vunpack.c.h.b16 %v445
        %v547 = vunpack.c.l.b16 %v446
        %v548 = vunpack.c.h.b16 %v446
        %v549 = vunpack.c.l.b16 %v447
        %v550 = vunpack.c.h.b16 %v447
        %v551 = vunpack.c.l.b16 %v448
        %v552 = vunpack.c.h.b16 %v448
        %v553 = vunpack.c.l.b16 %v449
        %v554 = vunpack.c.h.b16 %v449
        %v555 = vunpack.c.l.b16 %v450
        %v556 = vunpack.c.h.b16 %v450
        %v557 = vunpack.c.l.b16 %v451
        %v558 = vunpack.c.h.b16 %v451
        %v559 = vunpack.c.l.b16 %v452
        %v560 = vunpack.c.h.b16 %v452
        %v561 = vunpack.c.l.b16 %v453
        %v562 = vunpack.c.h.b16 %v453
        %v563 = vunpack.c.l.b16 %v454
        %v564 = vunpack.c.h.b16 %v454
        %v565 = vunpack.c.l.b16 %v455
        %v566 = vunpack.c.h.b16 %v455
        %v567 = vunpack.c.l.b16 %v456
        %v568 = vunpack.c.h.b16 %v456
        %v569 = vunpack.c.l.b16 %v457
        %v570 = vunpack.c.h.b16 %v457
        %v571 = vunpack.c.l.b16 %v458
        %v572 = vunpack.c.h.b16 %v458
        %v573 = vunpack.c.l.b16 %v459
        %v574 = vunpack.c.h.b16 %v459
        %v575 = vunpack.c.l.b16 %v460
        %v576 = vunpack.c.h.b16 %v460
        %v577 = vunpack.c.l.b16 %v461
        %v578 = vunpack.c.h.b16 %v461
        %v579 = vunpack.c.l.b16 %v462
        %v580 = vunpack.c.h.b16 %v462
        %v581 = vunpack.c.l.b16 %v463
        %v582 = vunpack.c.h.b16 %v463
        %v583 = vunpack.c.l.b16 %v464
        %v584 = vunpack.c.h.b16 %v464
        %v585 = vunpack.c.l.b16 %v465
        %v586 = vunpack.c.h.b16 %v465
        %v587 = vunpack.c.l.b16 %v466
        %v588 = vunpack.c.h.b16 %v466
        %v589 = vunpack.c.l.b16 %v467
        %v590 = vunpack.c.h.b16 %v467
        %v591 = vunpack.c.l.b16 %v468
        %v592 = vunpack.c.h.b16 %v468
        %v593 = vunpack.c.l.b16 %v469
        %v594 = vunpack.c.h.b16 %v469
        %v595 = vunpack.c.l.b16 %v470
        %v596 = vunpack.c.h.b16 %v470
        %v597 = vunpack.c.l.b16 %v471
        %v598 = vunpack.c.h.b16 %v471
        %v599 = vunpack.c.l.b16 %v472
        %v600 = vunpack.c.h.b16 %v472
        %v601 = vpack.c.b16 %v539, %v537
        %v602 = vpack.c.b16 %v540, %v538
        %v603 = vpack.c.b16 %v543, %v541
        %v604 = vpack.c.b16 %v544, %v542
        %v605 = vpack.c.b16 %v547, %v545
        %v606 = vpack.c.b16 %v548, %v546
        %v607 = vpack.c.b16 %v551, %v549
        %v608 = vpack.c.b16 %v552, %v550
        %v609 = vpack.c.b16 %v555, %v553
        %v610 = vpack.c.b16 %v556, %v554
        %v611 = vpack.c.b16 %v559, %v557
        %v612 = vpack.c.b16 %v560, %v558
        %v613 = vpack.c.b16 %v563, %v561
        %v614 = vpack.c.b16 %v564, %v562
        %v615 = vpack.c.b16 %v567, %v565
        %v616 = vpack.c.b16 %v568, %v566
        %v617 = vpack.c.b16 %v571, %v569
        %v618 = vpack.c.b16 %v572, %v570
        %v619 = vpack.c.b16 %v575, %v573
        %v620 = vpack.c.b16 %v576, %v574
        %v621 = vpack.c.b16 %v579, %v577
        %v622 = vpack.c.b16 %v580, %v578
        %v623 = vpack.c.b16 %v583, %v581
        %v624 = vpack.c.b16 %v584, %v582
        %v625 = vpack.c.b16 %v587, %v585
        %v626 = vpack.c.b16 %v588, %v586
        %v627 = vpack.c.b16 %v591, %v589
        %v628 = vpack.c.b16 %v592, %v590
        %v629 = vpack.c.b16 %v595, %v593
        %v630 = vpack.c.b16 %v596, %v594
        %v631 = vpack.c.b16 %v599, %v597
        %v632 = vpack.c.b16 %v600, %v598
        %v697 = vunpack.c.l.b16 %v473
        %v698 = vunpack.c.l.b16 %v474
        %v699 = vunpack.c.l.b16 %v475
        %v700 = vunpack.c.l.b16 %v476
        %v701 = vunpack.c.l.b16 %v477
        %v702 = vunpack.c.l.b16 %v478
        %v703 = vunpack.c.l.b16 %v479
        %v704 = vunpack.c.l.b16 %v480
        %v705 = vunpack.c.l.b16 %v481
        %v706 = vunpack.c.l.b16 %v482
        %v707 = vunpack.c.l.b16 %v483
        %v708 = vunpack.c.l.b16 %v484
        %v709 = vunpack.c.l.b16 %v485
        %v710 = vunpack.c.l.b16 %v486
        %v711 = vunpack.c.l.b16 %v487
        %v712 = vunpack.c.l.b16 %v488
        %v713 = vunpack.c.l.b16 %v489
        %v714 = vunpack.c.l.b16 %v490
        %v715 = vunpack.c.l.b16 %v491
        %v716 = vunpack.c.l.b16 %v492
        %v717 = vunpack.c.l.b16 %v493
        %v718 = vunpack.c.l.b16 %v494
        %v719 = vunpack.c.l.b16 %v495
        %v720 = vunpack.c.l.b16 %v496
        %v721 = vunpack.c.l.b16 %v497
        %v722 = vunpack.c.l.b16 %v498
        %v723 = vunpack.c.l.b16 %v499
        %v724 = vunpack.c.l.b16 %v500
        %v725 = vunpack.c.l.b16 %v501
        %v726 = vunpack.c.l.b16 %v502
        %v727 = vunpack.c.l.b16 %v503
        %v728 = vunpack.c.l.b16 %v504
        %v729 = vpack.c.b16 %v698, %v697
        %v730 = vpack.c.b16 %v700, %v699
        %v731 = vpack.c.b16 %v702, %v701
        %v732 = vpack.c.b16 %v704, %v703
        %v733 = vpack.c.b16 %v706, %v705
        %v734 = vpack.c.b16 %v708, %v707
        %v735 = vpack.c.b16 %v710, %v709
        %v736 = vpack.c.b16 %v712, %v711
        %v737 = vpack.c.b16 %v714, %v713
        %v738 = vpack.c.b16 %v716, %v715
        %v739 = vpack.c.b16 %v718, %v717
        %v740 = vpack.c.b16 %v720, %v719
        %v741 = vpack.c.b16 %v722, %v721
        %v742 = vpack.c.b16 %v724, %v723
        %v743 = vpack.c.b16 %v726, %v725
        %v744 = vpack.c.b16 %v728, %v727
        %761 = vmatpush.bf16.msra.mxu0 %v736
        %762 = vmatpush.bf16.msra.mxu0 %v735
        %763 = vmatpush.bf16.msra.mxu0 %v734
        %764 = vmatpush.bf16.msra.mxu0 %v733
        %765 = vmatpush.bf16.msra.mxu0 %v732
        %766 = vmatpush.bf16.msra.mxu0 %v731
        %767 = vmatpush.bf16.msra.mxu0 %v730
        %768 = vmatpush.bf16.msra.mxu0 %v729
        %769 = vmatmul.bf16.gmra.mxu0 %v601
        %v770 = vpop.f32.mrf.mxu0
        %v771 = vadd.f32 0.0, %v770
        %v772 = vpop.f32.mrf.mxu0
        %v773 = vadd.f32 0.0, %v772
        %774 = vmatmul.bf16.gmra.mxu0 %v603
        %v775 = vpop.f32.mrf.mxu0
        %v776 = vadd.f32 0.0, %v775
        %v777 = vpop.f32.mrf.mxu0
        %v778 = vadd.f32 0.0, %v777
        %779 = vmatmul.bf16.gmra.mxu0 %v605
        %v780 = vpop.f32.mrf.mxu0
        %v781 = vadd.f32 0.0, %v780
        %v782 = vpop.f32.mrf.mxu0
        %v783 = vadd.f32 0.0, %v782
        %784 = vmatmul.bf16.gmra.mxu0 %v607
        %v785 = vpop.f32.mrf.mxu0
        %v786 = vadd.f32 0.0, %v785
        %v787 = vpop.f32.mrf.mxu0
        %v788 = vadd.f32 0.0, %v787
        %789 = vmatmul.bf16.gmra.mxu0 %v609
        %v790 = vpop.f32.mrf.mxu0
        %v791 = vadd.f32 0.0, %v790
        %v792 = vpop.f32.mrf.mxu0
        %v793 = vadd.f32 0.0, %v792
        %794 = vmatmul.bf16.gmra.mxu0 %v611
        %v795 = vpop.f32.mrf.mxu0
        %v796 = vadd.f32 0.0, %v795
        %v797 = vpop.f32.mrf.mxu0
        %v798 = vadd.f32 0.0, %v797
        %799 = vmatmul.bf16.gmra.mxu0 %v613
        %v800 = vpop.f32.mrf.mxu0
        %v801 = vadd.f32 0.0, %v800
        %v802 = vpop.f32.mrf.mxu0
        %v803 = vadd.f32 0.0, %v802
        %804 = vmatmul.bf16.gmra.mxu0 %v615
        %v805 = vpop.f32.mrf.mxu0
        %v806 = vadd.f32 0.0, %v805
        %v807 = vpop.f32.mrf.mxu0
        %v808 = vadd.f32 0.0, %v807
        %809 = vmatmul.bf16.gmra.mxu0 %v617
        %v810 = vpop.f32.mrf.mxu0
        %v811 = vadd.f32 0.0, %v810
        %v812 = vpop.f32.mrf.mxu0
        %v813 = vadd.f32 0.0, %v812
        %814 = vmatmul.bf16.gmra.mxu0 %v619
        %v815 = vpop.f32.mrf.mxu0
        %v816 = vadd.f32 0.0, %v815
        %v817 = vpop.f32.mrf.mxu0
        %v818 = vadd.f32 0.0, %v817
        %819 = vmatmul.bf16.gmra.mxu0 %v621
        %v820 = vpop.f32.mrf.mxu0
        %v821 = vadd.f32 0.0, %v820
        %v822 = vpop.f32.mrf.mxu0
        %v823 = vadd.f32 0.0, %v822
        %824 = vmatmul.bf16.gmra.mxu0 %v623
        %v825 = vpop.f32.mrf.mxu0
        %v826 = vadd.f32 0.0, %v825
        %v827 = vpop.f32.mrf.mxu0
        %v828 = vadd.f32 0.0, %v827
        %829 = vmatmul.bf16.gmra.mxu0 %v625
        %v830 = vpop.f32.mrf.mxu0
        %v831 = vadd.f32 0.0, %v830
        %v832 = vpop.f32.mrf.mxu0
        %v833 = vadd.f32 0.0, %v832
        %834 = vmatmul.bf16.gmra.mxu0 %v627
        %v835 = vpop.f32.mrf.mxu0
        %v836 = vadd.f32 0.0, %v835
        %v837 = vpop.f32.mrf.mxu0
        %v838 = vadd.f32 0.0, %v837
        %839 = vmatmul.bf16.gmra.mxu0 %v629
        %v840 = vpop.f32.mrf.mxu0
        %v841 = vadd.f32 0.0, %v840
        %v842 = vpop.f32.mrf.mxu0
        %v843 = vadd.f32 0.0, %v842
        %844 = vmatmul.bf16.gmra.mxu0 %v631
        %v845 = vpop.f32.mrf.mxu0
        %v846 = vadd.f32 0.0, %v845
        %v847 = vpop.f32.mrf.mxu0
        %v848 = vadd.f32 0.0, %v847
        %849 = vdwg.mxu0
        %850 = vmatpush.bf16.msra.mxu0 %v744
        %851 = vmatpush.bf16.msra.mxu0 %v743
        %852 = vmatpush.bf16.msra.mxu0 %v742
        %853 = vmatpush.bf16.msra.mxu0 %v741
        %854 = vmatpush.bf16.msra.mxu0 %v740
        %855 = vmatpush.bf16.msra.mxu0 %v739
        %856 = vmatpush.bf16.msra.mxu0 %v738
        %857 = vmatpush.bf16.msra.mxu0 %v737
        %858 = vmatmul.bf16.gmra.mxu0 %v602
        %v859 = vpop.f32.mrf.mxu0
        %v860 = vadd.f32 %v771, %v859
        %v861 = vpop.f32.mrf.mxu0
        %v862 = vadd.f32 %v773, %v861
        %863 = vmatmul.bf16.gmra.mxu0 %v604
        %v864 = vpop.f32.mrf.mxu0
        %v865 = vadd.f32 %v776, %v864
        %v866 = vpop.f32.mrf.mxu0
        %v867 = vadd.f32 %v778, %v866
        %868 = vmatmul.bf16.gmra.mxu0 %v606
        %v869 = vpop.f32.mrf.mxu0
        %v870 = vadd.f32 %v781, %v869
        %v871 = vpop.f32.mrf.mxu0
        %v872 = vadd.f32 %v783, %v871
        %873 = vmatmul.bf16.gmra.mxu0 %v608
        %v874 = vpop.f32.mrf.mxu0
        %v875 = vadd.f32 %v786, %v874
        %v876 = vpop.f32.mrf.mxu0
        %v877 = vadd.f32 %v788, %v876
        %878 = vmatmul.bf16.gmra.mxu0 %v610
        %v879 = vpop.f32.mrf.mxu0
        %v880 = vadd.f32 %v791, %v879
        %v881 = vpop.f32.mrf.mxu0
        %v882 = vadd.f32 %v793, %v881
        %883 = vmatmul.bf16.gmra.mxu0 %v612
        %v884 = vpop.f32.mrf.mxu0
        %v885 = vadd.f32 %v796, %v884
        %v886 = vpop.f32.mrf.mxu0
        %v887 = vadd.f32 %v798, %v886
        %888 = vmatmul.bf16.gmra.mxu0 %v614
        %v889 = vpop.f32.mrf.mxu0
        %v890 = vadd.f32 %v801, %v889
        %v891 = vpop.f32.mrf.mxu0
        %v892 = vadd.f32 %v803, %v891
        %893 = vmatmul.bf16.gmra.mxu0 %v616
        %v894 = vpop.f32.mrf.mxu0
        %v895 = vadd.f32 %v806, %v894
        %v896 = vpop.f32.mrf.mxu0
        %v897 = vadd.f32 %v808, %v896
        %898 = vmatmul.bf16.gmra.mxu0 %v618
        %v899 = vpop.f32.mrf.mxu0
        %v900 = vadd.f32 %v811, %v899
        %v901 = vpop.f32.mrf.mxu0
        %v902 = vadd.f32 %v813, %v901
        %903 = vmatmul.bf16.gmra.mxu0 %v620
        %v904 = vpop.f32.mrf.mxu0
        %v905 = vadd.f32 %v816, %v904
        %v906 = vpop.f32.mrf.mxu0
        %v907 = vadd.f32 %v818, %v906
        %908 = vmatmul.bf16.gmra.mxu0 %v622
        %v909 = vpop.f32.mrf.mxu0
        %v910 = vadd.f32 %v821, %v909
        %v911 = vpop.f32.mrf.mxu0
        %v912 = vadd.f32 %v823, %v911
        %913 = vmatmul.bf16.gmra.mxu0 %v624
        %v914 = vpop.f32.mrf.mxu0
        %v915 = vadd.f32 %v826, %v914
        %v916 = vpop.f32.mrf.mxu0
        %v917 = vadd.f32 %v828, %v916
        %918 = vmatmul.bf16.gmra.mxu0 %v626
        %v919 = vpop.f32.mrf.mxu0
        %v920 = vadd.f32 %v831, %v919
        %v921 = vpop.f32.mrf.mxu0
        %v922 = vadd.f32 %v833, %v921
        %923 = vmatmul.bf16.gmra.mxu0 %v628
        %v924 = vpop.f32.mrf.mxu0
        %v925 = vadd.f32 %v836, %v924
        %v926 = vpop.f32.mrf.mxu0
        %v927 = vadd.f32 %v838, %v926
        %928 = vmatmul.bf16.gmra.mxu0 %v630
        %v929 = vpop.f32.mrf.mxu0
        %v930 = vadd.f32 %v841, %v929
        %v931 = vpop.f32.mrf.mxu0
        %v932 = vadd.f32 %v843, %v931
        %933 = vmatmul.bf16.gmra.mxu0 %v632
        %v934 = vpop.f32.mrf.mxu0
        %v935 = vadd.f32 %v846, %v934
        %v936 = vpop.f32.mrf.mxu0
        %v937 = vadd.f32 %v848, %v936
        %938 = vdwg.mxu0
        %v939 = vadd.f32 %v409, %v860
        %v940 = vadd.f32 %v410, %v862
        %v941 = vadd.f32 %v411, %v865
        %v942 = vadd.f32 %v412, %v867
        %v943 = vadd.f32 %v413, %v870
        %v944 = vadd.f32 %v414, %v872
        %v945 = vadd.f32 %v415, %v875
        %v946 = vadd.f32 %v416, %v877
        %v947 = vadd.f32 %v417, %v880
        %v948 = vadd.f32 %v418, %v882
        %v949 = vadd.f32 %v419, %v885
        %v950 = vadd.f32 %v420, %v887
        %v951 = vadd.f32 %v421, %v890
        %v952 = vadd.f32 %v422, %v892
        %v953 = vadd.f32 %v423, %v895
        %v954 = vadd.f32 %v424, %v897
        %v955 = vadd.f32 %v425, %v900
        %v956 = vadd.f32 %v426, %v902
        %v957 = vadd.f32 %v427, %v905
        %v958 = vadd.f32 %v428, %v907
        %v959 = vadd.f32 %v429, %v910
        %v960 = vadd.f32 %v430, %v912
        %v961 = vadd.f32 %v431, %v915
        %v962 = vadd.f32 %v432, %v917
        %v963 = vadd.f32 %v433, %v920
        %v964 = vadd.f32 %v434, %v922
        %v965 = vadd.f32 %v435, %v925
        %v966 = vadd.f32 %v436, %v927
        %v967 = vadd.f32 %v437, %v930
        %v968 = vadd.f32 %v438, %v932
        %v969 = vadd.f32 %v439, %v935
        %v970 = vadd.f32 %v440, %v937
        %971 = vst [vmem:[#allocation2] sm:$0xff] %v939
        %972 = vst [vmem:[#allocation2 + $0x8] sm:$0xff] %v940
        %973 = vst [vmem:[#allocation2 + $0x10] sm:$0xff] %v941
        %974 = vst [vmem:[#allocation2 + $0x18] sm:$0xff] %v942
        %975 = vst [vmem:[#allocation2 + $0x20] sm:$0xff] %v943
        %976 = vst [vmem:[#allocation2 + $0x28] sm:$0xff] %v944
        %977 = vst [vmem:[#allocation2 + $0x30] sm:$0xff] %v945
        %978 = vst [vmem:[#allocation2 + $0x38] sm:$0xff] %v946
        %979 = vst [vmem:[#allocation2 + $0x40] sm:$0xff] %v947
        %980 = vst [vmem:[#allocation2 + $0x48] sm:$0xff] %v948
        %981 = vst [vmem:[#allocation2 + $0x50] sm:$0xff] %v949
        %982 = vst [vmem:[#allocation2 + $0x58] sm:$0xff] %v950
        %983 = vst [vmem:[#allocation2 + $0x60] sm:$0xff] %v951
        %984 = vst [vmem:[#allocation2 + $0x68] sm:$0xff] %v952
        %985 = vst [vmem:[#allocation2 + $0x70] sm:$0xff] %v953
        %986 = vst [vmem:[#allocation2 + $0x78] sm:$0xff] %v954
        %987 = vst [vmem:[#allocation2 + $0x80] sm:$0xff] %v955
        %988 = vst [vmem:[#allocation2 + $0x88] sm:$0xff] %v956
        %989 = vst [vmem:[#allocation2 + $0x90] sm:$0xff] %v957
        %990 = vst [vmem:[#allocation2 + $0x98] sm:$0xff] %v958
        %991 = vst [vmem:[#allocation2 + $0xa0] sm:$0xff] %v959
        %992 = vst [vmem:[#allocation2 + $0xa8] sm:$0xff] %v960
        %993 = vst [vmem:[#allocation2 + $0xb0] sm:$0xff] %v961
        %994 = vst [vmem:[#allocation2 + $0xb8] sm:$0xff] %v962
        %995 = vst [vmem:[#allocation2 + $0xc0] sm:$0xff] %v963
        %996 = vst [vmem:[#allocation2 + $0xc8] sm:$0xff] %v964
        %997 = vst [vmem:[#allocation2 + $0xd0] sm:$0xff] %v965
        %998 = vst [vmem:[#allocation2 + $0xd8] sm:$0xff] %v966
        %999 = vst [vmem:[#allocation2 + $0xe0] sm:$0xff] %v967
        %1000 = vst [vmem:[#allocation2 + $0xe8] sm:$0xff] %v968
        %1001 = vst [vmem:[#allocation2 + $0xf0] sm:$0xff] %v969
        %1002 = vst [vmem:[#allocation2 + $0xf8] sm:$0xff] %v970
        %p1003 = scmp.eq.s32.totalorder %s19, 1
        // Predicated region
        $region75: #{gcn_forward.7} parent=65 // pred_check
          %p1004 = pneg %p1003
        $region76: #{gcn_forward.7} parent=65 // pred_check_branch
          %1006 = sbr.rel (%p1004) target = $region78
        $region77: #{gcn_forward.7} parent=65 // pred_region
          %v1007 = vld [vmem:[#allocation2] sm:$0xff]
          %v1008 = vld [vmem:[#allocation2 + $0x8] sm:$0xff]
          %v1009 = vld [vmem:[#allocation2 + $0x10] sm:$0xff]
          %v1010 = vld [vmem:[#allocation2 + $0x18] sm:$0xff]
          %v1011 = vld [vmem:[#allocation2 + $0x20] sm:$0xff]
          %v1012 = vld [vmem:[#allocation2 + $0x28] sm:$0xff]
          %v1013 = vld [vmem:[#allocation2 + $0x30] sm:$0xff]
          %v1014 = vld [vmem:[#allocation2 + $0x38] sm:$0xff]
          %v1015 = vld [vmem:[#allocation2 + $0x40] sm:$0xff]
          %v1016 = vld [vmem:[#allocation2 + $0x48] sm:$0xff]
          %v1017 = vld [vmem:[#allocation2 + $0x50] sm:$0xff]
          %v1018 = vld [vmem:[#allocation2 + $0x58] sm:$0xff]
          %v1019 = vld [vmem:[#allocation2 + $0x60] sm:$0xff]
          %v1020 = vld [vmem:[#allocation2 + $0x68] sm:$0xff]
          %v1021 = vld [vmem:[#allocation2 + $0x70] sm:$0xff]
          %v1022 = vld [vmem:[#allocation2 + $0x78] sm:$0xff]
          %v1023 = vld [vmem:[#allocation2 + $0x80] sm:$0xff]
          %v1024 = vld [vmem:[#allocation2 + $0x88] sm:$0xff]
          %v1025 = vld [vmem:[#allocation2 + $0x90] sm:$0xff]
          %v1026 = vld [vmem:[#allocation2 + $0x98] sm:$0xff]
          %v1027 = vld [vmem:[#allocation2 + $0xa0] sm:$0xff]
          %v1028 = vld [vmem:[#allocation2 + $0xa8] sm:$0xff]
          %v1029 = vld [vmem:[#allocation2 + $0xb0] sm:$0xff]
          %v1030 = vld [vmem:[#allocation2 + $0xb8] sm:$0xff]
          %v1031 = vld [vmem:[#allocation2 + $0xc0] sm:$0xff]
          %v1032 = vld [vmem:[#allocation2 + $0xc8] sm:$0xff]
          %v1033 = vld [vmem:[#allocation2 + $0xd0] sm:$0xff]
          %v1034 = vld [vmem:[#allocation2 + $0xd8] sm:$0xff]
          %v1035 = vld [vmem:[#allocation2 + $0xe0] sm:$0xff]
          %v1036 = vld [vmem:[#allocation2 + $0xe8] sm:$0xff]
          %v1037 = vld [vmem:[#allocation2 + $0xf0] sm:$0xff]
          %v1038 = vld [vmem:[#allocation2 + $0xf8] sm:$0xff]
          %v1039 = vld [vmem:[%s2] sm:$0x1]
          %v1041 = vperm.slane %v1039, 0
          %v1043 = vadd.f32 %v1007, %v1041
          %v1044 = vadd.f32 %v1008, %v1041
          %v1045 = vadd.f32 %v1009, %v1041
          %v1046 = vadd.f32 %v1010, %v1041
          %v1047 = vadd.f32 %v1011, %v1041
          %v1048 = vadd.f32 %v1012, %v1041
          %v1049 = vadd.f32 %v1013, %v1041
          %v1050 = vadd.f32 %v1014, %v1041
          %v1051 = vadd.f32 %v1015, %v1041
          %v1052 = vadd.f32 %v1016, %v1041
          %v1053 = vadd.f32 %v1017, %v1041
          %v1054 = vadd.f32 %v1018, %v1041
          %v1055 = vadd.f32 %v1019, %v1041
          %v1056 = vadd.f32 %v1020, %v1041
          %v1057 = vadd.f32 %v1021, %v1041
          %v1058 = vadd.f32 %v1022, %v1041
          %v1059 = vadd.f32 %v1023, %v1041
          %v1060 = vadd.f32 %v1024, %v1041
          %v1061 = vadd.f32 %v1025, %v1041
          %v1062 = vadd.f32 %v1026, %v1041
          %v1063 = vadd.f32 %v1027, %v1041
          %v1064 = vadd.f32 %v1028, %v1041
          %v1065 = vadd.f32 %v1029, %v1041
          %v1066 = vadd.f32 %v1030, %v1041
          %v1067 = vadd.f32 %v1031, %v1041
          %v1068 = vadd.f32 %v1032, %v1041
          %v1069 = vadd.f32 %v1033, %v1041
          %v1070 = vadd.f32 %v1034, %v1041
          %v1071 = vadd.f32 %v1035, %v1041
          %v1072 = vadd.f32 %v1036, %v1041
          %v1073 = vadd.f32 %v1037, %v1041
          %v1074 = vadd.f32 %v1038, %v1041
          %v1075 = vlaneseq
          %v1076 = vand.u32 %v1075, 127
          %vm1077 = vcmp.lt.s32.totalorder %v1076, 8
          %v1078 = vsel %vm1077, %v1043, -1e+30
          %v1079 = vsel %vm1077, %v1044, -1e+30
          %v1080 = vsel %vm1077, %v1045, -1e+30
          %v1081 = vsel %vm1077, %v1046, -1e+30
          %v1082 = vsel %vm1077, %v1047, -1e+30
          %v1083 = vsel %vm1077, %v1048, -1e+30
          %v1084 = vsel %vm1077, %v1049, -1e+30
          %v1085 = vsel %vm1077, %v1050, -1e+30
          %v1086 = vsel %vm1077, %v1051, -1e+30
          %v1087 = vsel %vm1077, %v1052, -1e+30
          %v1088 = vsel %vm1077, %v1053, -1e+30
          %v1089 = vsel %vm1077, %v1054, -1e+30
          %v1090 = vsel %vm1077, %v1055, -1e+30
          %v1091 = vsel %vm1077, %v1056, -1e+30
          %v1092 = vsel %vm1077, %v1057, -1e+30
          %v1093 = vsel %vm1077, %v1058, -1e+30
          %v1094 = vsel %vm1077, %v1059, -1e+30
          %v1095 = vsel %vm1077, %v1060, -1e+30
          %v1096 = vsel %vm1077, %v1061, -1e+30
          %v1097 = vsel %vm1077, %v1062, -1e+30
          %v1098 = vsel %vm1077, %v1063, -1e+30
          %v1099 = vsel %vm1077, %v1064, -1e+30
          %v1100 = vsel %vm1077, %v1065, -1e+30
          %v1101 = vsel %vm1077, %v1066, -1e+30
          %v1102 = vsel %vm1077, %v1067, -1e+30
          %v1103 = vsel %vm1077, %v1068, -1e+30
          %v1104 = vsel %vm1077, %v1069, -1e+30
          %v1105 = vsel %vm1077, %v1070, -1e+30
          %v1106 = vsel %vm1077, %v1071, -1e+30
          %v1107 = vsel %vm1077, %v1072, -1e+30
          %v1108 = vsel %vm1077, %v1073, -1e+30
          %v1109 = vsel %vm1077, %v1074, -1e+30
          %1110 = vmax.xlane.f32.xlu0 %v1078
          %v1111 = vpop.xlane.xlu0 %1110
          %1112 = vmax.xlane.f32.xlu0 %v1079
          %v1113 = vpop.xlane.xlu0 %1112
          %1114 = vmax.xlane.f32.xlu0 %v1080
          %v1115 = vpop.xlane.xlu0 %1114
          %1116 = vmax.xlane.f32.xlu0 %v1081
          %v1117 = vpop.xlane.xlu0 %1116
          %1118 = vmax.xlane.f32.xlu0 %v1082
          %v1119 = vpop.xlane.xlu0 %1118
          %1120 = vmax.xlane.f32.xlu0 %v1083
          %v1121 = vpop.xlane.xlu0 %1120
          %1122 = vmax.xlane.f32.xlu0 %v1084
          %v1123 = vpop.xlane.xlu0 %1122
          %1124 = vmax.xlane.f32.xlu0 %v1085
          %v1125 = vpop.xlane.xlu0 %1124
          %1126 = vmax.xlane.f32.xlu0 %v1086
          %v1127 = vpop.xlane.xlu0 %1126
          %1128 = vmax.xlane.f32.xlu0 %v1087
          %v1129 = vpop.xlane.xlu0 %1128
          %1130 = vmax.xlane.f32.xlu0 %v1088
          %v1131 = vpop.xlane.xlu0 %1130
          %1132 = vmax.xlane.f32.xlu0 %v1089
          %v1133 = vpop.xlane.xlu0 %1132
          %1134 = vmax.xlane.f32.xlu0 %v1090
          %v1135 = vpop.xlane.xlu0 %1134
          %1136 = vmax.xlane.f32.xlu0 %v1091
          %v1137 = vpop.xlane.xlu0 %1136
          %1138 = vmax.xlane.f32.xlu0 %v1092
          %v1139 = vpop.xlane.xlu0 %1138
          %1140 = vmax.xlane.f32.xlu0 %v1093
          %v1141 = vpop.xlane.xlu0 %1140
          %1142 = vmax.xlane.f32.xlu0 %v1094
          %v1143 = vpop.xlane.xlu0 %1142
          %1144 = vmax.xlane.f32.xlu0 %v1095
          %v1145 = vpop.xlane.xlu0 %1144
          %1146 = vmax.xlane.f32.xlu0 %v1096
          %v1147 = vpop.xlane.xlu0 %1146
          %1148 = vmax.xlane.f32.xlu0 %v1097
          %v1149 = vpop.xlane.xlu0 %1148
          %1150 = vmax.xlane.f32.xlu0 %v1098
          %v1151 = vpop.xlane.xlu0 %1150
          %1152 = vmax.xlane.f32.xlu0 %v1099
          %v1153 = vpop.xlane.xlu0 %1152
          %1154 = vmax.xlane.f32.xlu0 %v1100
          %v1155 = vpop.xlane.xlu0 %1154
          %1156 = vmax.xlane.f32.xlu0 %v1101
          %v1157 = vpop.xlane.xlu0 %1156
          %1158 = vmax.xlane.f32.xlu0 %v1102
          %v1159 = vpop.xlane.xlu0 %1158
          %1160 = vmax.xlane.f32.xlu0 %v1103
          %v1161 = vpop.xlane.xlu0 %1160
          %1162 = vmax.xlane.f32.xlu0 %v1104
          %v1163 = vpop.xlane.xlu0 %1162
          %1164 = vmax.xlane.f32.xlu0 %v1105
          %v1165 = vpop.xlane.xlu0 %1164
          %1166 = vmax.xlane.f32.xlu0 %v1106
          %v1167 = vpop.xlane.xlu0 %1166
          %1168 = vmax.xlane.f32.xlu0 %v1107
          %v1169 = vpop.xlane.xlu0 %1168
          %1170 = vmax.xlane.f32.xlu0 %v1108
          %v1171 = vpop.xlane.xlu0 %1170
          %1172 = vmax.xlane.f32.xlu0 %v1109
          %v1173 = vpop.xlane.xlu0 %1172
          %v1174 = vsub.f32 %v1078, %v1111
          %v1175 = vsub.f32 %v1079, %v1113
          %v1176 = vsub.f32 %v1080, %v1115
          %v1177 = vsub.f32 %v1081, %v1117
          %v1178 = vsub.f32 %v1082, %v1119
          %v1179 = vsub.f32 %v1083, %v1121
          %v1180 = vsub.f32 %v1084, %v1123
          %v1181 = vsub.f32 %v1085, %v1125
          %v1182 = vsub.f32 %v1086, %v1127
          %v1183 = vsub.f32 %v1087, %v1129
          %v1184 = vsub.f32 %v1088, %v1131
          %v1185 = vsub.f32 %v1089, %v1133
          %v1186 = vsub.f32 %v1090, %v1135
          %v1187 = vsub.f32 %v1091, %v1137
          %v1188 = vsub.f32 %v1092, %v1139
          %v1189 = vsub.f32 %v1093, %v1141
          %v1190 = vsub.f32 %v1094, %v1143
          %v1191 = vsub.f32 %v1095, %v1145
          %v1192 = vsub.f32 %v1096, %v1147
          %v1193 = vsub.f32 %v1097, %v1149
          %v1194 = vsub.f32 %v1098, %v1151
          %v1195 = vsub.f32 %v1099, %v1153
          %v1196 = vsub.f32 %v1100, %v1155
          %v1197 = vsub.f32 %v1101, %v1157
          %v1198 = vsub.f32 %v1102, %v1159
          %v1199 = vsub.f32 %v1103, %v1161
          %v1200 = vsub.f32 %v1104, %v1163
          %v1201 = vsub.f32 %v1105, %v1165
          %v1202 = vsub.f32 %v1106, %v1167
          %v1203 = vsub.f32 %v1107, %v1169
          %v1204 = vsub.f32 %v1108, %v1171
          %v1205 = vsub.f32 %v1109, %v1173
          %v1206 = vmul.f32 %v1174, 1.442695
          %v1207 = vpow.pop %v1206
          %v1208 = vmul.f32 %v1175, 1.442695
          %v1209 = vpow.pop %v1208
          %v1210 = vmul.f32 %v1176, 1.442695
          %v1211 = vpow.pop %v1210
          %v1212 = vmul.f32 %v1177, 1.442695
          %v1213 = vpow.pop %v1212
          %v1214 = vmul.f32 %v1178, 1.442695
          %v1215 = vpow.pop %v1214
          %v1216 = vmul.f32 %v1179, 1.442695
          %v1217 = vpow.pop %v1216
          %v1218 = vmul.f32 %v1180, 1.442695
          %v1219 = vpow.pop %v1218
          %v1220 = vmul.f32 %v1181, 1.442695
          %v1221 = vpow.pop %v1220
          %v1222 = vmul.f32 %v1182, 1.442695
          %v1223 = vpow.pop %v1222
          %v1224 = vmul.f32 %v1183, 1.442695
          %v1225 = vpow.pop %v1224
          %v1226 = vmul.f32 %v1184, 1.442695
          %v1227 = vpow.pop %v1226
          %v1228 = vmul.f32 %v1185, 1.442695
          %v1229 = vpow.pop %v1228
          %v1230 = vmul.f32 %v1186, 1.442695
          %v1231 = vpow.pop %v1230
          %v1232 = vmul.f32 %v1187, 1.442695
          %v1233 = vpow.pop %v1232
          %v1234 = vmul.f32 %v1188, 1.442695
          %v1235 = vpow.pop %v1234
          %v1236 = vmul.f32 %v1189, 1.442695
          %v1237 = vpow.pop %v1236
          %v1238 = vmul.f32 %v1190, 1.442695
          %v1239 = vpow.pop %v1238
          %v1240 = vmul.f32 %v1191, 1.442695
          %v1241 = vpow.pop %v1240
          %v1242 = vmul.f32 %v1192, 1.442695
          %v1243 = vpow.pop %v1242
          %v1244 = vmul.f32 %v1193, 1.442695
          %v1245 = vpow.pop %v1244
          %v1246 = vmul.f32 %v1194, 1.442695
          %v1247 = vpow.pop %v1246
          %v1248 = vmul.f32 %v1195, 1.442695
          %v1249 = vpow.pop %v1248
          %v1250 = vmul.f32 %v1196, 1.442695
          %v1251 = vpow.pop %v1250
          %v1252 = vmul.f32 %v1197, 1.442695
          %v1253 = vpow.pop %v1252
          %v1254 = vmul.f32 %v1198, 1.442695
          %v1255 = vpow.pop %v1254
          %v1256 = vmul.f32 %v1199, 1.442695
          %v1257 = vpow.pop %v1256
          %v1258 = vmul.f32 %v1200, 1.442695
          %v1259 = vpow.pop %v1258
          %v1260 = vmul.f32 %v1201, 1.442695
          %v1261 = vpow.pop %v1260
          %v1262 = vmul.f32 %v1202, 1.442695
          %v1263 = vpow.pop %v1262
          %v1264 = vmul.f32 %v1203, 1.442695
          %v1265 = vpow.pop %v1264
          %v1266 = vmul.f32 %v1204, 1.442695
          %v1267 = vpow.pop %v1266
          %v1268 = vmul.f32 %v1205, 1.442695
          %v1269 = vpow.pop %v1268
          %1270 = vadd.xlane.f32.xlu0 %v1207
          %v1271 = vpop.xlane.xlu0 %1270
          %1272 = vadd.xlane.f32.xlu0 %v1209
          %v1273 = vpop.xlane.xlu0 %1272
          %1274 = vadd.xlane.f32.xlu0 %v1211
          %v1275 = vpop.xlane.xlu0 %1274
          %1276 = vadd.xlane.f32.xlu0 %v1213
          %v1277 = vpop.xlane.xlu0 %1276
          %1278 = vadd.xlane.f32.xlu0 %v1215
          %v1279 = vpop.xlane.xlu0 %1278
          %1280 = vadd.xlane.f32.xlu0 %v1217
          %v1281 = vpop.xlane.xlu0 %1280
          %1282 = vadd.xlane.f32.xlu0 %v1219
          %v1283 = vpop.xlane.xlu0 %1282
          %1284 = vadd.xlane.f32.xlu0 %v1221
          %v1285 = vpop.xlane.xlu0 %1284
          %1286 = vadd.xlane.f32.xlu0 %v1223
          %v1287 = vpop.xlane.xlu0 %1286
          %1288 = vadd.xlane.f32.xlu0 %v1225
          %v1289 = vpop.xlane.xlu0 %1288
          %1290 = vadd.xlane.f32.xlu0 %v1227
          %v1291 = vpop.xlane.xlu0 %1290
          %1292 = vadd.xlane.f32.xlu0 %v1229
          %v1293 = vpop.xlane.xlu0 %1292
          %1294 = vadd.xlane.f32.xlu0 %v1231
          %v1295 = vpop.xlane.xlu0 %1294
          %1296 = vadd.xlane.f32.xlu0 %v1233
          %v1297 = vpop.xlane.xlu0 %1296
          %1298 = vadd.xlane.f32.xlu0 %v1235
          %v1299 = vpop.xlane.xlu0 %1298
          %1300 = vadd.xlane.f32.xlu0 %v1237
          %v1301 = vpop.xlane.xlu0 %1300
          %1302 = vadd.xlane.f32.xlu0 %v1239
          %v1303 = vpop.xlane.xlu0 %1302
          %1304 = vadd.xlane.f32.xlu0 %v1241
          %v1305 = vpop.xlane.xlu0 %1304
          %1306 = vadd.xlane.f32.xlu0 %v1243
          %v1307 = vpop.xlane.xlu0 %1306
          %1308 = vadd.xlane.f32.xlu0 %v1245
          %v1309 = vpop.xlane.xlu0 %1308
          %1310 = vadd.xlane.f32.xlu0 %v1247
          %v1311 = vpop.xlane.xlu0 %1310
          %1312 = vadd.xlane.f32.xlu0 %v1249
          %v1313 = vpop.xlane.xlu0 %1312
          %1314 = vadd.xlane.f32.xlu0 %v1251
          %v1315 = vpop.xlane.xlu0 %1314
          %1316 = vadd.xlane.f32.xlu0 %v1253
          %v1317 = vpop.xlane.xlu0 %1316
          %1318 = vadd.xlane.f32.xlu0 %v1255
          %v1319 = vpop.xlane.xlu0 %1318
          %1320 = vadd.xlane.f32.xlu0 %v1257
          %v1321 = vpop.xlane.xlu0 %1320
          %1322 = vadd.xlane.f32.xlu0 %v1259
          %v1323 = vpop.xlane.xlu0 %1322
          %1324 = vadd.xlane.f32.xlu0 %v1261
          %v1325 = vpop.xlane.xlu0 %1324
          %1326 = vadd.xlane.f32.xlu0 %v1263
          %v1327 = vpop.xlane.xlu0 %1326
          %1328 = vadd.xlane.f32.xlu0 %v1265
          %v1329 = vpop.xlane.xlu0 %1328
          %1330 = vadd.xlane.f32.xlu0 %v1267
          %v1331 = vpop.xlane.xlu0 %1330
          %1332 = vadd.xlane.f32.xlu0 %v1269
          %v1333 = vpop.xlane.xlu0 %1332
          %v1334 = vlog2.pop %v1271
          %v1335 = vmul.f32 %v1334, 0.6931472
          %v1336 = vlog2.pop %v1273
          %v1337 = vmul.f32 %v1336, 0.6931472
          %v1338 = vlog2.pop %v1275
          %v1339 = vmul.f32 %v1338, 0.6931472
          %v1340 = vlog2.pop %v1277
          %v1341 = vmul.f32 %v1340, 0.6931472
          %v1342 = vlog2.pop %v1279
          %v1343 = vmul.f32 %v1342, 0.6931472
          %v1344 = vlog2.pop %v1281
          %v1345 = vmul.f32 %v1344, 0.6931472
          %v1346 = vlog2.pop %v1283
          %v1347 = vmul.f32 %v1346, 0.6931472
          %v1348 = vlog2.pop %v1285
          %v1349 = vmul.f32 %v1348, 0.6931472
          %v1350 = vlog2.pop %v1287
          %v1351 = vmul.f32 %v1350, 0.6931472
          %v1352 = vlog2.pop %v1289
          %v1353 = vmul.f32 %v1352, 0.6931472
          %v1354 = vlog2.pop %v1291
          %v1355 = vmul.f32 %v1354, 0.6931472
          %v1356 = vlog2.pop %v1293
          %v1357 = vmul.f32 %v1356, 0.6931472
          %v1358 = vlog2.pop %v1295
          %v1359 = vmul.f32 %v1358, 0.6931472
          %v1360 = vlog2.pop %v1297
          %v1361 = vmul.f32 %v1360, 0.6931472
          %v1362 = vlog2.pop %v1299
          %v1363 = vmul.f32 %v1362, 0.6931472
          %v1364 = vlog2.pop %v1301
          %v1365 = vmul.f32 %v1364, 0.6931472
          %v1366 = vlog2.pop %v1303
          %v1367 = vmul.f32 %v1366, 0.6931472
          %v1368 = vlog2.pop %v1305
          %v1369 = vmul.f32 %v1368, 0.6931472
          %v1370 = vlog2.pop %v1307
          %v1371 = vmul.f32 %v1370, 0.6931472
          %v1372 = vlog2.pop %v1309
          %v1373 = vmul.f32 %v1372, 0.6931472
          %v1374 = vlog2.pop %v1311
          %v1375 = vmul.f32 %v1374, 0.6931472
          %v1376 = vlog2.pop %v1313
          %v1377 = vmul.f32 %v1376, 0.6931472
          %v1378 = vlog2.pop %v1315
          %v1379 = vmul.f32 %v1378, 0.6931472
          %v1380 = vlog2.pop %v1317
          %v1381 = vmul.f32 %v1380, 0.6931472
          %v1382 = vlog2.pop %v1319
          %v1383 = vmul.f32 %v1382, 0.6931472
          %v1384 = vlog2.pop %v1321
          %v1385 = vmul.f32 %v1384, 0.6931472
          %v1386 = vlog2.pop %v1323
          %v1387 = vmul.f32 %v1386, 0.6931472
          %v1388 = vlog2.pop %v1325
          %v1389 = vmul.f32 %v1388, 0.6931472
          %v1390 = vlog2.pop %v1327
          %v1391 = vmul.f32 %v1390, 0.6931472
          %v1392 = vlog2.pop %v1329
          %v1393 = vmul.f32 %v1392, 0.6931472
          %v1394 = vlog2.pop %v1331
          %v1395 = vmul.f32 %v1394, 0.6931472
          %v1396 = vlog2.pop %v1333
          %v1397 = vmul.f32 %v1396, 0.6931472
          %v1398 = vsub.f32 %v1174, %v1335
          %v1399 = vsub.f32 %v1175, %v1337
          %v1400 = vsub.f32 %v1176, %v1339
          %v1401 = vsub.f32 %v1177, %v1341
          %v1402 = vsub.f32 %v1178, %v1343
          %v1403 = vsub.f32 %v1179, %v1345
          %v1404 = vsub.f32 %v1180, %v1347
          %v1405 = vsub.f32 %v1181, %v1349
          %v1406 = vsub.f32 %v1182, %v1351
          %v1407 = vsub.f32 %v1183, %v1353
          %v1408 = vsub.f32 %v1184, %v1355
          %v1409 = vsub.f32 %v1185, %v1357
          %v1410 = vsub.f32 %v1186, %v1359
          %v1411 = vsub.f32 %v1187, %v1361
          %v1412 = vsub.f32 %v1188, %v1363
          %v1413 = vsub.f32 %v1189, %v1365
          %v1414 = vsub.f32 %v1190, %v1367
          %v1415 = vsub.f32 %v1191, %v1369
          %v1416 = vsub.f32 %v1192, %v1371
          %v1417 = vsub.f32 %v1193, %v1373
          %v1418 = vsub.f32 %v1194, %v1375
          %v1419 = vsub.f32 %v1195, %v1377
          %v1420 = vsub.f32 %v1196, %v1379
          %v1421 = vsub.f32 %v1197, %v1381
          %v1422 = vsub.f32 %v1198, %v1383
          %v1423 = vsub.f32 %v1199, %v1385
          %v1424 = vsub.f32 %v1200, %v1387
          %v1425 = vsub.f32 %v1201, %v1389
          %v1426 = vsub.f32 %v1202, %v1391
          %v1427 = vsub.f32 %v1203, %v1393
          %v1428 = vsub.f32 %v1204, %v1395
          %v1429 = vsub.f32 %v1205, %v1397
          %1430 = vst [vmem:[%s371] sm:$0xff] %v1398
          %1431 = vst [vmem:[%s371 + $0x8] sm:$0xff] %v1399
          %1432 = vst [vmem:[%s371 + $0x10] sm:$0xff] %v1400
          %1433 = vst [vmem:[%s371 + $0x18] sm:$0xff] %v1401
          %1434 = vst [vmem:[%s371 + $0x20] sm:$0xff] %v1402
          %1435 = vst [vmem:[%s371 + $0x28] sm:$0xff] %v1403
          %1436 = vst [vmem:[%s371 + $0x30] sm:$0xff] %v1404
          %1437 = vst [vmem:[%s371 + $0x38] sm:$0xff] %v1405
          %1438 = vst [vmem:[%s371 + $0x40] sm:$0xff] %v1406
          %1439 = vst [vmem:[%s371 + $0x48] sm:$0xff] %v1407
          %1440 = vst [vmem:[%s371 + $0x50] sm:$0xff] %v1408
          %1441 = vst [vmem:[%s371 + $0x58] sm:$0xff] %v1409
          %1442 = vst [vmem:[%s371 + $0x60] sm:$0xff] %v1410
          %1443 = vst [vmem:[%s371 + $0x68] sm:$0xff] %v1411
          %1444 = vst [vmem:[%s371 + $0x70] sm:$0xff] %v1412
          %1445 = vst [vmem:[%s371 + $0x78] sm:$0xff] %v1413
          %1446 = vst [vmem:[%s371 + $0x80] sm:$0xff] %v1414
          %1447 = vst [vmem:[%s371 + $0x88] sm:$0xff] %v1415
          %1448 = vst [vmem:[%s371 + $0x90] sm:$0xff] %v1416
          %1449 = vst [vmem:[%s371 + $0x98] sm:$0xff] %v1417
          %1450 = vst [vmem:[%s371 + $0xa0] sm:$0xff] %v1418
          %1451 = vst [vmem:[%s371 + $0xa8] sm:$0xff] %v1419
          %1452 = vst [vmem:[%s371 + $0xb0] sm:$0xff] %v1420
          %1453 = vst [vmem:[%s371 + $0xb8] sm:$0xff] %v1421
          %1454 = vst [vmem:[%s371 + $0xc0] sm:$0xff] %v1422
          %1455 = vst [vmem:[%s371 + $0xc8] sm:$0xff] %v1423
          %1456 = vst [vmem:[%s371 + $0xd0] sm:$0xff] %v1424
          %1457 = vst [vmem:[%s371 + $0xd8] sm:$0xff] %v1425
          %1458 = vst [vmem:[%s371 + $0xe0] sm:$0xff] %v1426
          %1459 = vst [vmem:[%s371 + $0xe8] sm:$0xff] %v1427
          %1460 = vst [vmem:[%s371 + $0xf0] sm:$0xff] %v1428
          %1461 = vst [vmem:[%s371 + $0xf8] sm:$0xff] %v1429
        $region78: #{gcn_forward.7} parent=65 // pred_fallthru
          _
        %s1462 = smul.u32 32, %s18
        %p1463 = scmp.lt.s32.totalorder %s1462, 63
        %s1464 = scalar_select %p1463, %s1462, 63
        %s1465 = smul.addr %s1464, 8
        %s1466 = scalar_lea.vmem %s3, %s1465
        // Predicated region
        $region79: #{gcn_forward.7} parent=65 // pred_check
          %p1467 = pneg %p119
        $region80: #{gcn_forward.7} parent=65 // pred_check_branch
          %1469 = sbr.rel (%p1467) target = $region82
        $region81: #{gcn_forward.7} parent=65 // pred_region
          %s1470 = smul.u32 32, %s18
        $region82: #{gcn_forward.7} parent=65 // pred_fallthru
          _
      $region66: #{gcn_forward.7} parent=5 // pred_fallthru
        _
      %p1471 = scmp.le.s32.totalorder 2, %s9
      // Predicated region
      $region83: #{gcn_forward.7} parent=5 // pred_check
        %p1472 = pneg %p1471
      $region84: #{gcn_forward.7} parent=5 // pred_check_branch
        %1474 = sbr.rel (%p1472) target = $region86
      $region85: #{gcn_forward.7} parent=5 // pred_region
        %s1475 = ssub.s32 %s9, 2
        // Predicated region
        $region87: #{gcn_forward.7} parent=85 // pred_check
          %p1476 = pneg %p125
        $region88: #{gcn_forward.7} parent=85 // pred_check_branch
          %1478 = sbr.rel (%p1476) target = $region90
        $region89: #{gcn_forward.7} parent=85 // pred_region
          %s1479 = smul.u32 32, %s20
          %p1480 = scmp.lt.s32.totalorder %s1479, 63
          %s1481 = scalar_select %p1480, %s1479, 63
          %s1482 = smul.addr %s1481, 8
          %s1483 = scalar_lea.vmem %s3, %s1482
        $region90: #{gcn_forward.7} parent=85 // pred_fallthru
          _
      $region86: #{gcn_forward.7} parent=5 // pred_fallthru
        _
    $region6: #{gcn_forward.7} parent=1 // loop_footer
      %s13 = sadd.s32 1, %s9
    $region7: #{gcn_forward.7} parent=1 // loop_footer_branch
      %8 = sbr.rel target = $region3
    $region8: #{gcn_forward.7} parent=1 // loop_exit
      _

// kernel: gcn_forward.5
$region0: #{gcn_forward.5}
  #allocation0 [shape = 'u32[]', space=smem, size = 0x4, offset = 0x4, fixed_abs, tag = 'smem constant byte address 0x4 - core index']
  #allocation1 [shape = 'u32[72,128]{1,0:T(1,128)}', space=vmem, size = 0x9000, scoped, tag = 'internal scratch']
  #allocation2 [shape = 'f32[256,128]{1,0:T(8,128)}', space=vmem, size = 0x20000, scoped, tag = 'scratch operand']
  %s0 = inlined_call_operand.vmem [shape: bf16[512,512], index: 0, kind: input, shape index: {}]
  %s1 = inlined_call_operand.vmem [shape: bf16[512,128], index: 1, kind: input, shape index: {}]
  %s2 = inlined_call_operand.vmem [shape: f32[1,128], index: 2, kind: input, shape index: {}]
  %s3 = inlined_call_operand.vmem [shape: bf16[512,128], index: 3, kind: output, shape index: {}]
  %s4 = sld [smem:[#allocation0]]
  $region91: #{gcn_forward.5} parent=0
    _
  %s6 = ssub.s32 1, %s4
  %s7 = scalar_select 0, %s6, %s4
  $region1: #{gcn_forward.5} parent=0
    #allocation3 [shape = 'u8[262144]{0}', space=vmem, size = 0x40000, scoped, tag = 'input window, operand 0']
    loop: start=0, step=1, limit=6
    $region2: #{gcn_forward.5} parent=1 // loop_pre_header
      _
    $region3: #{gcn_forward.5} parent=1 // loop_header
      %s9 = sphi 0, %s13
      %p10 = scmp.ge.s32.totalorder %s9, 6
      %s16 = sphi 0, %s28
      %s17 = sphi 0, %s24
      %s18 = sphi 0, %s16
      %s19 = sphi 0, %s17
      %s20 = sphi 0, %s18
      %s21 = sphi 0, %s19
      %s33 = sphi 0, %s35
      %s36 = sphi 0, %s33
      %s37 = sphi 0, %s36
      %s53 = sphi 0, %s37
      %s59 = sphi 0, %s61
      %s62 = sphi 0, %s59
      %s63 = sphi 0, %s62
      %s79 = sphi 0, %s63
      %s83 = sphi 0, %s83
      %s85 = sphi 0, %s83
      %s86 = sphi 0, %s85
      %s100 = sphi 0, %s86
      %s106 = sphi 0, %s108
      %s109 = sphi 0, %s106
      %s110 = sphi 0, %s109
      %s126 = sphi 0, %s110
    $region4: #{gcn_forward.5} parent=1 // loop_header_branch
      %12 = sbr.rel (%p10) target = $region8
    $region5: #{gcn_forward.5} parent=1 // loop_body
      %s14 = ssub.s32 %s9, 1
      %s15 = ssub.s32 %s9, 2
      %s22 = sadd.s32 1, %s17
      %p23 = scmp.ge.s32.totalorder %s22, 2
      %s24 = scalar_select %p23, 0, %s22
      %s25 = sadd.s32 1, %s16
      %s26 = scalar_select %p23, %s25, %s16
      %p27 = scmp.ge.s32.totalorder %s26, 2
      %s28 = scalar_select %p27, 0, %s26
      %s29 = ssub.s32 %s16, %s28
      %s30 = ssub.s32 %s17, %s24
      %s31 = sor.u32 %s29, %s30
      %p32 = scmp.eq.s32.totalorder %s31, 0
      %s34 = sadd.s32 %s33, 1
      %s35 = scalar_select %p32, %s33, %s34
      %p38 = pneg %p32
      %p39 = scmp.eq.s32.totalorder %s9, 3
      %p40 = por %p38, %p39
      %p41 = scmp.ne.s32.totalorder %s33, %s36
      %p42 = scmp.eq.s32.totalorder %s9, 0
      %p43 = por %p41, %p42
      %p44 = scmp.ne.s32.totalorder %s33, %s36
      %p45 = scmp.eq.s32.totalorder %s14, 3
      %p46 = por %p44, %p45
      %p47 = scmp.ne.s32.totalorder %s36, %s37
      %p48 = scmp.eq.s32.totalorder %s14, 0
      %p49 = por %p47, %p48
      %p50 = scmp.ne.s32.totalorder %s36, %s37
      %p51 = scmp.eq.s32.totalorder %s15, 3
      %p52 = por %p50, %p51
      %p54 = scmp.ne.s32.totalorder %s37, %s53
      %p55 = scmp.eq.s32.totalorder %s15, 0
      %p56 = por %p54, %p55
      %s57 = ssub.s32 %s17, %s24
      %p58 = scmp.eq.s32.totalorder %s57, 0
      %s60 = sadd.s32 %s59, 1
      %s61 = scalar_select %p58, %s59, %s60
      %p64 = pneg %p58
      %p65 = scmp.eq.s32.totalorder %s9, 3
      %p66 = por %p64, %p65
      %p67 = scmp.ne.s32.totalorder %s59, %s62
      %p68 = scmp.eq.s32.totalorder %s9, 0
      %p69 = por %p67, %p68
      %p70 = scmp.ne.s32.totalorder %s59, %s62
      %p71 = scmp.eq.s32.totalorder %s14, 3
      %p72 = por %p70, %p71
      %p73 = scmp.ne.s32.totalorder %s62, %s63
      %p74 = scmp.eq.s32.totalorder %s14, 0
      %p75 = por %p73, %p74
      %p76 = scmp.ne.s32.totalorder %s62, %s63
      %p77 = scmp.eq.s32.totalorder %s15, 3
      %p78 = por %p76, %p77
      %p80 = scmp.ne.s32.totalorder %s63, %s79
      %p81 = scmp.eq.s32.totalorder %s15, 0
      %p82 = por %p80, %p81
      %s84 = sadd.s32 %s83, 1
      %p87 = scmp.eq.s32.totalorder %s9, 3
      %p88 = scmp.ne.s32.totalorder %s83, %s85
      %p89 = scmp.eq.s32.totalorder %s9, 0
      %p90 = por %p88, %p89
      %p91 = scmp.ne.s32.totalorder %s83, %s85
      %p92 = scmp.eq.s32.totalorder %s14, 3
      %p93 = por %p91, %p92
      %p94 = scmp.ne.s32.totalorder %s85, %s86
      %p95 = scmp.eq.s32.totalorder %s14, 0
      %p96 = por %p94, %p95
      %p97 = scmp.ne.s32.totalorder %s85, %s86
      %p98 = scmp.eq.s32.totalorder %s15, 3
      %p99 = por %p97, %p98
      %p101 = scmp.ne.s32.totalorder %s86, %s100
      %p102 = scmp.eq.s32.totalorder %s15, 0
      %p103 = por %p101, %p102
      %s104 = ssub.s32 %s16, %s28
      %p105 = scmp.eq.s32.totalorder %s104, 0
      %s107 = sadd.s32 %s106, 1
      %s108 = scalar_select %p105, %s106, %s107
      %p111 = pneg %p105
      %p112 = scmp.eq.s32.totalorder %s9, 3
      %p113 = por %p111, %p112
      %p114 = scmp.ne.s32.totalorder %s106, %s109
      %p115 = scmp.eq.s32.totalorder %s9, 0
      %p116 = por %p114, %p115
      %p117 = scmp.ne.s32.totalorder %s106, %s109
      %p118 = scmp.eq.s32.totalorder %s14, 3
      %p119 = por %p117, %p118
      %p120 = scmp.ne.s32.totalorder %s109, %s110
      %p121 = scmp.eq.s32.totalorder %s14, 0
      %p122 = por %p120, %p121
      %p123 = scmp.ne.s32.totalorder %s109, %s110
      %p124 = scmp.eq.s32.totalorder %s15, 3
      %p125 = por %p123, %p124
      %p127 = scmp.ne.s32.totalorder %s110, %s126
      %p128 = scmp.eq.s32.totalorder %s15, 0
      %p129 = por %p127, %p128
      %p130 = scmp.le.s32.totalorder 1, %s9
      %p131 = scmp.lt.s32.totalorder %s9, 5
      %p132 = pnand %p130, %p131
      %p133 = pneg %p132
      // Predicated region
      $region9: #{gcn_forward.5} parent=5 // pred_check
        _
      $region10: #{gcn_forward.5} parent=5 // pred_check_branch
        %135 = sbr.rel (%p132) target = $region12
      $region11: #{gcn_forward.5} parent=5 // pred_region
        %s136 = ssub.s32 %s9, 1
        // Predicated region
        $region13: #{gcn_forward.5} parent=11 // pred_check
          %p137 = pneg %p96
        $region14: #{gcn_forward.5} parent=11 // pred_check_branch
          %139 = sbr.rel (%p137) target = $region16
        $region15: #{gcn_forward.5} parent=11 // pred_region
          _
        $region16: #{gcn_forward.5} parent=11 // pred_fallthru
          _
      $region12: #{gcn_forward.5} parent=5 // pred_fallthru
        _
      %p140 = scmp.lt.s32.totalorder %s9, 4
      // Predicated region
      $region17: #{gcn_forward.5} parent=5 // pred_check
        %p141 = pneg %p140
      $region18: #{gcn_forward.5} parent=5 // pred_check_branch
        %143 = sbr.rel (%p141) target = $region20
      $region19: #{gcn_forward.5} parent=5 // pred_region
        // Predicated region
        $region21: #{gcn_forward.5} parent=19 // pred_check
          %p144 = pneg %p43
        $region22: #{gcn_forward.5} parent=19 // pred_check_branch
          %146 = sbr.rel (%p144) target = $region24
        $region23: #{gcn_forward.5} parent=19 // pred_region
          %s147 = sand.u32 %s33, 1
          %s148 = sand.u32 %s33, 1
          %s149 = smul.addr %s148, 256
          %s150 = scalar_lea.vmem [#allocation3], %s149
          %s151 = smul.u32 32, %s16
          %s152 = smul.u32 2, %s17
          %s153 = smul.addr %s151, 4
          %s154 = sadd.s32 %s152, %s153
          %s155 = smul.addr %s154, 4
          %s156 = scalar_lea.vmem %s0, %s155
          // Predicated region
          $region25: #{gcn_forward.5} parent=23 // pred_check
            _
          $region26: #{gcn_forward.5} parent=23 // pred_check_branch
            %158 = sbr.rel (0) target = $region28
          $region27: #{gcn_forward.5} parent=23 // pred_region
            // Predicated region
            $region29: #{gcn_forward.5} parent=27 // pred_check
              _
            $region30: #{gcn_forward.5} parent=27 // pred_check_branch
              %160 = sbr.rel (0) target = $region32
            $region31: #{gcn_forward.5} parent=27 // pred_region
              // Predicated region
              $region44: #{gcn_forward.5} parent=31 // pred_check
                _
              $region45: #{gcn_forward.5} parent=31 // pred_check_branch
                %238 = sbr.rel (0) target = $region47
              $region46: #{gcn_forward.5} parent=31 // pred_region
                loop: start=0, step=1, limit=1
                $region48: #{gcn_forward.5} parent=46 // loop_pre_header
                  _
                $region49: #{gcn_forward.5} parent=46 // loop_header
                  %s240 = sphi 0, %s244
                  %p241 = scmp.ge.s32.totalorder %s240, 1
                  %s245 = sphi %s156, %s156
                  %s246 = sphi %s150, %s150
                $region50: #{gcn_forward.5} parent=46 // loop_header_branch
                  %243 = sbr.rel (%p241) target = $region54
                $region51: #{gcn_forward.5} parent=46 // loop_body
                  %v247 = vld [vmem:[%s245] sm:$0xff]
                  %248 = vst [vmem:[%s246] sm:$0xff] %v247
                  %v249 = vld [vmem:[%s245 + $0x10] sm:$0xff]
                  %250 = vst [vmem:[%s246 + $0x8] sm:$0xff] %v249
                  %v251 = vld [vmem:[%s245 + $0x20] sm:$0xff]
                  %252 = vst [vmem:[%s246 + $0x10] sm:$0xff] %v251
                  %v253 = vld [vmem:[%s245 + $0x30] sm:$0xff]
                  %254 = vst [vmem:[%s246 + $0x18] sm:$0xff] %v253
                  %v255 = vld [vmem:[%s245 + $0x40] sm:$0xff]
                  %256 = vst [vmem:[%s246 + $0x20] sm:$0xff] %v255
                  %v257 = vld [vmem:[%s245 + $0x50] sm:$0xff]
                  %258 = vst [vmem:[%s246 + $0x28] sm:$0xff] %v257
                  %v259 = vld [vmem:[%s245 + $0x60] sm:$0xff]
                  %260 = vst [vmem:[%s246 + $0x30] sm:$0xff] %v259
                  %v261 = vld [vmem:[%s245 + $0x70] sm:$0xff]
                  %262 = vst [vmem:[%s246 + $0x38] sm:$0xff] %v261
                  %v263 = vld [vmem:[%s245 + $0x80] sm:$0xff]
                  %264 = vst [vmem:[%s246 + $0x40] sm:$0xff] %v263
                  %v265 = vld [vmem:[%s245 + $0x90] sm:$0xff]
                  %266 = vst [vmem:[%s246 + $0x48] sm:$0xff] %v265
                  %v267 = vld [vmem:[%s245 + $0xa0] sm:$0xff]
                  %268 = vst [vmem:[%s246 + $0x50] sm:$0xff] %v267
                  %v269 = vld [vmem:[%s245 + $0xb0] sm:$0xff]
                  %270 = vst [vmem:[%s246 + $0x58] sm:$0xff] %v269
                  %v271 = vld [vmem:[%s245 + $0xc0] sm:$0xff]
                  %272 = vst [vmem:[%s246 + $0x60] sm:$0xff] %v271
                  %v273 = vld [vmem:[%s245 + $0xd0] sm:$0xff]
                  %274 = vst [vmem:[%s246 + $0x68] sm:$0xff] %v273
                  %v275 = vld [vmem:[%s245 + $0xe0] sm:$0xff]
                  %276 = vst [vmem:[%s246 + $0x70] sm:$0xff] %v275
                  %v277 = vld [vmem:[%s245 + $0xf0] sm:$0xff]
                  %278 = vst [vmem:[%s246 + $0x78] sm:$0xff] %v277
                  %v279 = vld [vmem:[%s245 + $0x100] sm:$0xff]
                  %280 = vst [vmem:[%s246 + $0x80] sm:$0xff] %v279
                  %v281 = vld [vmem:[%s245 + $0x110] sm:$0xff]
                  %282 = vst [vmem:[%s246 + $0x88] sm:$0xff] %v281
                  %v283 = vld [vmem:[%s245 + $0x120] sm:$0xff]
                  %284 = vst [vmem:[%s246 + $0x90] sm:$0xff] %v283
                  %v285 = vld [vmem:[%s245 + $0x130] sm:$0xff]
                  %286 = vst [vmem:[%s246 + $0x98] sm:$0xff] %v285
                  %v287 = vld [vmem:[%s245 + $0x140] sm:$0xff]
                  %288 = vst [vmem:[%s246 + $0xa0] sm:$0xff] %v287
                  %v289 = vld [vmem:[%s245 + $0x150] sm:$0xff]
                  %290 = vst [vmem:[%s246 + $0xa8] sm:$0xff] %v289
                  %v291 = vld [vmem:[%s245 + $0x160] sm:$0xff]
                  %292 = vst [vmem:[%s246 + $0xb0] sm:$0xff] %v291
                  %v293 = vld [vmem:[%s245 + $0x170] sm:$0xff]
                  %294 = vst [vmem:[%s246 + $0xb8] sm:$0xff] %v293
                  %v295 = vld [vmem:[%s245 + $0x180] sm:$0xff]
                  %296 = vst [vmem:[%s246 + $0xc0] sm:$0xff] %v295
                  %v297 = vld [vmem:[%s245 + $0x190] sm:$0xff]
                  %298 = vst [vmem:[%s246 + $0xc8] sm:$0xff] %v297
                  %v299 = vld [vmem:[%s245 + $0x1a0] sm:$0xff]
                  %300 = vst [vmem:[%s246 + $0xd0] sm:$0xff] %v299
                  %v301 = vld [vmem:[%s245 + $0x1b0] sm:$0xff]
                  %302 = vst [vmem:[%s246 + $0xd8] sm:$0xff] %v301
                  %v303 = vld [vmem:[%s245 + $0x1c0] sm:$0xff]
                  %304 = vst [vmem:[%s246 + $0xe0] sm:$0xff] %v303
                  %v305 = vld [vmem:[%s245 + $0x1d0] sm:$0xff]
                  %306 = vst [vmem:[%s246 + $0xe8] sm:$0xff] %v305
                  %v307 = vld [vmem:[%s245 + $0x1e0] sm:$0xff]
                  %308 = vst [vmem:[%s246 + $0xf0] sm:$0xff] %v307
                  %v309 = vld [vmem:[%s245 + $0x1f0] sm:$0xff]
                  %310 = vst [vmem:[%s246 + $0xf8] sm:$0xff] %v309
                $region52: #{gcn_forward.5} parent=46 // loop_footer
                  %s244 = sadd.s32 1, %s240
                $region53: #{gcn_forward.5} parent=46 // loop_footer_branch
                  %239 = sbr.rel target = $region49
                $region54: #{gcn_forward.5} parent=46 // loop_exit
                  _
              $region47: #{gcn_forward.5} parent=31 // pred_fallthru
                _
              // Predicated region
              $region55: #{gcn_forward.5} parent=31 // pred_check
                _
              $region56: #{gcn_forward.5} parent=31 // pred_check_branch
                %312 = sbr.rel target = $region58
              $region57: #{gcn_forward.5} parent=31 // pred_region
                _
              $region58: #{gcn_forward.5} parent=31 // pred_fallthru
                _
            $region32: #{gcn_forward.5} parent=27 // pred_fallthru
              _
            // Predicated region
            $region33: #{gcn_forward.5} parent=27 // pred_check
              _
            $region34: #{gcn_forward.5} parent=27 // pred_check_branch
              %162 = sbr.rel target = $region36
            $region35: #{gcn_forward.5} parent=27 // pred_region
              %s164 = ssub.s32 256, 1
              loop: start=0, step=1, limit=1
              $region37: #{gcn_forward.5} parent=35 // loop_pre_header
                _
              $region38: #{gcn_forward.5} parent=35 // loop_header
                %s166 = sphi 0, %s170
                %p167 = scmp.ge.s32.totalorder %s166, 1
                %s171 = sphi %s156, %s156
                %s172 = sphi %s150, %s150
              $region39: #{gcn_forward.5} parent=35 // loop_header_branch
                %169 = sbr.rel (%p167) target = $region43
              $region40: #{gcn_forward.5} parent=35 // loop_body
                %v173 = vld [vmem:[%s171] sm:%s164]
                %174 = vst [vmem:[%s172] sm:%s164] %v173
                %v175 = vld [vmem:[%s171 + $0x10] sm:%s164]
                %176 = vst [vmem:[%s172 + $0x8] sm:%s164] %v175
                %v177 = vld [vmem:[%s171 + $0x20] sm:%s164]
                %178 = vst [vmem:[%s172 + $0x10] sm:%s164] %v177
                %v179 = vld [vmem:[%s171 + $0x30] sm:%s164]
                %180 = vst [vmem:[%s172 + $0x18] sm:%s164] %v179
                %v181 = vld [vmem:[%s171 + $0x40] sm:%s164]
                %182 = vst [vmem:[%s172 + $0x20] sm:%s164] %v181
                %v183 = vld [vmem:[%s171 + $0x50] sm:%s164]
                %184 = vst [vmem:[%s172 + $0x28] sm:%s164] %v183
                %v185 = vld [vmem:[%s171 + $0x60] sm:%s164]
                %186 = vst [vmem:[%s172 + $0x30] sm:%s164] %v185
                %v187 = vld [vmem:[%s171 + $0x70] sm:%s164]
                %188 = vst [vmem:[%s172 + $0x38] sm:%s164] %v187
                %v189 = vld [vmem:[%s171 + $0x80] sm:%s164]
                %190 = vst [vmem:[%s172 + $0x40] sm:%s164] %v189
                %v191 = vld [vmem:[%s171 + $0x90] sm:%s164]
                %192 = vst [vmem:[%s172 + $0x48] sm:%s164] %v191
                %v193 = vld [vmem:[%s171 + $0xa0] sm:%s164]
                %194 = vst [vmem:[%s172 + $0x50] sm:%s164] %v193
                %v195 = vld [vmem:[%s171 + $0xb0] sm:%s164]
                %196 = vst [vmem:[%s172 + $0x58] sm:%s164] %v195
                %v197 = vld [vmem:[%s171 + $0xc0] sm:%s164]
                %198 = vst [vmem:[%s172 + $0x60] sm:%s164] %v197
                %v199 = vld [vmem:[%s171 + $0xd0] sm:%s164]
                %200 = vst [vmem:[%s172 + $0x68] sm:%s164] %v199
                %v201 = vld [vmem:[%s171 + $0xe0] sm:%s164]
                %202 = vst [vmem:[%s172 + $0x70] sm:%s164] %v201
                %v203 = vld [vmem:[%s171 + $0xf0] sm:%s164]
                %204 = vst [vmem:[%s172 + $0x78] sm:%s164] %v203
                %v205 = vld [vmem:[%s171 + $0x100] sm:%s164]
                %206 = vst [vmem:[%s172 + $0x80] sm:%s164] %v205
                %v207 = vld [vmem:[%s171 + $0x110] sm:%s164]
                %208 = vst [vmem:[%s172 + $0x88] sm:%s164] %v207
                %v209 = vld [vmem:[%s171 + $0x120] sm:%s164]
                %210 = vst [vmem:[%s172 + $0x90] sm:%s164] %v209
                %v211 = vld [vmem:[%s171 + $0x130] sm:%s164]
                %212 = vst [vmem:[%s172 + $0x98] sm:%s164] %v211
                %v213 = vld [vmem:[%s171 + $0x140] sm:%s164]
                %214 = vst [vmem:[%s172 + $0xa0] sm:%s164] %v213
                %v215 = vld [vmem:[%s171 + $0x150] sm:%s164]
                %216 = vst [vmem:[%s172 + $0xa8] sm:%s164] %v215
                %v217 = vld [vmem:[%s171 + $0x160] sm:%s164]
                %218 = vst [vmem:[%s172 + $0xb0] sm:%s164] %v217
                %v219 = vld [vmem:[%s171 + $0x170] sm:%s164]
                %220 = vst [vmem:[%s172 + $0xb8] sm:%s164] %v219
                %v221 = vld [vmem:[%s171 + $0x180] sm:%s164]
                %222 = vst [vmem:[%s172 + $0xc0] sm:%s164] %v221
                %v223 = vld [vmem:[%s171 + $0x190] sm:%s164]
                %224 = vst [vmem:[%s172 + $0xc8] sm:%s164] %v223
                %v225 = vld [vmem:[%s171 + $0x1a0] sm:%s164]
                %226 = vst [vmem:[%s172 + $0xd0] sm:%s164] %v225
                %v227 = vld [vmem:[%s171 + $0x1b0] sm:%s164]
                %228 = vst [vmem:[%s172 + $0xd8] sm:%s164] %v227
                %v229 = vld [vmem:[%s171 + $0x1c0] sm:%s164]
                %230 = vst [vmem:[%s172 + $0xe0] sm:%s164] %v229
                %v231 = vld [vmem:[%s171 + $0x1d0] sm:%s164]
                %232 = vst [vmem:[%s172 + $0xe8] sm:%s164] %v231
                %v233 = vld [vmem:[%s171 + $0x1e0] sm:%s164]
                %234 = vst [vmem:[%s172 + $0xf0] sm:%s164] %v233
                %v235 = vld [vmem:[%s171 + $0x1f0] sm:%s164]
                %236 = vst [vmem:[%s172 + $0xf8] sm:%s164] %v235
              $region41: #{gcn_forward.5} parent=35 // loop_footer
                %s170 = sadd.s32 1, %s166
              $region42: #{gcn_forward.5} parent=35 // loop_footer_branch
                %165 = sbr.rel target = $region38
              $region43: #{gcn_forward.5} parent=35 // loop_exit
                _
            $region36: #{gcn_forward.5} parent=27 // pred_fallthru
              _
          $region28: #{gcn_forward.5} parent=23 // pred_fallthru
            _
          %313 = vnop
        $region24: #{gcn_forward.5} parent=19 // pred_fallthru
          _
        // Predicated region
        $region59: #{gcn_forward.5} parent=19 // pred_check
          %p314 = pneg %p69
        $region60: #{gcn_forward.5} parent=19 // pred_check_branch
          %316 = sbr.rel (%p314) target = $region62
        $region61: #{gcn_forward.5} parent=19 // pred_region
          %s317 = smul.u32 32, %s17
          %p318 = scmp.lt.s32.totalorder %s317, 63
          %s319 = scalar_select %p318, %s317, 63
          %s320 = smul.addr %s319, 4
          %s321 = scalar_lea.vmem %s1, %s320
          %s322 = smul.u32 32, %s17
        $region62: #{gcn_forward.5} parent=19 // pred_fallthru
          _
      $region20: #{gcn_forward.5} parent=5 // pred_fallthru
        _
      %p323 = scmp.le.s32.totalorder 1, %s9
      %p324 = scmp.lt.s32.totalorder %s9, 5
      %p325 = pnand %p323, %p324
      %p326 = pneg %p325
      // Predicated region
      $region63: #{gcn_forward.5} parent=5 // pred_check
        _
      $region64: #{gcn_forward.5} parent=5 // pred_check_branch
        %328 = sbr.rel (%p325) target = $region66
      $region65: #{gcn_forward.5} parent=5 // pred_region
        %s329 = ssub.s32 %s9, 1
        %s330 = sand.u32 %s36, 1
        %s331 = sand.u32 %s36, 1
        %s332 = smul.addr %s331, 256
        %s333 = scalar_lea.vmem [#allocation3], %s332
        // Predicated region
        $region67: #{gcn_forward.5} parent=65 // pred_check
          %p334 = pneg %p49
        $region68: #{gcn_forward.5} parent=65 // pred_check_branch
          %336 = sbr.rel (%p334) target = $region70
        $region69: #{gcn_forward.5} parent=65 // pred_region
          _
        $region70: #{gcn_forward.5} parent=65 // pred_fallthru
          _
        %s337 = sand.u32 %s36, 1
        %s338 = sand.u32 %s36, 1
        %s339 = smul.addr %s338, 256
        %s340 = scalar_lea.vmem [#allocation3], %s339
        %p341 = pneg %p49
        %p342 = pneg %p46
        %s343 = smul.u32 32, %s19
        %p344 = scmp.lt.s32.totalorder %s343, 63
        %s345 = scalar_select %p344, %s343, 63
        %s346 = smul.addr %s345, 4
        %s347 = scalar_lea.vmem %s1, %s346
        %p348 = pneg %p75
        %p349 = pneg %p72
        %p350 = pneg %p96
        %p351 = pneg %p93
        %p352 = pneg %p122
        %p353 = pneg %p119
        %s354 = smul.u32 32, %s18
        %p355 = scmp.lt.s32.totalorder %s354, 63
        %s356 = scalar_select %p355, %s354, 63
        %s357 = smul.addr %s356, 4
        %s358 = scalar_lea.vmem %s3, %s357
        %s359 = smul.u32 32, %s18
        %s360 = smul.u32 2, %s19
        %s361 = smul.u32 32, %s19
        %p362 = scmp.lt.s32.totalorder %s361, 63
        %s363 = scalar_select %p362, %s361, 63
        %s364 = smul.addr %s363, 4
        %s365 = scalar_lea.vmem %s1, %s364
        %s366 = smul.u32 32, %s19
        %s367 = smul.u32 32, %s18
        %p368 = scmp.lt.s32.totalorder %s367, 63
        %s369 = scalar_select %p368, %s367, 63
        %s370 = smul.addr %s369, 4
        %s371 = scalar_lea.vmem %s3, %s370
        %s372 = smul.u32 32, %s18
        %p373 = scmp.eq.s32.totalorder %s19, 0
        // Predicated region
        $region71: #{gcn_forward.5} parent=65 // pred_check
          %p374 = pneg %p373
        $region72: #{gcn_forward.5} parent=65 // pred_check_branch
          %376 = sbr.rel (%p374) target = $region74
        $region73: #{gcn_forward.5} parent=65 // pred_region
          %377 = vst [vmem:[#allocation2] sm:$0xff] 0.0
          %378 = vst [vmem:[#allocation2 + $0x8] sm:$0xff] 0.0
          %379 = vst [vmem:[#allocation2 + $0x10] sm:$0xff] 0.0
          %380 = vst [vmem:[#allocation2 + $0x18] sm:$0xff] 0.0
          %381 = vst [vmem:[#allocation2 + $0x20] sm:$0xff] 0.0
          %382 = vst [vmem:[#allocation2 + $0x28] sm:$0xff] 0.0
          %383 = vst [vmem:[#allocation2 + $0x30] sm:$0xff] 0.0
          %384 = vst [vmem:[#allocation2 + $0x38] sm:$0xff] 0.0
          %385 = vst [vmem:[#allocation2 + $0x40] sm:$0xff] 0.0
          %386 = vst [vmem:[#allocation2 + $0x48] sm:$0xff] 0.0
          %387 = vst [vmem:[#allocation2 + $0x50] sm:$0xff] 0.0
          %388 = vst [vmem:[#allocation2 + $0x58] sm:$0xff] 0.0
          %389 = vst [vmem:[#allocation2 + $0x60] sm:$0xff] 0.0
          %390 = vst [vmem:[#allocation2 + $0x68] sm:$0xff] 0.0
          %391 = vst [vmem:[#allocation2 + $0x70] sm:$0xff] 0.0
          %392 = vst [vmem:[#allocation2 + $0x78] sm:$0xff] 0.0
          %393 = vst [vmem:[#allocation2 + $0x80] sm:$0xff] 0.0
          %394 = vst [vmem:[#allocation2 + $0x88] sm:$0xff] 0.0
          %395 = vst [vmem:[#allocation2 + $0x90] sm:$0xff] 0.0
          %396 = vst [vmem:[#allocation2 + $0x98] sm:$0xff] 0.0
          %397 = vst [vmem:[#allocation2 + $0xa0] sm:$0xff] 0.0
          %398 = vst [vmem:[#allocation2 + $0xa8] sm:$0xff] 0.0
          %399 = vst [vmem:[#allocation2 + $0xb0] sm:$0xff] 0.0
          %400 = vst [vmem:[#allocation2 + $0xb8] sm:$0xff] 0.0
          %401 = vst [vmem:[#allocation2 + $0xc0] sm:$0xff] 0.0
          %402 = vst [vmem:[#allocation2 + $0xc8] sm:$0xff] 0.0
          %403 = vst [vmem:[#allocation2 + $0xd0] sm:$0xff] 0.0
          %404 = vst [vmem:[#allocation2 + $0xd8] sm:$0xff] 0.0
          %405 = vst [vmem:[#allocation2 + $0xe0] sm:$0xff] 0.0
          %406 = vst [vmem:[#allocation2 + $0xe8] sm:$0xff] 0.0
          %407 = vst [vmem:[#allocation2 + $0xf0] sm:$0xff] 0.0
          %408 = vst [vmem:[#allocation2 + $0xf8] sm:$0xff] 0.0
        $region74: #{gcn_forward.5} parent=65 // pred_fallthru
          _
        %v409 = vld [vmem:[#allocation2] sm:$0xff]
        %v410 = vld [vmem:[#allocation2 + $0x8] sm:$0xff]
        %v411 = vld [vmem:[#allocation2 + $0x10] sm:$0xff]
        %v412 = vld [vmem:[#allocation2 + $0x18] sm:$0xff]
        %v413 = vld [vmem:[#allocation2 + $0x20] sm:$0xff]
        %v414 = vld [vmem:[#allocation2 + $0x28] sm:$0xff]
        %v415 = vld [vmem:[#allocation2 + $0x30] sm:$0xff]
        %v416 = vld [vmem:[#allocation2 + $0x38] sm:$0xff]
        %v417 = vld [vmem:[#allocation2 + $0x40] sm:$0xff]
        %v418 = vld [vmem:[#allocation2 + $0x48] sm:$0xff]
        %v419 = vld [vmem:[#allocation2 + $0x50] sm:$0xff]
        %v420 = vld [vmem:[#allocation2 + $0x58] sm:$0xff]
        %v421 = vld [vmem:[#allocation2 + $0x60] sm:$0xff]
        %v422 = vld [vmem:[#allocation2 + $0x68] sm:$0xff]
        %v423 = vld [vmem:[#allocation2 + $0x70] sm:$0xff]
        %v424 = vld [vmem:[#allocation2 + $0x78] sm:$0xff]
        %v425 = vld [vmem:[#allocation2 + $0x80] sm:$0xff]
        %v426 = vld [vmem:[#allocation2 + $0x88] sm:$0xff]
        %v427 = vld [vmem:[#allocation2 + $0x90] sm:$0xff]
        %v428 = vld [vmem:[#allocation2 + $0x98] sm:$0xff]
        %v429 = vld [vmem:[#allocation2 + $0xa0] sm:$0xff]
        %v430 = vld [vmem:[#allocation2 + $0xa8] sm:$0xff]
        %v431 = vld [vmem:[#allocation2 + $0xb0] sm:$0xff]
        %v432 = vld [vmem:[#allocation2 + $0xb8] sm:$0xff]
        %v433 = vld [vmem:[#allocation2 + $0xc0] sm:$0xff]
        %v434 = vld [vmem:[#allocation2 + $0xc8] sm:$0xff]
        %v435 = vld [vmem:[#allocation2 + $0xd0] sm:$0xff]
        %v436 = vld [vmem:[#allocation2 + $0xd8] sm:$0xff]
        %v437 = vld [vmem:[#allocation2 + $0xe0] sm:$0xff]
        %v438 = vld [vmem:[#allocation2 + $0xe8] sm:$0xff]
        %v439 = vld [vmem:[#allocation2 + $0xf0] sm:$0xff]
        %v440 = vld [vmem:[#allocation2 + $0xf8] sm:$0xff]
        %v441 = vld [vmem:[%s333] sm:$0xff]
        %v442 = vld [vmem:[%s333 + $0x8] sm:$0xff]
        %v443 = vld [vmem:[%s333 + $0x10] sm:$0xff]
        %v444 = vld [vmem:[%s333 + $0x18] sm:$0xff]
        %v445 = vld [vmem:[%s333 + $0x20] sm:$0xff]
        %v446 = vld [vmem:[%s333 + $0x28] sm:$0xff]
        %v447 = vld [vmem:[%s333 + $0x30] sm:$0xff]
        %v448 = vld [vmem:[%s333 + $0x38] sm:$0xff]
        %v449 = vld [vmem:[%s333 + $0x40] sm:$0xff]
        %v450 = vld [vmem:[%s333 + $0x48] sm:$0xff]
        %v451 = vld [vmem:[%s333 + $0x50] sm:$0xff]
        %v452 = vld [vmem:[%s333 + $0x58] sm:$0xff]
        %v453 = vld [vmem:[%s333 + $0x60] sm:$0xff]
        %v454 = vld [vmem:[%s333 + $0x68] sm:$0xff]
        %v455 = vld [vmem:[%s333 + $0x70] sm:$0xff]
        %v456 = vld [vmem:[%s333 + $0x78] sm:$0xff]
        %v457 = vld [vmem:[%s333 + $0x80] sm:$0xff]
        %v458 = vld [vmem:[%s333 + $0x88] sm:$0xff]
        %v459 = vld [vmem:[%s333 + $0x90] sm:$0xff]
        %v460 = vld [vmem:[%s333 + $0x98] sm:$0xff]
        %v461 = vld [vmem:[%s333 + $0xa0] sm:$0xff]
        %v462 = vld [vmem:[%s333 + $0xa8] sm:$0xff]
        %v463 = vld [vmem:[%s333 + $0xb0] sm:$0xff]
        %v464 = vld [vmem:[%s333 + $0xb8] sm:$0xff]
        %v465 = vld [vmem:[%s333 + $0xc0] sm:$0xff]
        %v466 = vld [vmem:[%s333 + $0xc8] sm:$0xff]
        %v467 = vld [vmem:[%s333 + $0xd0] sm:$0xff]
        %v468 = vld [vmem:[%s333 + $0xd8] sm:$0xff]
        %v469 = vld [vmem:[%s333 + $0xe0] sm:$0xff]
        %v470 = vld [vmem:[%s333 + $0xe8] sm:$0xff]
        %v471 = vld [vmem:[%s333 + $0xf0] sm:$0xff]
        %v472 = vld [vmem:[%s333 + $0xf8] sm:$0xff]
        %v473 = vld [vmem:[%s365] sm:$0xf]
        %v474 = vld [vmem:[%s365 + $0x4] sm:$0xf]
        %v475 = vld [vmem:[%s365 + $0x8] sm:$0xf]
        %v476 = vld [vmem:[%s365 + $0xc] sm:$0xf]
        %v477 = vld [vmem:[%s365 + $0x10] sm:$0xf]
        %v478 = vld [vmem:[%s365 + $0x14] sm:$0xf]
        %v479 = vld [vmem:[%s365 + $0x18] sm:$0xf]
        %v480 = vld [vmem:[%s365 + $0x1c] sm:$0xf]
        %v481 = vld [vmem:[%s365 + $0x20] sm:$0xf]
        %v482 = vld [vmem:[%s365 + $0x24] sm:$0xf]
        %v483 = vld [vmem:[%s365 + $0x28] sm:$0xf]
        %v484 = vld [vmem:[%s365 + $0x2c] sm:$0xf]
        %v485 = vld [vmem:[%s365 + $0x30] sm:$0xf]
        %v486 = vld [vmem:[%s365 + $0x34] sm:$0xf]
        %v487 = vld [vmem:[%s365 + $0x38] sm:$0xf]
        %v488 = vld [vmem:[%s365 + $0x3c] sm:$0xf]
        %v489 = vld [vmem:[%s365 + $0x40] sm:$0xf]
        %v490 = vld [vmem:[%s365 + $0x44] sm:$0xf]
        %v491 = vld [vmem:[%s365 + $0x48] sm:$0xf]
        %v492 = vld [vmem:[%s365 + $0x4c] sm:$0xf]
        %v493 = vld [vmem:[%s365 + $0x50] sm:$0xf]
        %v494 = vld [vmem:[%s365 + $0x54] sm:$0xf]
        %v495 = vld [vmem:[%s365 + $0x58] sm:$0xf]
        %v496 = vld [vmem:[%s365 + $0x5c] sm:$0xf]
        %v497 = vld [vmem:[%s365 + $0x60] sm:$0xf]
        %v498 = vld [vmem:[%s365 + $0x64] sm:$0xf]
        %v499 = vld [vmem:[%s365 + $0x68] sm:$0xf]
        %v500 = vld [vmem:[%s365 + $0x6c] sm:$0xf]
        %v501 = vld [vmem:[%s365 + $0x70] sm:$0xf]
        %v502 = vld [vmem:[%s365 + $0x74] sm:$0xf]
        %v503 = vld [vmem:[%s365 + $0x78] sm:$0xf]
        %v504 = vld [vmem:[%s365 + $0x7c] sm:$0xf]
        %v537 = vunpack.c.l.b16 %v441
        %v538 = vunpack.c.h.b16 %v441
        %v539 = vunpack.c.l.b16 %v442
        %v540 = vunpack.c.h.b16 %v442
        %v541 = vunpack.c.l.b16 %v443
        %v542 = vunpack.c.h.b16 %v443
        %v543 = vunpack.c.l.b16 %v444
        %v544 = vunpack.c.h.b16 %v444
        %v545 = vunpack.c.l.b16 %v445
        %v546 = vunpack.c.h.b16 %v445
        %v547 = vunpack.c.l.b16 %v446
        %v548 = vunpack.c.h.b16 %v446
        %v549 = vunpack.c.l.b16 %v447
        %v550 = vunpack.c.h.b16 %v447
        %v551 = vunpack.c.l.b16 %v448
        %v552 = vunpack.c.h.b16 %v448
        %v553 = vunpack.c.l.b16 %v449
        %v554 = vunpack.c.h.b16 %v449
        %v555 = vunpack.c.l.b16 %v450
        %v556 = vunpack.c.h.b16 %v450
        %v557 = vunpack.c.l.b16 %v451
        %v558 = vunpack.c.h.b16 %v451
        %v559 = vunpack.c.l.b16 %v452
        %v560 = vunpack.c.h.b16 %v452
        %v561 = vunpack.c.l.b16 %v453
        %v562 = vunpack.c.h.b16 %v453
        %v563 = vunpack.c.l.b16 %v454
        %v564 = vunpack.c.h.b16 %v454
        %v565 = vunpack.c.l.b16 %v455
        %v566 = vunpack.c.h.b16 %v455
        %v567 = vunpack.c.l.b16 %v456
        %v568 = vunpack.c.h.b16 %v456
        %v569 = vunpack.c.l.b16 %v457
        %v570 = vunpack.c.h.b16 %v457
        %v571 = vunpack.c.l.b16 %v458
        %v572 = vunpack.c.h.b16 %v458
        %v573 = vunpack.c.l.b16 %v459
        %v574 = vunpack.c.h.b16 %v459
        %v575 = vunpack.c.l.b16 %v460
        %v576 = vunpack.c.h.b16 %v460
        %v577 = vunpack.c.l.b16 %v461
        %v578 = vunpack.c.h.b16 %v461
        %v579 = vunpack.c.l.b16 %v462
        %v580 = vunpack.c.h.b16 %v462
        %v581 = vunpack.c.l.b16 %v463
        %v582 = vunpack.c.h.b16 %v463
        %v583 = vunpack.c.l.b16 %v464
        %v584 = vunpack.c.h.b16 %v464
        %v585 = vunpack.c.l.b16 %v465
        %v586 = vunpack.c.h.b16 %v465
        %v587 = vunpack.c.l.b16 %v466
        %v588 = vunpack.c.h.b16 %v466
        %v589 = vunpack.c.l.b16 %v467
        %v590 = vunpack.c.h.b16 %v467
        %v591 = vunpack.c.l.b16 %v468
        %v592 = vunpack.c.h.b16 %v468
        %v593 = vunpack.c.l.b16 %v469
        %v594 = vunpack.c.h.b16 %v469
        %v595 = vunpack.c.l.b16 %v470
        %v596 = vunpack.c.h.b16 %v470
        %v597 = vunpack.c.l.b16 %v471
        %v598 = vunpack.c.h.b16 %v471
        %v599 = vunpack.c.l.b16 %v472
        %v600 = vunpack.c.h.b16 %v472
        %v601 = vpack.c.b16 %v539, %v537
        %v602 = vpack.c.b16 %v540, %v538
        %v603 = vpack.c.b16 %v543, %v541
        %v604 = vpack.c.b16 %v544, %v542
        %v605 = vpack.c.b16 %v547, %v545
        %v606 = vpack.c.b16 %v548, %v546
        %v607 = vpack.c.b16 %v551, %v549
        %v608 = vpack.c.b16 %v552, %v550
        %v609 = vpack.c.b16 %v555, %v553
        %v610 = vpack.c.b16 %v556, %v554
        %v611 = vpack.c.b16 %v559, %v557
        %v612 = vpack.c.b16 %v560, %v558
        %v613 = vpack.c.b16 %v563, %v561
        %v614 = vpack.c.b16 %v564, %v562
        %v615 = vpack.c.b16 %v567, %v565
        %v616 = vpack.c.b16 %v568, %v566
        %v617 = vpack.c.b16 %v571, %v569
        %v618 = vpack.c.b16 %v572, %v570
        %v619 = vpack.c.b16 %v575, %v573
        %v620 = vpack.c.b16 %v576, %v574
        %v621 = vpack.c.b16 %v579, %v577
        %v622 = vpack.c.b16 %v580, %v578
        %v623 = vpack.c.b16 %v583, %v581
        %v624 = vpack.c.b16 %v584, %v582
        %v625 = vpack.c.b16 %v587, %v585
        %v626 = vpack.c.b16 %v588, %v586
        %v627 = vpack.c.b16 %v591, %v589
        %v628 = vpack.c.b16 %v592, %v590
        %v629 = vpack.c.b16 %v595, %v593
        %v630 = vpack.c.b16 %v596, %v594
        %v631 = vpack.c.b16 %v599, %v597
        %v632 = vpack.c.b16 %v600, %v598
        %v697 = vunpack.c.l.b16 %v473
        %v698 = vunpack.c.l.b16 %v474
        %v699 = vunpack.c.l.b16 %v475
        %v700 = vunpack.c.l.b16 %v476
        %v701 = vunpack.c.l.b16 %v477
        %v702 = vunpack.c.l.b16 %v478
        %v703 = vunpack.c.l.b16 %v479
        %v704 = vunpack.c.l.b16 %v480
        %v705 = vunpack.c.l.b16 %v481
        %v706 = vunpack.c.l.b16 %v482
        %v707 = vunpack.c.l.b16 %v483
        %v708 = vunpack.c.l.b16 %v484
        %v709 = vunpack.c.l.b16 %v485
        %v710 = vunpack.c.l.b16 %v486
        %v711 = vunpack.c.l.b16 %v487
        %v712 = vunpack.c.l.b16 %v488
        %v713 = vunpack.c.l.b16 %v489
        %v714 = vunpack.c.l.b16 %v490
        %v715 = vunpack.c.l.b16 %v491
        %v716 = vunpack.c.l.b16 %v492
        %v717 = vunpack.c.l.b16 %v493
        %v718 = vunpack.c.l.b16 %v494
        %v719 = vunpack.c.l.b16 %v495
        %v720 = vunpack.c.l.b16 %v496
        %v721 = vunpack.c.l.b16 %v497
        %v722 = vunpack.c.l.b16 %v498
        %v723 = vunpack.c.l.b16 %v499
        %v724 = vunpack.c.l.b16 %v500
        %v725 = vunpack.c.l.b16 %v501
        %v726 = vunpack.c.l.b16 %v502
        %v727 = vunpack.c.l.b16 %v503
        %v728 = vunpack.c.l.b16 %v504
        %v729 = vpack.c.b16 %v698, %v697
        %v730 = vpack.c.b16 %v700, %v699
        %v731 = vpack.c.b16 %v702, %v701
        %v732 = vpack.c.b16 %v704, %v703
        %v733 = vpack.c.b16 %v706, %v705
        %v734 = vpack.c.b16 %v708, %v707
        %v735 = vpack.c.b16 %v710, %v709
        %v736 = vpack.c.b16 %v712, %v711
        %v737 = vpack.c.b16 %v714, %v713
        %v738 = vpack.c.b16 %v716, %v715
        %v739 = vpack.c.b16 %v718, %v717
        %v740 = vpack.c.b16 %v720, %v719
        %v741 = vpack.c.b16 %v722, %v721
        %v742 = vpack.c.b16 %v724, %v723
        %v743 = vpack.c.b16 %v726, %v725
        %v744 = vpack.c.b16 %v728, %v727
        %761 = vmatpush.bf16.msra.mxu0 %v736
        %762 = vmatpush.bf16.msra.mxu0 %v735
        %763 = vmatpush.bf16.msra.mxu0 %v734
        %764 = vmatpush.bf16.msra.mxu0 %v733
        %765 = vmatpush.bf16.msra.mxu0 %v732
        %766 = vmatpush.bf16.msra.mxu0 %v731
        %767 = vmatpush.bf16.msra.mxu0 %v730
        %768 = vmatpush.bf16.msra.mxu0 %v729
        %769 = vmatmul.bf16.gmra.mxu0 %v601
        %v770 = vpop.f32.mrf.mxu0
        %v771 = vadd.f32 0.0, %v770
        %v772 = vpop.f32.mrf.mxu0
        %v773 = vadd.f32 0.0, %v772
        %774 = vmatmul.bf16.gmra.mxu0 %v603
        %v775 = vpop.f32.mrf.mxu0
        %v776 = vadd.f32 0.0, %v775
        %v777 = vpop.f32.mrf.mxu0
        %v778 = vadd.f32 0.0, %v777
        %779 = vmatmul.bf16.gmra.mxu0 %v605
        %v780 = vpop.f32.mrf.mxu0
        %v781 = vadd.f32 0.0, %v780
        %v782 = vpop.f32.mrf.mxu0
        %v783 = vadd.f32 0.0, %v782
        %784 = vmatmul.bf16.gmra.mxu0 %v607
        %v785 = vpop.f32.mrf.mxu0
        %v786 = vadd.f32 0.0, %v785
        %v787 = vpop.f32.mrf.mxu0
        %v788 = vadd.f32 0.0, %v787
        %789 = vmatmul.bf16.gmra.mxu0 %v609
        %v790 = vpop.f32.mrf.mxu0
        %v791 = vadd.f32 0.0, %v790
        %v792 = vpop.f32.mrf.mxu0
        %v793 = vadd.f32 0.0, %v792
        %794 = vmatmul.bf16.gmra.mxu0 %v611
        %v795 = vpop.f32.mrf.mxu0
        %v796 = vadd.f32 0.0, %v795
        %v797 = vpop.f32.mrf.mxu0
        %v798 = vadd.f32 0.0, %v797
        %799 = vmatmul.bf16.gmra.mxu0 %v613
        %v800 = vpop.f32.mrf.mxu0
        %v801 = vadd.f32 0.0, %v800
        %v802 = vpop.f32.mrf.mxu0
        %v803 = vadd.f32 0.0, %v802
        %804 = vmatmul.bf16.gmra.mxu0 %v615
        %v805 = vpop.f32.mrf.mxu0
        %v806 = vadd.f32 0.0, %v805
        %v807 = vpop.f32.mrf.mxu0
        %v808 = vadd.f32 0.0, %v807
        %809 = vmatmul.bf16.gmra.mxu0 %v617
        %v810 = vpop.f32.mrf.mxu0
        %v811 = vadd.f32 0.0, %v810
        %v812 = vpop.f32.mrf.mxu0
        %v813 = vadd.f32 0.0, %v812
        %814 = vmatmul.bf16.gmra.mxu0 %v619
        %v815 = vpop.f32.mrf.mxu0
        %v816 = vadd.f32 0.0, %v815
        %v817 = vpop.f32.mrf.mxu0
        %v818 = vadd.f32 0.0, %v817
        %819 = vmatmul.bf16.gmra.mxu0 %v621
        %v820 = vpop.f32.mrf.mxu0
        %v821 = vadd.f32 0.0, %v820
        %v822 = vpop.f32.mrf.mxu0
        %v823 = vadd.f32 0.0, %v822
        %824 = vmatmul.bf16.gmra.mxu0 %v623
        %v825 = vpop.f32.mrf.mxu0
        %v826 = vadd.f32 0.0, %v825
        %v827 = vpop.f32.mrf.mxu0
        %v828 = vadd.f32 0.0, %v827
        %829 = vmatmul.bf16.gmra.mxu0 %v625
        %v830 = vpop.f32.mrf.mxu0
        %v831 = vadd.f32 0.0, %v830
        %v832 = vpop.f32.mrf.mxu0
        %v833 = vadd.f32 0.0, %v832
        %834 = vmatmul.bf16.gmra.mxu0 %v627
        %v835 = vpop.f32.mrf.mxu0
        %v836 = vadd.f32 0.0, %v835
        %v837 = vpop.f32.mrf.mxu0
        %v838 = vadd.f32 0.0, %v837
        %839 = vmatmul.bf16.gmra.mxu0 %v629
        %v840 = vpop.f32.mrf.mxu0
        %v841 = vadd.f32 0.0, %v840
        %v842 = vpop.f32.mrf.mxu0
        %v843 = vadd.f32 0.0, %v842
        %844 = vmatmul.bf16.gmra.mxu0 %v631
        %v845 = vpop.f32.mrf.mxu0
        %v846 = vadd.f32 0.0, %v845
        %v847 = vpop.f32.mrf.mxu0
        %v848 = vadd.f32 0.0, %v847
        %849 = vdwg.mxu0
        %850 = vmatpush.bf16.msra.mxu0 %v744
        %851 = vmatpush.bf16.msra.mxu0 %v743
        %852 = vmatpush.bf16.msra.mxu0 %v742
        %853 = vmatpush.bf16.msra.mxu0 %v741
        %854 = vmatpush.bf16.msra.mxu0 %v740
        %855 = vmatpush.bf16.msra.mxu0 %v739
        %856 = vmatpush.bf16.msra.mxu0 %v738
        %857 = vmatpush.bf16.msra.mxu0 %v737
        %858 = vmatmul.bf16.gmra.mxu0 %v602
        %v859 = vpop.f32.mrf.mxu0
        %v860 = vadd.f32 %v771, %v859
        %v861 = vpop.f32.mrf.mxu0
        %v862 = vadd.f32 %v773, %v861
        %863 = vmatmul.bf16.gmra.mxu0 %v604
        %v864 = vpop.f32.mrf.mxu0
        %v865 = vadd.f32 %v776, %v864
        %v866 = vpop.f32.mrf.mxu0
        %v867 = vadd.f32 %v778, %v866
        %868 = vmatmul.bf16.gmra.mxu0 %v606
        %v869 = vpop.f32.mrf.mxu0
        %v870 = vadd.f32 %v781, %v869
        %v871 = vpop.f32.mrf.mxu0
        %v872 = vadd.f32 %v783, %v871
        %873 = vmatmul.bf16.gmra.mxu0 %v608
        %v874 = vpop.f32.mrf.mxu0
        %v875 = vadd.f32 %v786, %v874
        %v876 = vpop.f32.mrf.mxu0
        %v877 = vadd.f32 %v788, %v876
        %878 = vmatmul.bf16.gmra.mxu0 %v610
        %v879 = vpop.f32.mrf.mxu0
        %v880 = vadd.f32 %v791, %v879
        %v881 = vpop.f32.mrf.mxu0
        %v882 = vadd.f32 %v793, %v881
        %883 = vmatmul.bf16.gmra.mxu0 %v612
        %v884 = vpop.f32.mrf.mxu0
        %v885 = vadd.f32 %v796, %v884
        %v886 = vpop.f32.mrf.mxu0
        %v887 = vadd.f32 %v798, %v886
        %888 = vmatmul.bf16.gmra.mxu0 %v614
        %v889 = vpop.f32.mrf.mxu0
        %v890 = vadd.f32 %v801, %v889
        %v891 = vpop.f32.mrf.mxu0
        %v892 = vadd.f32 %v803, %v891
        %893 = vmatmul.bf16.gmra.mxu0 %v616
        %v894 = vpop.f32.mrf.mxu0
        %v895 = vadd.f32 %v806, %v894
        %v896 = vpop.f32.mrf.mxu0
        %v897 = vadd.f32 %v808, %v896
        %898 = vmatmul.bf16.gmra.mxu0 %v618
        %v899 = vpop.f32.mrf.mxu0
        %v900 = vadd.f32 %v811, %v899
        %v901 = vpop.f32.mrf.mxu0
        %v902 = vadd.f32 %v813, %v901
        %903 = vmatmul.bf16.gmra.mxu0 %v620
        %v904 = vpop.f32.mrf.mxu0
        %v905 = vadd.f32 %v816, %v904
        %v906 = vpop.f32.mrf.mxu0
        %v907 = vadd.f32 %v818, %v906
        %908 = vmatmul.bf16.gmra.mxu0 %v622
        %v909 = vpop.f32.mrf.mxu0
        %v910 = vadd.f32 %v821, %v909
        %v911 = vpop.f32.mrf.mxu0
        %v912 = vadd.f32 %v823, %v911
        %913 = vmatmul.bf16.gmra.mxu0 %v624
        %v914 = vpop.f32.mrf.mxu0
        %v915 = vadd.f32 %v826, %v914
        %v916 = vpop.f32.mrf.mxu0
        %v917 = vadd.f32 %v828, %v916
        %918 = vmatmul.bf16.gmra.mxu0 %v626
        %v919 = vpop.f32.mrf.mxu0
        %v920 = vadd.f32 %v831, %v919
        %v921 = vpop.f32.mrf.mxu0
        %v922 = vadd.f32 %v833, %v921
        %923 = vmatmul.bf16.gmra.mxu0 %v628
        %v924 = vpop.f32.mrf.mxu0
        %v925 = vadd.f32 %v836, %v924
        %v926 = vpop.f32.mrf.mxu0
        %v927 = vadd.f32 %v838, %v926
        %928 = vmatmul.bf16.gmra.mxu0 %v630
        %v929 = vpop.f32.mrf.mxu0
        %v930 = vadd.f32 %v841, %v929
        %v931 = vpop.f32.mrf.mxu0
        %v932 = vadd.f32 %v843, %v931
        %933 = vmatmul.bf16.gmra.mxu0 %v632
        %v934 = vpop.f32.mrf.mxu0
        %v935 = vadd.f32 %v846, %v934
        %v936 = vpop.f32.mrf.mxu0
        %v937 = vadd.f32 %v848, %v936
        %938 = vdwg.mxu0
        %v939 = vadd.f32 %v409, %v860
        %v940 = vadd.f32 %v410, %v862
        %v941 = vadd.f32 %v411, %v865
        %v942 = vadd.f32 %v412, %v867
        %v943 = vadd.f32 %v413, %v870
        %v944 = vadd.f32 %v414, %v872
        %v945 = vadd.f32 %v415, %v875
        %v946 = vadd.f32 %v416, %v877
        %v947 = vadd.f32 %v417, %v880
        %v948 = vadd.f32 %v418, %v882
        %v949 = vadd.f32 %v419, %v885
        %v950 = vadd.f32 %v420, %v887
        %v951 = vadd.f32 %v421, %v890
        %v952 = vadd.f32 %v422, %v892
        %v953 = vadd.f32 %v423, %v895
        %v954 = vadd.f32 %v424, %v897
        %v955 = vadd.f32 %v425, %v900
        %v956 = vadd.f32 %v426, %v902
        %v957 = vadd.f32 %v427, %v905
        %v958 = vadd.f32 %v428, %v907
        %v959 = vadd.f32 %v429, %v910
        %v960 = vadd.f32 %v430, %v912
        %v961 = vadd.f32 %v431, %v915
        %v962 = vadd.f32 %v432, %v917
        %v963 = vadd.f32 %v433, %v920
        %v964 = vadd.f32 %v434, %v922
        %v965 = vadd.f32 %v435, %v925
        %v966 = vadd.f32 %v436, %v927
        %v967 = vadd.f32 %v437, %v930
        %v968 = vadd.f32 %v438, %v932
        %v969 = vadd.f32 %v439, %v935
        %v970 = vadd.f32 %v440, %v937
        %971 = vst [vmem:[#allocation2] sm:$0xff] %v939
        %972 = vst [vmem:[#allocation2 + $0x8] sm:$0xff] %v940
        %973 = vst [vmem:[#allocation2 + $0x10] sm:$0xff] %v941
        %974 = vst [vmem:[#allocation2 + $0x18] sm:$0xff] %v942
        %975 = vst [vmem:[#allocation2 + $0x20] sm:$0xff] %v943
        %976 = vst [vmem:[#allocation2 + $0x28] sm:$0xff] %v944
        %977 = vst [vmem:[#allocation2 + $0x30] sm:$0xff] %v945
        %978 = vst [vmem:[#allocation2 + $0x38] sm:$0xff] %v946
        %979 = vst [vmem:[#allocation2 + $0x40] sm:$0xff] %v947
        %980 = vst [vmem:[#allocation2 + $0x48] sm:$0xff] %v948
        %981 = vst [vmem:[#allocation2 + $0x50] sm:$0xff] %v949
        %982 = vst [vmem:[#allocation2 + $0x58] sm:$0xff] %v950
        %983 = vst [vmem:[#allocation2 + $0x60] sm:$0xff] %v951
        %984 = vst [vmem:[#allocation2 + $0x68] sm:$0xff] %v952
        %985 = vst [vmem:[#allocation2 + $0x70] sm:$0xff] %v953
        %986 = vst [vmem:[#allocation2 + $0x78] sm:$0xff] %v954
        %987 = vst [vmem:[#allocation2 + $0x80] sm:$0xff] %v955
        %988 = vst [vmem:[#allocation2 + $0x88] sm:$0xff] %v956
        %989 = vst [vmem:[#allocation2 + $0x90] sm:$0xff] %v957
        %990 = vst [vmem:[#allocation2 + $0x98] sm:$0xff] %v958
        %991 = vst [vmem:[#allocation2 + $0xa0] sm:$0xff] %v959
        %992 = vst [vmem:[#allocation2 + $0xa8] sm:$0xff] %v960
        %993 = vst [vmem:[#allocation2 + $0xb0] sm:$0xff] %v961
        %994 = vst [vmem:[#allocation2 + $0xb8] sm:$0xff] %v962
        %995 = vst [vmem:[#allocation2 + $0xc0] sm:$0xff] %v963
        %996 = vst [vmem:[#allocation2 + $0xc8] sm:$0xff] %v964
        %997 = vst [vmem:[#allocation2 + $0xd0] sm:$0xff] %v965
        %998 = vst [vmem:[#allocation2 + $0xd8] sm:$0xff] %v966
        %999 = vst [vmem:[#allocation2 + $0xe0] sm:$0xff] %v967
        %1000 = vst [vmem:[#allocation2 + $0xe8] sm:$0xff] %v968
        %1001 = vst [vmem:[#allocation2 + $0xf0] sm:$0xff] %v969
        %1002 = vst [vmem:[#allocation2 + $0xf8] sm:$0xff] %v970
        %p1003 = scmp.eq.s32.totalorder %s19, 1
        // Predicated region
        $region75: #{gcn_forward.5} parent=65 // pred_check
          %p1004 = pneg %p1003
        $region76: #{gcn_forward.5} parent=65 // pred_check_branch
          %1006 = sbr.rel (%p1004) target = $region78
        $region77: #{gcn_forward.5} parent=65 // pred_region
          %v1007 = vld [vmem:[#allocation2] sm:$0xff]
          %v1008 = vld [vmem:[#allocation2 + $0x8] sm:$0xff]
          %v1009 = vld [vmem:[#allocation2 + $0x10] sm:$0xff]
          %v1010 = vld [vmem:[#allocation2 + $0x18] sm:$0xff]
          %v1011 = vld [vmem:[#allocation2 + $0x20] sm:$0xff]
          %v1012 = vld [vmem:[#allocation2 + $0x28] sm:$0xff]
          %v1013 = vld [vmem:[#allocation2 + $0x30] sm:$0xff]
          %v1014 = vld [vmem:[#allocation2 + $0x38] sm:$0xff]
          %v1015 = vld [vmem:[#allocation2 + $0x40] sm:$0xff]
          %v1016 = vld [vmem:[#allocation2 + $0x48] sm:$0xff]
          %v1017 = vld [vmem:[#allocation2 + $0x50] sm:$0xff]
          %v1018 = vld [vmem:[#allocation2 + $0x58] sm:$0xff]
          %v1019 = vld [vmem:[#allocation2 + $0x60] sm:$0xff]
          %v1020 = vld [vmem:[#allocation2 + $0x68] sm:$0xff]
          %v1021 = vld [vmem:[#allocation2 + $0x70] sm:$0xff]
          %v1022 = vld [vmem:[#allocation2 + $0x78] sm:$0xff]
          %v1023 = vld [vmem:[#allocation2 + $0x80] sm:$0xff]
          %v1024 = vld [vmem:[#allocation2 + $0x88] sm:$0xff]
          %v1025 = vld [vmem:[#allocation2 + $0x90] sm:$0xff]
          %v1026 = vld [vmem:[#allocation2 + $0x98] sm:$0xff]
          %v1027 = vld [vmem:[#allocation2 + $0xa0] sm:$0xff]
          %v1028 = vld [vmem:[#allocation2 + $0xa8] sm:$0xff]
          %v1029 = vld [vmem:[#allocation2 + $0xb0] sm:$0xff]
          %v1030 = vld [vmem:[#allocation2 + $0xb8] sm:$0xff]
          %v1031 = vld [vmem:[#allocation2 + $0xc0] sm:$0xff]
          %v1032 = vld [vmem:[#allocation2 + $0xc8] sm:$0xff]
          %v1033 = vld [vmem:[#allocation2 + $0xd0] sm:$0xff]
          %v1034 = vld [vmem:[#allocation2 + $0xd8] sm:$0xff]
          %v1035 = vld [vmem:[#allocation2 + $0xe0] sm:$0xff]
          %v1036 = vld [vmem:[#allocation2 + $0xe8] sm:$0xff]
          %v1037 = vld [vmem:[#allocation2 + $0xf0] sm:$0xff]
          %v1038 = vld [vmem:[#allocation2 + $0xf8] sm:$0xff]
          %v1039 = vld [vmem:[%s2] sm:$0x1]
          %v1041 = vperm.slane %v1039, 0
          %v1043 = vadd.f32 %v1007, %v1041
          %v1044 = vadd.f32 %v1008, %v1041
          %v1045 = vadd.f32 %v1009, %v1041
          %v1046 = vadd.f32 %v1010, %v1041
          %v1047 = vadd.f32 %v1011, %v1041
          %v1048 = vadd.f32 %v1012, %v1041
          %v1049 = vadd.f32 %v1013, %v1041
          %v1050 = vadd.f32 %v1014, %v1041
          %v1051 = vadd.f32 %v1015, %v1041
          %v1052 = vadd.f32 %v1016, %v1041
          %v1053 = vadd.f32 %v1017, %v1041
          %v1054 = vadd.f32 %v1018, %v1041
          %v1055 = vadd.f32 %v1019, %v1041
          %v1056 = vadd.f32 %v1020, %v1041
          %v1057 = vadd.f32 %v1021, %v1041
          %v1058 = vadd.f32 %v1022, %v1041
          %v1059 = vadd.f32 %v1023, %v1041
          %v1060 = vadd.f32 %v1024, %v1041
          %v1061 = vadd.f32 %v1025, %v1041
          %v1062 = vadd.f32 %v1026, %v1041
          %v1063 = vadd.f32 %v1027, %v1041
          %v1064 = vadd.f32 %v1028, %v1041
          %v1065 = vadd.f32 %v1029, %v1041
          %v1066 = vadd.f32 %v1030, %v1041
          %v1067 = vadd.f32 %v1031, %v1041
          %v1068 = vadd.f32 %v1032, %v1041
          %v1069 = vadd.f32 %v1033, %v1041
          %v1070 = vadd.f32 %v1034, %v1041
          %v1071 = vadd.f32 %v1035, %v1041
          %v1072 = vadd.f32 %v1036, %v1041
          %v1073 = vadd.f32 %v1037, %v1041
          %v1074 = vadd.f32 %v1038, %v1041
          %v1075 = vmax.f32 %v1043, 0.0
          %v1076 = vmax.f32 %v1044, 0.0
          %v1077 = vmax.f32 %v1045, 0.0
          %v1078 = vmax.f32 %v1046, 0.0
          %v1079 = vmax.f32 %v1047, 0.0
          %v1080 = vmax.f32 %v1048, 0.0
          %v1081 = vmax.f32 %v1049, 0.0
          %v1082 = vmax.f32 %v1050, 0.0
          %v1083 = vmax.f32 %v1051, 0.0
          %v1084 = vmax.f32 %v1052, 0.0
          %v1085 = vmax.f32 %v1053, 0.0
          %v1086 = vmax.f32 %v1054, 0.0
          %v1087 = vmax.f32 %v1055, 0.0
          %v1088 = vmax.f32 %v1056, 0.0
          %v1089 = vmax.f32 %v1057, 0.0
          %v1090 = vmax.f32 %v1058, 0.0
          %v1091 = vmax.f32 %v1059, 0.0
          %v1092 = vmax.f32 %v1060, 0.0
          %v1093 = vmax.f32 %v1061, 0.0
          %v1094 = vmax.f32 %v1062, 0.0
          %v1095 = vmax.f32 %v1063, 0.0
          %v1096 = vmax.f32 %v1064, 0.0
          %v1097 = vmax.f32 %v1065, 0.0
          %v1098 = vmax.f32 %v1066, 0.0
          %v1099 = vmax.f32 %v1067, 0.0
          %v1100 = vmax.f32 %v1068, 0.0
          %v1101 = vmax.f32 %v1069, 0.0
          %v1102 = vmax.f32 %v1070, 0.0
          %v1103 = vmax.f32 %v1071, 0.0
          %v1104 = vmax.f32 %v1072, 0.0
          %v1105 = vmax.f32 %v1073, 0.0
          %v1106 = vmax.f32 %v1074, 0.0
          %v1107 = vpack.c.bf16 %v1075, %v1075
          %v1108 = vpack.c.bf16 %v1076, %v1076
          %v1109 = vpack.c.bf16 %v1077, %v1077
          %v1110 = vpack.c.bf16 %v1078, %v1078
          %v1111 = vpack.c.bf16 %v1079, %v1079
          %v1112 = vpack.c.bf16 %v1080, %v1080
          %v1113 = vpack.c.bf16 %v1081, %v1081
          %v1114 = vpack.c.bf16 %v1082, %v1082
          %v1115 = vpack.c.bf16 %v1083, %v1083
          %v1116 = vpack.c.bf16 %v1084, %v1084
          %v1117 = vpack.c.bf16 %v1085, %v1085
          %v1118 = vpack.c.bf16 %v1086, %v1086
          %v1119 = vpack.c.bf16 %v1087, %v1087
          %v1120 = vpack.c.bf16 %v1088, %v1088
          %v1121 = vpack.c.bf16 %v1089, %v1089
          %v1122 = vpack.c.bf16 %v1090, %v1090
          %v1123 = vpack.c.bf16 %v1091, %v1091
          %v1124 = vpack.c.bf16 %v1092, %v1092
          %v1125 = vpack.c.bf16 %v1093, %v1093
          %v1126 = vpack.c.bf16 %v1094, %v1094
          %v1127 = vpack.c.bf16 %v1095, %v1095
          %v1128 = vpack.c.bf16 %v1096, %v1096
          %v1129 = vpack.c.bf16 %v1097, %v1097
          %v1130 = vpack.c.bf16 %v1098, %v1098
          %v1131 = vpack.c.bf16 %v1099, %v1099
          %v1132 = vpack.c.bf16 %v1100, %v1100
          %v1133 = vpack.c.bf16 %v1101, %v1101
          %v1134 = vpack.c.bf16 %v1102, %v1102
          %v1135 = vpack.c.bf16 %v1103, %v1103
          %v1136 = vpack.c.bf16 %v1104, %v1104
          %v1137 = vpack.c.bf16 %v1105, %v1105
          %v1138 = vpack.c.bf16 %v1106, %v1106
          %1139 = vst [vmem:[%s371] sm:$0xf] %v1107
          %1140 = vst [vmem:[%s371 + $0x4] sm:$0xf] %v1108
          %1141 = vst [vmem:[%s371 + $0x8] sm:$0xf] %v1109
          %1142 = vst [vmem:[%s371 + $0xc] sm:$0xf] %v1110
          %1143 = vst [vmem:[%s371 + $0x10] sm:$0xf] %v1111
          %1144 = vst [vmem:[%s371 + $0x14] sm:$0xf] %v1112
          %1145 = vst [vmem:[%s371 + $0x18] sm:$0xf] %v1113
          %1146 = vst [vmem:[%s371 + $0x1c] sm:$0xf] %v1114
          %1147 = vst [vmem:[%s371 + $0x20] sm:$0xf] %v1115
          %1148 = vst [vmem:[%s371 + $0x24] sm:$0xf] %v1116
          %1149 = vst [vmem:[%s371 + $0x28] sm:$0xf] %v1117
          %1150 = vst [vmem:[%s371 + $0x2c] sm:$0xf] %v1118
          %1151 = vst [vmem:[%s371 + $0x30] sm:$0xf] %v1119
          %1152 = vst [vmem:[%s371 + $0x34] sm:$0xf] %v1120
          %1153 = vst [vmem:[%s371 + $0x38] sm:$0xf] %v1121
          %1154 = vst [vmem:[%s371 + $0x3c] sm:$0xf] %v1122
          %1155 = vst [vmem:[%s371 + $0x40] sm:$0xf] %v1123
          %1156 = vst [vmem:[%s371 + $0x44] sm:$0xf] %v1124
          %1157 = vst [vmem:[%s371 + $0x48] sm:$0xf] %v1125
          %1158 = vst [vmem:[%s371 + $0x4c] sm:$0xf] %v1126
          %1159 = vst [vmem:[%s371 + $0x50] sm:$0xf] %v1127
          %1160 = vst [vmem:[%s371 + $0x54] sm:$0xf] %v1128
          %1161 = vst [vmem:[%s371 + $0x58] sm:$0xf] %v1129
          %1162 = vst [vmem:[%s371 + $0x5c] sm:$0xf] %v1130
          %1163 = vst [vmem:[%s371 + $0x60] sm:$0xf] %v1131
          %1164 = vst [vmem:[%s371 + $0x64] sm:$0xf] %v1132
          %1165 = vst [vmem:[%s371 + $0x68] sm:$0xf] %v1133
          %1166 = vst [vmem:[%s371 + $0x6c] sm:$0xf] %v1134
          %1167 = vst [vmem:[%s371 + $0x70] sm:$0xf] %v1135
          %1168 = vst [vmem:[%s371 + $0x74] sm:$0xf] %v1136
          %1169 = vst [vmem:[%s371 + $0x78] sm:$0xf] %v1137
          %1170 = vst [vmem:[%s371 + $0x7c] sm:$0xf] %v1138
        $region78: #{gcn_forward.5} parent=65 // pred_fallthru
          _
        %s1171 = smul.u32 32, %s18
        %p1172 = scmp.lt.s32.totalorder %s1171, 63
        %s1173 = scalar_select %p1172, %s1171, 63
        %s1174 = smul.addr %s1173, 4
        %s1175 = scalar_lea.vmem %s3, %s1174
        // Predicated region
        $region79: #{gcn_forward.5} parent=65 // pred_check
          %p1176 = pneg %p119
        $region80: #{gcn_forward.5} parent=65 // pred_check_branch
          %1178 = sbr.rel (%p1176) target = $region82
        $region81: #{gcn_forward.5} parent=65 // pred_region
          %s1179 = smul.u32 32, %s18
        $region82: #{gcn_forward.5} parent=65 // pred_fallthru
          _
      $region66: #{gcn_forward.5} parent=5 // pred_fallthru
        _
      %p1180 = scmp.le.s32.totalorder 2, %s9
      // Predicated region
      $region83: #{gcn_forward.5} parent=5 // pred_check
        %p1181 = pneg %p1180
      $region84: #{gcn_forward.5} parent=5 // pred_check_branch
        %1183 = sbr.rel (%p1181) target = $region86
      $region85: #{gcn_forward.5} parent=5 // pred_region
        %s1184 = ssub.s32 %s9, 2
        // Predicated region
        $region87: #{gcn_forward.5} parent=85 // pred_check
          %p1185 = pneg %p125
        $region88: #{gcn_forward.5} parent=85 // pred_check_branch
          %1187 = sbr.rel (%p1185) target = $region90
        $region89: #{gcn_forward.5} parent=85 // pred_region
          %s1188 = smul.u32 32, %s20
          %p1189 = scmp.lt.s32.totalorder %s1188, 63
          %s1190 = scalar_select %p1189, %s1188, 63
          %s1191 = smul.addr %s1190, 4
          %s1192 = scalar_lea.vmem %s3, %s1191
        $region90: #{gcn_forward.5} parent=85 // pred_fallthru
          _
      $region86: #{gcn_forward.5} parent=5 // pred_fallthru
        _
    $region6: #{gcn_forward.5} parent=1 // loop_footer
      %s13 = sadd.s32 1, %s9
    $region7: #{gcn_forward.5} parent=1 // loop_footer_branch
      %8 = sbr.rel target = $region3
    $region8: #{gcn_forward.5} parent=1 // loop_exit
      _

</llo_original>
